<compile_context>
chip_gen: v7x
topology: tpu7x:2x2x1
jax: 0.10.0
libtpu: 0.0.40
codegen_flags: <defaults>
</compile_context>

<pallas_src>
import functools
import math

import jax
import jax.numpy as jnp
from jax.experimental import pallas as pl
from jax.experimental.pallas import tpu as pltpu

F_PAD = 128      # padded feature width (lanes)
G3 = 3 * F_PAD   # three GRU gates, lane-concatenated (r | z | n)


# ------------------------------------------------------------------ kernel
def _pg_rnn_kernel(x_ref, h0_ref,
                   wi_ref, wh_ref, bgi_ref, bhn_ref,
                   wro_ref, bro_ref, wout_ref, bout_ref,
                   probs_ref, hseq_ref,
                   h_carry, gi_buf):
    blk = pl.program_id(0)
    t_blk = x_ref.shape[0]          # static

    @pl.when(blk == 0)
    def _():
        h_carry[...] = h0_ref[...]

    def mm(a, w_ref):
        # Cast activation to the weight dtype at the MXU input; accumulate in f32.
        return jnp.dot(a.astype(w_ref.dtype), w_ref[...],
                       preferred_element_type=jnp.float32)

    # ---- batched (non-recurrent) input projection for the whole time block ----
    # gi holds  x@W_i + (b_ih_r + b_hh_r | b_ih_z + b_hh_z | b_ih_n)  per gate block.
    gi_buf[...] = mm(x_ref[...], wi_ref) + bgi_ref[0:1, :]

    b_hn = bhn_ref[0:1, :]          # (1, F_PAD) f32, b_hh_n

    # ---- serial GRU recurrence: only h @ W_h + gate math on the critical path ----
    def step(t, h):
        gh = mm(h, wh_ref)                                   # (1, 3*F_PAD)
        gi_t = gi_buf[pl.ds(t, 1), :]                        # (1, 3*F_PAD)
        r = jax.nn.sigmoid(gi_t[:, 0:F_PAD] + gh[:, 0:F_PAD])
        z = jax.nn.sigmoid(gi_t[:, F_PAD:2 * F_PAD] + gh[:, F_PAD:2 * F_PAD])
        n = jnp.tanh(gi_t[:, 2 * F_PAD:G3] + r * (gh[:, 2 * F_PAD:G3] + b_hn))
        h_next = (1.0 - z) * n + z * h
        hseq_ref[pl.ds(t, 1), :] = h_next
        return h_next

    h_last = jax.lax.fori_loop(0, t_blk, step, h_carry[0:1, :], unroll=True)
    h_carry[0:1, :] = h_last

    # ---- batched epilogue: readout -> relu -> output -> softmax over the block ----
    hseq = hseq_ref[...]                                     # (t_blk, F_PAD), in VMEM
    z_act = jnp.maximum(mm(hseq, wro_ref) + bro_ref[0:1, :], 0.0)
    prefs = mm(z_act, wout_ref) + bout_ref[0:1, :]           # padded lanes get -1e30
    m = jnp.max(prefs, axis=-1, keepdims=True)
    e = jnp.exp(prefs - m)
    probs_ref[...] = e / jnp.sum(e, axis=-1, keepdims=True)  # exact normalization


# ------------------------------------------------------------------ one-time packing
def prepare_params(params, input_size, hidden_size, output_size,
                   weight_dtype=jnp.float32):
    """One-time packing: transpose, zero-pad, lane-concatenate the GRU gates,
    pre-sum the r/z gate biases, broadcast biases to 8 sublanes, and pre-mask
    padded output lanes with -1e30 (biases always stay f32)."""
    H = hidden_size
    assert input_size <= F_PAD and hidden_size <= F_PAD and output_size <= F_PAD

    def pack_gates(w, in_dim):
        # w: [3H, in_dim], gate order r,z,n -> [F_PAD, 3*F_PAD] (pre-transposed);
        # gate g occupies lanes [g*F_PAD, g*F_PAD + H).
        slab = jnp.zeros((F_PAD, G3), jnp.float32)
        for g in range(3):
            blk = w[g * H:(g + 1) * H, :].T.astype(jnp.float32)   # [in_dim, H]
            slab = slab.at[:in_dim, g * F_PAD:g * F_PAD + H].set(blk)
        return slab.astype(weight_dtype)

    def lane_pack_gate_bias(per_gate_vecs):
        row = jnp.zeros((G3,), jnp.float32)
        for g, v in enumerate(per_gate_vecs):
            row = row.at[g * F_PAD:g * F_PAD + H].set(v.astype(jnp.float32))
        return jnp.broadcast_to(row, (8, G3))

    b_ih = params["b_ih"].astype(jnp.float32)
    b_hh = params["b_hh"].astype(jnp.float32)
    # Pre-summed biases for r and z; n gets only b_ih_n here (b_hh_n stays separate
    # because it sits inside the r* multiply).
    b_gi = lane_pack_gate_bias([b_ih[0:H] + b_hh[0:H],
                                b_ih[H:2 * H] + b_hh[H:2 * H],
                                b_ih[2 * H:3 * H]])
    b_hn_row = jnp.zeros((F_PAD,), jnp.float32).at[:H].set(b_hh[2 * H:3 * H])
    b_hn = jnp.broadcast_to(b_hn_row, (8, F_PAD))

    def pack_linear(w):
        # w: [out, in] -> [F_PAD, F_PAD] holding w.T in the top-left corner.
        slab = jnp.zeros((F_PAD, F_PAD), jnp.float32)
        slab = slab.at[:w.shape[1], :w.shape[0]].set(w.T.astype(jnp.float32))
        return slab.astype(weight_dtype)

    def pack_bias(b, mask_from=None):
        row = jnp.zeros((F_PAD,), jnp.float32).at[:b.shape[0]].set(
            b.astype(jnp.float32))
        if mask_from is not None:
            lane = jnp.arange(F_PAD)
            row = jnp.where(lane < mask_from, row, -1e30)
        return jnp.broadcast_to(row, (8, F_PAD))

    return dict(
        w_i=pack_gates(params["w_ih"], input_size),
        w_h=pack_gates(params["w_hh"], hidden_size),
        b_gi=b_gi,
        b_hn=b_hn,
        w_ro=pack_linear(params["w_readout"]),
        b_ro=pack_bias(params["b_readout"]),
        w_out=pack_linear(params["w_out"]),
        b_out=pack_bias(params["b_out"], mask_from=output_size),
    )


# ------------------------------------------------------------------ forward wrappers
@functools.partial(jax.jit,
                   static_argnames=("hidden_size", "output_size", "t_blk"))
def pg_rnn_rollout(x_seq, h0, prepared, *, hidden_size, output_size, t_blk=32):
    """Run T GRU -> readout -> softmax steps, T_BLK timesteps per grid step.

    x_seq: [T, input_size] f32, h0: [1, hidden_size] f32.
    Returns (probs_seq [T, output_size], h_seq [T, hidden_size])."""
    T, in_dim = x_seq.shape

    # Time-block size: multiple of 8 sublanes, no larger than needed for small T.
    t_blk = max(8, min(int(t_blk), ((T + 7) // 8) * 8))
    t_blk = ((t_blk + 7) // 8) * 8
    n_blk = (T + t_blk - 1) // t_blk
    T_pad = n_blk * t_blk

    # Dense time-on-sublanes layout; only x and h0 are padded per call.
    x_pad = jnp.zeros((T_pad, F_PAD), jnp.float32)
    x_pad = x_pad.at[:T, :in_dim].set(x_seq.astype(jnp.float32))
    h0_pad = jnp.zeros((8, F_PAD), jnp.float32)
    h0_pad = h0_pad.at[0:1, :hidden_size].set(h0.astype(jnp.float32))

    resident = lambda b: (0, 0)    # weights/biases: DMA'd once, stay in VMEM
    timeblk = lambda b: (b, 0)     # per-time-block slabs

    probs_pad, hseq_pad = pl.pallas_call(
        _pg_rnn_kernel,
        out_shape=(jax.ShapeDtypeStruct((T_pad, F_PAD), jnp.float32),
                   jax.ShapeDtypeStruct((T_pad, F_PAD), jnp.float32)),
        grid_spec=pltpu.PrefetchScalarGridSpec(
            num_scalar_prefetch=0,
            grid=(n_blk,),
            in_specs=[
                pl.BlockSpec((t_blk, F_PAD), timeblk),     # x block (time on sublanes)
                pl.BlockSpec((8, F_PAD), resident),        # h0
                pl.BlockSpec((F_PAD, G3), resident),       # W_i  (r|z|n packed)
                pl.BlockSpec((F_PAD, G3), resident),       # W_h  (r|z|n packed)
                pl.BlockSpec((8, G3), resident),           # pre-summed gate biases
                pl.BlockSpec((8, F_PAD), resident),        # b_hh_n
                pl.BlockSpec((F_PAD, F_PAD), resident),    # W_readout^T
                pl.BlockSpec((8, F_PAD), resident),        # b_readout
                pl.BlockSpec((F_PAD, F_PAD), resident),    # W_out^T
                pl.BlockSpec((8, F_PAD), resident),        # b_out (-1e30 padded lanes)
            ],
            out_specs=(
                pl.BlockSpec((t_blk, F_PAD), timeblk),     # probs block
                pl.BlockSpec((t_blk, F_PAD), timeblk),     # h_seq block
            ),
            scratch_shapes=[
                pltpu.VMEM((8, F_PAD), jnp.float32),       # h carry across blocks
                pltpu.VMEM((t_blk, G3), jnp.float32),      # batched gi for the block
            ],
        ),
        compiler_params=pltpu.CompilerParams(
            # h is carried across time blocks via the VMEM scratch -> sequential axis.
            dimension_semantics=("arbitrary",)),
    )(x_pad, h0_pad,
      prepared["w_i"], prepared["w_h"], prepared["b_gi"], prepared["b_hn"],
      prepared["w_ro"], prepared["b_ro"], prepared["w_out"], prepared["b_out"])

    probs = probs_pad[:T, :output_size]
    h_seq = hseq_pad[:T, :hidden_size]
    return probs, h_seq


def pg_rnn_step(x, h, prepared, *, hidden_size, output_size):
    """Single-step forward matching the PyTorch module: (probs [1,O], h_next [1,H])."""
    probs, h_seq = pg_rnn_rollout(x.reshape(1, -1), h, prepared,
                                  hidden_size=hidden_size, output_size=output_size)
    return probs, h_seq


# ------------------------------------------------------------------ init & reference
def init_params(key, input_size, hidden_size, output_size):
    """Deterministic PyTorch-style uniform(-1/sqrt(H), 1/sqrt(H)) init."""
    ks = jax.random.split(key, 8)
    bound = 1.0 / math.sqrt(hidden_size)
    u = lambda k, shape: jax.random.uniform(k, shape, jnp.float32, -bound, bound)
    return dict(
        w_ih=u(ks[0], (3 * hidden_size, input_size)),
        w_hh=u(ks[1], (3 * hidden_size, hidden_size)),
        b_ih=u(ks[2], (3 * hidden_size,)),
        b_hh=u(ks[3], (3 * hidden_size,)),
        w_readout=u(ks[4], (hidden_size, hidden_size)),
        b_readout=u(ks[5], (hidden_size,)),
        w_out=u(ks[6], (output_size, hidden_size)),
        b_out=u(ks[7], (output_size,)),
    )


def ref_rollout(x_seq, h0, params, hidden_size):
    """Pure-JAX reference mirroring the PyTorch forward, scanned over time."""
    H = hidden_size

    def step(h, x):
        xb = x.reshape(1, -1)
        gi = xb @ params["w_ih"].T + params["b_ih"]
        gh = h @ params["w_hh"].T + params["b_hh"]
        i_r, i_z, i_n = gi[:, :H], gi[:, H:2 * H], gi[:, 2 * H:]
        h_r, h_z, h_n = gh[:, :H], gh[:, H:2 * H], gh[:, 2 * H:]
        r = jax.nn.sigmoid(i_r + h_r)
        z = jax.nn.sigmoid(i_z + h_z)
        n = jnp.tanh(i_n + r * h_n)
        h_next = (1.0 - z) * n + z * h
        z_act = jax.nn.relu(h_next @ params["w_readout"].T + params["b_readout"])
        prefs = z_act @ params["w_out"].T + params["b_out"]
        probs = jax.nn.softmax(prefs, axis=-1)
        return h_next, (probs[0], h_next[0])

    _, (probs_seq, h_seq) = jax.lax.scan(step, h0, x_seq)
    return probs_seq, h_seq


# ------------------------------------------------------------------ test
if __name__ == "__main__":
    input_size, hidden_size, output_size = 3, 5, 3
    T = 8

    key = jax.random.PRNGKey(0)
    pkey, xkey, xkey2 = jax.random.split(key, 3)
    params = init_params(pkey, input_size, hidden_size, output_size)

    x_seq = jax.random.normal(xkey, (T, input_size), jnp.float32)
    # initial_hidden_state(): zeros with h[0][0] = 1
    h0 = jnp.zeros((1, hidden_size), jnp.float32).at[0, 0].set(1.0)

    probs_ref, h_ref = ref_rollout(x_seq, h0, params, hidden_size)

    # f32-weight path (default): near-exact check against the reference.
    prep_f32 = prepare_params(params, input_size, hidden_size, output_size)
    probs_f32, h_f32 = pg_rnn_rollout(x_seq, h0, prep_f32,
                                      hidden_size=hidden_size,
                                      output_size=output_size)
    jax.block_until_ready((probs_f32, h_f32))
    assert probs_f32.shape == (T, output_size) and h_f32.shape == (T, hidden_size)
    assert jnp.allclose(probs_f32, probs_ref, atol=2e-3, rtol=2e-3)
    assert jnp.allclose(h_f32, h_ref, atol=2e-3, rtol=2e-3)
    # Exact softmax division -> rows sum to 1 to f32 rounding.
    assert jnp.allclose(probs_f32.sum(-1), 1.0, atol=1e-5)

    # Longer rollout exercising multiple time blocks + padded tail in the last block.
    T_long = 100
    x_long = jax.random.normal(xkey2, (T_long, input_size), jnp.float32)
    probs_ref_l, h_ref_l = ref_rollout(x_long, h0, params, hidden_size)
    probs_l, h_l = pg_rnn_rollout(x_long, h0, prep_f32,
                                  hidden_size=hidden_size, output_size=output_size)
    jax.block_until_ready((probs_l, h_l))
    assert probs_l.shape == (T_long, output_size) and h_l.shape == (T_long, hidden_size)
    assert jnp.allclose(probs_l, probs_ref_l, atol=1e-2, rtol=1e-2)
    assert jnp.allclose(h_l, h_ref_l, atol=1e-2, rtol=1e-2)

    # bf16-weight path: halves resident-weight footprint / DMA, MXU-native dtype.
    # Looser tolerance (weights/activations quantized to bf16 at MXU inputs).
    prep_bf16 = prepare_params(params, input_size, hidden_size, output_size,
                               weight_dtype=jnp.bfloat16)
    probs_bf16, h_bf16 = pg_rnn_rollout(x_seq, h0, prep_bf16,
                                        hidden_size=hidden_size,
                                        output_size=output_size)
    jax.block_until_ready((probs_bf16, h_bf16))
    assert jnp.allclose(probs_bf16, probs_ref, atol=2e-2, rtol=2e-2)
    assert jnp.allclose(h_bf16, h_ref, atol=2e-2, rtol=2e-2)

    # Single-step call matching the PyTorch module's forward(x, h) signature.
    probs1, h1 = pg_rnn_step(x_seq[0], h0, prep_f32,
                             hidden_size=hidden_size, output_size=output_size)
    jax.block_until_ready((probs1, h1))
    assert probs1.shape == (1, output_size) and h1.shape == (1, hidden_size)
    assert jnp.allclose(probs1, probs_ref[0:1], atol=2e-3, rtol=2e-3)
    assert jnp.allclose(h1, h_ref[0:1], atol=2e-3, rtol=2e-3)

    print("KERNEL_OK")
</pallas_src>

<mosaic_0001>
module attributes {stable_mosaic.version = 11 : i64} {
  func.func @_pg_rnn_kernel(%arg0: i32, %arg1: memref<8x128xf32, #tpu.memory_space<vmem>>, %arg2: memref<8x128xf32, #tpu.memory_space<vmem>>, %arg3: memref<128x384xf32, #tpu.memory_space<vmem>>, %arg4: memref<128x384xf32, #tpu.memory_space<vmem>>, %arg5: memref<8x384xf32, #tpu.memory_space<vmem>>, %arg6: memref<8x128xf32, #tpu.memory_space<vmem>>, %arg7: memref<128x128xf32, #tpu.memory_space<vmem>>, %arg8: memref<8x128xf32, #tpu.memory_space<vmem>>, %arg9: memref<128x128xf32, #tpu.memory_space<vmem>>, %arg10: memref<8x128xf32, #tpu.memory_space<vmem>>, %arg11: memref<8x128xf32, #tpu.memory_space<vmem>>, %arg12: memref<8x128xf32, #tpu.memory_space<vmem>>, %arg13: memref<8x128xf32, #tpu.memory_space<vmem>>, %arg14: memref<8x384xf32, #tpu.memory_space<vmem>>) attributes {dimension_semantics = [#tpu.dimension_semantics<arbitrary>], iteration_bounds = array<i64: 1>, scalar_prefetch = 0 : i64, scratch_operands = 2 : i64, tpu.core_type = #tpu.core_type<tc>, window_params = [{transform_indices = @transform_0, window_bounds = array<i64: 8, 128>}, {pipeline_mode = #tpu.pipeline_mode<synchronous>, transform_indices = @transform_1, window_bounds = array<i64: 8, 128>}, {pipeline_mode = #tpu.pipeline_mode<synchronous>, transform_indices = @transform_2, window_bounds = array<i64: 128, 384>}, {pipeline_mode = #tpu.pipeline_mode<synchronous>, transform_indices = @transform_3, window_bounds = array<i64: 128, 384>}, {pipeline_mode = #tpu.pipeline_mode<synchronous>, transform_indices = @transform_4, window_bounds = array<i64: 8, 384>}, {pipeline_mode = #tpu.pipeline_mode<synchronous>, transform_indices = @transform_5, window_bounds = array<i64: 8, 128>}, {pipeline_mode = #tpu.pipeline_mode<synchronous>, transform_indices = @transform_6, window_bounds = array<i64: 128, 128>}, {pipeline_mode = #tpu.pipeline_mode<synchronous>, transform_indices = @transform_7, window_bounds = array<i64: 8, 128>}, {pipeline_mode = #tpu.pipeline_mode<synchronous>, transform_indices = @transform_8, window_bounds = array<i64: 128, 128>}, {pipeline_mode = #tpu.pipeline_mode<synchronous>, transform_indices = @transform_9, window_bounds = array<i64: 8, 128>}, {transform_indices = @transform_10, window_bounds = array<i64: 8, 128>}, {transform_indices = @transform_11, window_bounds = array<i64: 8, 128>}]} {
    %c0_i32 = arith.constant 0 : i32
    %0 = arith.cmpi eq, %arg0, %c0_i32 : i32
    %1 = arith.extui %0 : i1 to i32
    %c0_i32_0 = arith.constant 0 : i32
    %2 = arith.cmpi ne, %1, %c0_i32_0 : i32
    scf.if %2 {
      %c0_96 = arith.constant 0 : index
      %c0_97 = arith.constant 0 : index
      %300 = vector.load %arg2[%c0_96, %c0_97] : memref<8x128xf32, #tpu.memory_space<vmem>>, vector<8x128xf32>
      %c0_98 = arith.constant 0 : index
      %c0_99 = arith.constant 0 : index
      %301 = vector.load %arg13[%c0_98, %c0_99] : memref<8x128xf32, #tpu.memory_space<vmem>>, vector<8x128xf32>
      tpu.vector_store %arg13[%c0_98, %c0_99], %300 {strides = array<i32>} : memref<8x128xf32, #tpu.memory_space<vmem>>, vector<8x128xf32>,
    } else {
    }
    %c0 = arith.constant 0 : index
    %c0_1 = arith.constant 0 : index
    %3 = vector.load %arg1[%c0, %c0_1] : memref<8x128xf32, #tpu.memory_space<vmem>>, vector<8x128xf32>
    %c0_2 = arith.constant 0 : index
    %c0_3 = arith.constant 0 : index
    %4 = vector.load %arg3[%c0_2, %c0_3] : memref<128x384xf32, #tpu.memory_space<vmem>>, vector<128x384xf32>
    %cst = arith.constant dense<0.000000e+00> : vector<8x384xf32>
    %5 = tpu.matmul %3, %4, %cst {dimension_numbers = #tpu.dot_dimension_numbers<[1], [0], [0], [1], [0, 0, 1, 1], [], []>} : vector<8x128xf32>, vector<128x384xf32>, vector<8x384xf32> -> vector<8x384xf32>
    %c0_4 = arith.constant 0 : index
    %c0_5 = arith.constant 0 : index
    %6 = vector.load %arg5[%c0_4, %c0_5] : memref<8x384xf32, #tpu.memory_space<vmem>>, vector<1x384xf32>
    %7 = vector.broadcast %6 : vector<1x384xf32> to vector<8x384xf32>
    %8 = arith.addf %5, %7 : vector<8x384xf32>
    %c0_6 = arith.constant 0 : index
    %c0_7 = arith.constant 0 : index
    %9 = vector.load %arg14[%c0_6, %c0_7] : memref<8x384xf32, #tpu.memory_space<vmem>>, vector<8x384xf32>
    tpu.vector_store %arg14[%c0_6, %c0_7], %8 {strides = array<i32>} : memref<8x384xf32, #tpu.memory_space<vmem>>, vector<8x384xf32>,
    %c0_8 = arith.constant 0 : index
    %c0_9 = arith.constant 0 : index
    %10 = vector.load %arg6[%c0_8, %c0_9] : memref<8x128xf32, #tpu.memory_space<vmem>>, vector<1x128xf32>
    %c0_10 = arith.constant 0 : index
    %c0_11 = arith.constant 0 : index
    %11 = vector.load %arg13[%c0_10, %c0_11] : memref<8x128xf32, #tpu.memory_space<vmem>>, vector<1x128xf32>
    %c0_i32_12 = arith.constant 0 : i32
    %c0_13 = arith.constant 0 : index
    %c0_14 = arith.constant 0 : index
    %12 = vector.load %arg4[%c0_13, %c0_14] : memref<128x384xf32, #tpu.memory_space<vmem>>, vector<128x384xf32>
    %cst_15 = arith.constant dense<0.000000e+00> : vector<1x384xf32>
    %13 = tpu.matmul %11, %12, %cst_15 {dimension_numbers = #tpu.dot_dimension_numbers<[1], [0], [0], [1], [0, 0, 1, 1], [], []>} : vector<1x128xf32>, vector<128x384xf32>, vector<1x384xf32> -> vector<1x384xf32>
    %14 = arith.index_cast %c0_i32_12 : i32 to index
    %c0_16 = arith.constant 0 : index
    %15 = vector.load %arg14[%14, %c0_16] : memref<8x384xf32, #tpu.memory_space<vmem>>, vector<1x384xf32>
    %16 = vector.extract_strided_slice %15 {offsets = [0, 0], sizes = [1, 128], strides = [1, 1]} : vector<1x384xf32> to vector<1x128xf32>
    %17 = vector.extract_strided_slice %13 {offsets = [0, 0], sizes = [1, 128], strides = [1, 1]} : vector<1x384xf32> to vector<1x128xf32>
    %18 = arith.addf %16, %17 : vector<1x128xf32>
    %19 = arith.negf %18 : vector<1x128xf32>
    %20 = math.exp %19 : vector<1x128xf32>
    %cst_17 = arith.constant 1.000000e+00 : f32
    %21 = vector.broadcast %cst_17 : f32 to vector<1x128xf32>
    %22 = arith.addf %21, %20 : vector<1x128xf32>
    %23 = arith.divf %21, %22 : vector<1x128xf32>
    %24 = vector.extract_strided_slice %15 {offsets = [0, 128], sizes = [1, 128], strides = [1, 1]} : vector<1x384xf32> to vector<1x128xf32>
    %25 = vector.extract_strided_slice %13 {offsets = [0, 128], sizes = [1, 128], strides = [1, 1]} : vector<1x384xf32> to vector<1x128xf32>
    %26 = arith.addf %24, %25 : vector<1x128xf32>
    %27 = arith.negf %26 : vector<1x128xf32>
    %28 = math.exp %27 : vector<1x128xf32>
    %cst_18 = arith.constant 1.000000e+00 : f32
    %29 = vector.broadcast %cst_18 : f32 to vector<1x128xf32>
    %30 = arith.addf %29, %28 : vector<1x128xf32>
    %31 = arith.divf %29, %30 : vector<1x128xf32>
    %32 = vector.extract_strided_slice %15 {offsets = [0, 256], sizes = [1, 128], strides = [1, 1]} : vector<1x384xf32> to vector<1x128xf32>
    %33 = vector.extract_strided_slice %13 {offsets = [0, 256], sizes = [1, 128], strides = [1, 1]} : vector<1x384xf32> to vector<1x128xf32>
    %34 = arith.addf %33, %10 : vector<1x128xf32>
    %35 = arith.mulf %23, %34 : vector<1x128xf32>
    %36 = arith.addf %32, %35 : vector<1x128xf32>
    %37 = math.tanh %36 : vector<1x128xf32>
    %cst_19 = arith.constant 1.000000e+00 : f32
    %38 = vector.broadcast %cst_19 : f32 to vector<1x128xf32>
    %39 = arith.subf %38, %31 : vector<1x128xf32>
    %40 = arith.mulf %39, %37 : vector<1x128xf32>
    %41 = arith.mulf %31, %11 : vector<1x128xf32>
    %42 = arith.addf %40, %41 : vector<1x128xf32>
    %43 = arith.index_cast %c0_i32_12 : i32 to index
    %c0_20 = arith.constant 0 : index
    %44 = vector.load %arg12[%43, %c0_20] : memref<8x128xf32, #tpu.memory_space<vmem>>, vector<1x128xf32>
    tpu.vector_store %arg12[%43, %c0_20], %42 {strides = array<i32>} : memref<8x128xf32, #tpu.memory_space<vmem>>, vector<1x128xf32>,
    %c1_i32 = arith.constant 1 : i32
    %c0_21 = arith.constant 0 : index
    %c0_22 = arith.constant 0 : index
    %45 = vector.load %arg4[%c0_21, %c0_22] : memref<128x384xf32, #tpu.memory_space<vmem>>, vector<128x384xf32>
    %cst_23 = arith.constant dense<0.000000e+00> : vector<1x384xf32>
    %46 = tpu.matmul %42, %45, %cst_23 {dimension_numbers = #tpu.dot_dimension_numbers<[1], [0], [0], [1], [0, 0, 1, 1], [], []>} : vector<1x128xf32>, vector<128x384xf32>, vector<1x384xf32> -> vector<1x384xf32>
    %47 = arith.index_cast %c1_i32 : i32 to index
    %c0_24 = arith.constant 0 : index
    %48 = vector.load %arg14[%47, %c0_24] : memref<8x384xf32, #tpu.memory_space<vmem>>, vector<1x384xf32>
    %49 = vector.extract_strided_slice %48 {offsets = [0, 0], sizes = [1, 128], strides = [1, 1]} : vector<1x384xf32> to vector<1x128xf32>
    %50 = vector.extract_strided_slice %46 {offsets = [0, 0], sizes = [1, 128], strides = [1, 1]} : vector<1x384xf32> to vector<1x128xf32>
    %51 = arith.addf %49, %50 : vector<1x128xf32>
    %52 = arith.negf %51 : vector<1x128xf32>
    %53 = math.exp %52 : vector<1x128xf32>
    %cst_25 = arith.constant 1.000000e+00 : f32
    %54 = vector.broadcast %cst_25 : f32 to vector<1x128xf32>
    %55 = arith.addf %54, %53 : vector<1x128xf32>
    %56 = arith.divf %54, %55 : vector<1x128xf32>
    %57 = vector.extract_strided_slice %48 {offsets = [0, 128], sizes = [1, 128], strides = [1, 1]} : vector<1x384xf32> to vector<1x128xf32>
    %58 = vector.extract_strided_slice %46 {offsets = [0, 128], sizes = [1, 128], strides = [1, 1]} : vector<1x384xf32> to vector<1x128xf32>
    %59 = arith.addf %57, %58 : vector<1x128xf32>
    %60 = arith.negf %59 : vector<1x128xf32>
    %61 = math.exp %60 : vector<1x128xf32>
    %cst_26 = arith.constant 1.000000e+00 : f32
    %62 = vector.broadcast %cst_26 : f32 to vector<1x128xf32>
    %63 = arith.addf %62, %61 : vector<1x128xf32>
    %64 = arith.divf %62, %63 : vector<1x128xf32>
    %65 = vector.extract_strided_slice %48 {offsets = [0, 256], sizes = [1, 128], strides = [1, 1]} : vector<1x384xf32> to vector<1x128xf32>
    %66 = vector.extract_strided_slice %46 {offsets = [0, 256], sizes = [1, 128], strides = [1, 1]} : vector<1x384xf32> to vector<1x128xf32>
    %67 = arith.addf %66, %10 : vector<1x128xf32>
    %68 = arith.mulf %56, %67 : vector<1x128xf32>
    %69 = arith.addf %65, %68 : vector<1x128xf32>
    %70 = math.tanh %69 : vector<1x128xf32>
    %cst_27 = arith.constant 1.000000e+00 : f32
    %71 = vector.broadcast %cst_27 : f32 to vector<1x128xf32>
    %72 = arith.subf %71, %64 : vector<1x128xf32>
    %73 = arith.mulf %72, %70 : vector<1x128xf32>
    %74 = arith.mulf %64, %42 : vector<1x128xf32>
    %75 = arith.addf %73, %74 : vector<1x128xf32>
    %76 = arith.index_cast %c1_i32 : i32 to index
    %c0_28 = arith.constant 0 : index
    %77 = vector.load %arg12[%76, %c0_28] : memref<8x128xf32, #tpu.memory_space<vmem>>, vector<1x128xf32>
    tpu.vector_store %arg12[%76, %c0_28], %75 {strides = array<i32>} : memref<8x128xf32, #tpu.memory_space<vmem>>, vector<1x128xf32>,
    %c2_i32 = arith.constant 2 : i32
    %c0_29 = arith.constant 0 : index
    %c0_30 = arith.constant 0 : index
    %78 = vector.load %arg4[%c0_29, %c0_30] : memref<128x384xf32, #tpu.memory_space<vmem>>, vector<128x384xf32>
    %cst_31 = arith.constant dense<0.000000e+00> : vector<1x384xf32>
    %79 = tpu.matmul %75, %78, %cst_31 {dimension_numbers = #tpu.dot_dimension_numbers<[1], [0], [0], [1], [0, 0, 1, 1], [], []>} : vector<1x128xf32>, vector<128x384xf32>, vector<1x384xf32> -> vector<1x384xf32>
    %80 = arith.index_cast %c2_i32 : i32 to index
    %c0_32 = arith.constant 0 : index
    %81 = vector.load %arg14[%80, %c0_32] : memref<8x384xf32, #tpu.memory_space<vmem>>, vector<1x384xf32>
    %82 = vector.extract_strided_slice %81 {offsets = [0, 0], sizes = [1, 128], strides = [1, 1]} : vector<1x384xf32> to vector<1x128xf32>
    %83 = vector.extract_strided_slice %79 {offsets = [0, 0], sizes = [1, 128], strides = [1, 1]} : vector<1x384xf32> to vector<1x128xf32>
    %84 = arith.addf %82, %83 : vector<1x128xf32>
    %85 = arith.negf %84 : vector<1x128xf32>
    %86 = math.exp %85 : vector<1x128xf32>
    %cst_33 = arith.constant 1.000000e+00 : f32
    %87 = vector.broadcast %cst_33 : f32 to vector<1x128xf32>
    %88 = arith.addf %87, %86 : vector<1x128xf32>
    %89 = arith.divf %87, %88 : vector<1x128xf32>
    %90 = vector.extract_strided_slice %81 {offsets = [0, 128], sizes = [1, 128], strides = [1, 1]} : vector<1x384xf32> to vector<1x128xf32>
    %91 = vector.extract_strided_slice %79 {offsets = [0, 128], sizes = [1, 128], strides = [1, 1]} : vector<1x384xf32> to vector<1x128xf32>
    %92 = arith.addf %90, %91 : vector<1x128xf32>
    %93 = arith.negf %92 : vector<1x128xf32>
    %94 = math.exp %93 : vector<1x128xf32>
    %cst_34 = arith.constant 1.000000e+00 : f32
    %95 = vector.broadcast %cst_34 : f32 to vector<1x128xf32>
    %96 = arith.addf %95, %94 : vector<1x128xf32>
    %97 = arith.divf %95, %96 : vector<1x128xf32>
    %98 = vector.extract_strided_slice %81 {offsets = [0, 256], sizes = [1, 128], strides = [1, 1]} : vector<1x384xf32> to vector<1x128xf32>
    %99 = vector.extract_strided_slice %79 {offsets = [0, 256], sizes = [1, 128], strides = [1, 1]} : vector<1x384xf32> to vector<1x128xf32>
    %100 = arith.addf %99, %10 : vector<1x128xf32>
    %101 = arith.mulf %89, %100 : vector<1x128xf32>
    %102 = arith.addf %98, %101 : vector<1x128xf32>
    %103 = math.tanh %102 : vector<1x128xf32>
    %cst_35 = arith.constant 1.000000e+00 : f32
    %104 = vector.broadcast %cst_35 : f32 to vector<1x128xf32>
    %105 = arith.subf %104, %97 : vector<1x128xf32>
    %106 = arith.mulf %105, %103 : vector<1x128xf32>
    %107 = arith.mulf %97, %75 : vector<1x128xf32>
    %108 = arith.addf %106, %107 : vector<1x128xf32>
    %109 = arith.index_cast %c2_i32 : i32 to index
    %c0_36 = arith.constant 0 : index
    %110 = vector.load %arg12[%109, %c0_36] : memref<8x128xf32, #tpu.memory_space<vmem>>, vector<1x128xf32>
    tpu.vector_store %arg12[%109, %c0_36], %108 {strides = array<i32>} : memref<8x128xf32, #tpu.memory_space<vmem>>, vector<1x128xf32>,
    %c3_i32 = arith.constant 3 : i32
    %c0_37 = arith.constant 0 : index
    %c0_38 = arith.constant 0 : index
    %111 = vector.load %arg4[%c0_37, %c0_38] : memref<128x384xf32, #tpu.memory_space<vmem>>, vector<128x384xf32>
    %cst_39 = arith.constant dense<0.000000e+00> : vector<1x384xf32>
    %112 = tpu.matmul %108, %111, %cst_39 {dimension_numbers = #tpu.dot_dimension_numbers<[1], [0], [0], [1], [0, 0, 1, 1], [], []>} : vector<1x128xf32>, vector<128x384xf32>, vector<1x384xf32> -> vector<1x384xf32>
    %113 = arith.index_cast %c3_i32 : i32 to index
    %c0_40 = arith.constant 0 : index
    %114 = vector.load %arg14[%113, %c0_40] : memref<8x384xf32, #tpu.memory_space<vmem>>, vector<1x384xf32>
    %115 = vector.extract_strided_slice %114 {offsets = [0, 0], sizes = [1, 128], strides = [1, 1]} : vector<1x384xf32> to vector<1x128xf32>
    %116 = vector.extract_strided_slice %112 {offsets = [0, 0], sizes = [1, 128], strides = [1, 1]} : vector<1x384xf32> to vector<1x128xf32>
    %117 = arith.addf %115, %116 : vector<1x128xf32>
    %118 = arith.negf %117 : vector<1x128xf32>
    %119 = math.exp %118 : vector<1x128xf32>
    %cst_41 = arith.constant 1.000000e+00 : f32
    %120 = vector.broadcast %cst_41 : f32 to vector<1x128xf32>
    %121 = arith.addf %120, %119 : vector<1x128xf32>
    %122 = arith.divf %120, %121 : vector<1x128xf32>
    %123 = vector.extract_strided_slice %114 {offsets = [0, 128], sizes = [1, 128], strides = [1, 1]} : vector<1x384xf32> to vector<1x128xf32>
    %124 = vector.extract_strided_slice %112 {offsets = [0, 128], sizes = [1, 128], strides = [1, 1]} : vector<1x384xf32> to vector<1x128xf32>
    %125 = arith.addf %123, %124 : vector<1x128xf32>
    %126 = arith.negf %125 : vector<1x128xf32>
    %127 = math.exp %126 : vector<1x128xf32>
    %cst_42 = arith.constant 1.000000e+00 : f32
    %128 = vector.broadcast %cst_42 : f32 to vector<1x128xf32>
    %129 = arith.addf %128, %127 : vector<1x128xf32>
    %130 = arith.divf %128, %129 : vector<1x128xf32>
    %131 = vector.extract_strided_slice %114 {offsets = [0, 256], sizes = [1, 128], strides = [1, 1]} : vector<1x384xf32> to vector<1x128xf32>
    %132 = vector.extract_strided_slice %112 {offsets = [0, 256], sizes = [1, 128], strides = [1, 1]} : vector<1x384xf32> to vector<1x128xf32>
    %133 = arith.addf %132, %10 : vector<1x128xf32>
    %134 = arith.mulf %122, %133 : vector<1x128xf32>
    %135 = arith.addf %131, %134 : vector<1x128xf32>
    %136 = math.tanh %135 : vector<1x128xf32>
    %cst_43 = arith.constant 1.000000e+00 : f32
    %137 = vector.broadcast %cst_43 : f32 to vector<1x128xf32>
    %138 = arith.subf %137, %130 : vector<1x128xf32>
    %139 = arith.mulf %138, %136 : vector<1x128xf32>
    %140 = arith.mulf %130, %108 : vector<1x128xf32>
    %141 = arith.addf %139, %140 : vector<1x128xf32>
    %142 = arith.index_cast %c3_i32 : i32 to index
    %c0_44 = arith.constant 0 : index
    %143 = vector.load %arg12[%142, %c0_44] : memref<8x128xf32, #tpu.memory_space<vmem>>, vector<1x128xf32>
    tpu.vector_store %arg12[%142, %c0_44], %141 {strides = array<i32>} : memref<8x128xf32, #tpu.memory_space<vmem>>, vector<1x128xf32>,
    %c4_i32 = arith.constant 4 : i32
    %c0_45 = arith.constant 0 : index
    %c0_46 = arith.constant 0 : index
    %144 = vector.load %arg4[%c0_45, %c0_46] : memref<128x384xf32, #tpu.memory_space<vmem>>, vector<128x384xf32>
    %cst_47 = arith.constant dense<0.000000e+00> : vector<1x384xf32>
    %145 = tpu.matmul %141, %144, %cst_47 {dimension_numbers = #tpu.dot_dimension_numbers<[1], [0], [0], [1], [0, 0, 1, 1], [], []>} : vector<1x128xf32>, vector<128x384xf32>, vector<1x384xf32> -> vector<1x384xf32>
    %146 = arith.index_cast %c4_i32 : i32 to index
    %c0_48 = arith.constant 0 : index
    %147 = vector.load %arg14[%146, %c0_48] : memref<8x384xf32, #tpu.memory_space<vmem>>, vector<1x384xf32>
    %148 = vector.extract_strided_slice %147 {offsets = [0, 0], sizes = [1, 128], strides = [1, 1]} : vector<1x384xf32> to vector<1x128xf32>
    %149 = vector.extract_strided_slice %145 {offsets = [0, 0], sizes = [1, 128], strides = [1, 1]} : vector<1x384xf32> to vector<1x128xf32>
    %150 = arith.addf %148, %149 : vector<1x128xf32>
    %151 = arith.negf %150 : vector<1x128xf32>
    %152 = math.exp %151 : vector<1x128xf32>
    %cst_49 = arith.constant 1.000000e+00 : f32
    %153 = vector.broadcast %cst_49 : f32 to vector<1x128xf32>
    %154 = arith.addf %153, %152 : vector<1x128xf32>
    %155 = arith.divf %153, %154 : vector<1x128xf32>
    %156 = vector.extract_strided_slice %147 {offsets = [0, 128], sizes = [1, 128], strides = [1, 1]} : vector<1x384xf32> to vector<1x128xf32>
    %157 = vector.extract_strided_slice %145 {offsets = [0, 128], sizes = [1, 128], strides = [1, 1]} : vector<1x384xf32> to vector<1x128xf32>
    %158 = arith.addf %156, %157 : vector<1x128xf32>
    %159 = arith.negf %158 : vector<1x128xf32>
    %160 = math.exp %159 : vector<1x128xf32>
    %cst_50 = arith.constant 1.000000e+00 : f32
    %161 = vector.broadcast %cst_50 : f32 to vector<1x128xf32>
    %162 = arith.addf %161, %160 : vector<1x128xf32>
    %163 = arith.divf %161, %162 : vector<1x128xf32>
    %164 = vector.extract_strided_slice %147 {offsets = [0, 256], sizes = [1, 128], strides = [1, 1]} : vector<1x384xf32> to vector<1x128xf32>
    %165 = vector.extract_strided_slice %145 {offsets = [0, 256], sizes = [1, 128], strides = [1, 1]} : vector<1x384xf32> to vector<1x128xf32>
    %166 = arith.addf %165, %10 : vector<1x128xf32>
    %167 = arith.mulf %155, %166 : vector<1x128xf32>
    %168 = arith.addf %164, %167 : vector<1x128xf32>
    %169 = math.tanh %168 : vector<1x128xf32>
    %cst_51 = arith.constant 1.000000e+00 : f32
    %170 = vector.broadcast %cst_51 : f32 to vector<1x128xf32>
    %171 = arith.subf %170, %163 : vector<1x128xf32>
    %172 = arith.mulf %171, %169 : vector<1x128xf32>
    %173 = arith.mulf %163, %141 : vector<1x128xf32>
    %174 = arith.addf %172, %173 : vector<1x128xf32>
    %175 = arith.index_cast %c4_i32 : i32 to index
    %c0_52 = arith.constant 0 : index
    %176 = vector.load %arg12[%175, %c0_52] : memref<8x128xf32, #tpu.memory_space<vmem>>, vector<1x128xf32>
    tpu.vector_store %arg12[%175, %c0_52], %174 {strides = array<i32>} : memref<8x128xf32, #tpu.memory_space<vmem>>, vector<1x128xf32>,
    %c5_i32 = arith.constant 5 : i32
    %c0_53 = arith.constant 0 : index
    %c0_54 = arith.constant 0 : index
    %177 = vector.load %arg4[%c0_53, %c0_54] : memref<128x384xf32, #tpu.memory_space<vmem>>, vector<128x384xf32>
    %cst_55 = arith.constant dense<0.000000e+00> : vector<1x384xf32>
    %178 = tpu.matmul %174, %177, %cst_55 {dimension_numbers = #tpu.dot_dimension_numbers<[1], [0], [0], [1], [0, 0, 1, 1], [], []>} : vector<1x128xf32>, vector<128x384xf32>, vector<1x384xf32> -> vector<1x384xf32>
    %179 = arith.index_cast %c5_i32 : i32 to index
    %c0_56 = arith.constant 0 : index
    %180 = vector.load %arg14[%179, %c0_56] : memref<8x384xf32, #tpu.memory_space<vmem>>, vector<1x384xf32>
    %181 = vector.extract_strided_slice %180 {offsets = [0, 0], sizes = [1, 128], strides = [1, 1]} : vector<1x384xf32> to vector<1x128xf32>
    %182 = vector.extract_strided_slice %178 {offsets = [0, 0], sizes = [1, 128], strides = [1, 1]} : vector<1x384xf32> to vector<1x128xf32>
    %183 = arith.addf %181, %182 : vector<1x128xf32>
    %184 = arith.negf %183 : vector<1x128xf32>
    %185 = math.exp %184 : vector<1x128xf32>
    %cst_57 = arith.constant 1.000000e+00 : f32
    %186 = vector.broadcast %cst_57 : f32 to vector<1x128xf32>
    %187 = arith.addf %186, %185 : vector<1x128xf32>
    %188 = arith.divf %186, %187 : vector<1x128xf32>
    %189 = vector.extract_strided_slice %180 {offsets = [0, 128], sizes = [1, 128], strides = [1, 1]} : vector<1x384xf32> to vector<1x128xf32>
    %190 = vector.extract_strided_slice %178 {offsets = [0, 128], sizes = [1, 128], strides = [1, 1]} : vector<1x384xf32> to vector<1x128xf32>
    %191 = arith.addf %189, %190 : vector<1x128xf32>
    %192 = arith.negf %191 : vector<1x128xf32>
    %193 = math.exp %192 : vector<1x128xf32>
    %cst_58 = arith.constant 1.000000e+00 : f32
    %194 = vector.broadcast %cst_58 : f32 to vector<1x128xf32>
    %195 = arith.addf %194, %193 : vector<1x128xf32>
    %196 = arith.divf %194, %195 : vector<1x128xf32>
    %197 = vector.extract_strided_slice %180 {offsets = [0, 256], sizes = [1, 128], strides = [1, 1]} : vector<1x384xf32> to vector<1x128xf32>
    %198 = vector.extract_strided_slice %178 {offsets = [0, 256], sizes = [1, 128], strides = [1, 1]} : vector<1x384xf32> to vector<1x128xf32>
    %199 = arith.addf %198, %10 : vector<1x128xf32>
    %200 = arith.mulf %188, %199 : vector<1x128xf32>
    %201 = arith.addf %197, %200 : vector<1x128xf32>
    %202 = math.tanh %201 : vector<1x128xf32>
    %cst_59 = arith.constant 1.000000e+00 : f32
    %203 = vector.broadcast %cst_59 : f32 to vector<1x128xf32>
    %204 = arith.subf %203, %196 : vector<1x128xf32>
    %205 = arith.mulf %204, %202 : vector<1x128xf32>
    %206 = arith.mulf %196, %174 : vector<1x128xf32>
    %207 = arith.addf %205, %206 : vector<1x128xf32>
    %208 = arith.index_cast %c5_i32 : i32 to index
    %c0_60 = arith.constant 0 : index
    %209 = vector.load %arg12[%208, %c0_60] : memref<8x128xf32, #tpu.memory_space<vmem>>, vector<1x128xf32>
    tpu.vector_store %arg12[%208, %c0_60], %207 {strides = array<i32>} : memref<8x128xf32, #tpu.memory_space<vmem>>, vector<1x128xf32>,
    %c6_i32 = arith.constant 6 : i32
    %c0_61 = arith.constant 0 : index
    %c0_62 = arith.constant 0 : index
    %210 = vector.load %arg4[%c0_61, %c0_62] : memref<128x384xf32, #tpu.memory_space<vmem>>, vector<128x384xf32>
    %cst_63 = arith.constant dense<0.000000e+00> : vector<1x384xf32>
    %211 = tpu.matmul %207, %210, %cst_63 {dimension_numbers = #tpu.dot_dimension_numbers<[1], [0], [0], [1], [0, 0, 1, 1], [], []>} : vector<1x128xf32>, vector<128x384xf32>, vector<1x384xf32> -> vector<1x384xf32>
    %212 = arith.index_cast %c6_i32 : i32 to index
    %c0_64 = arith.constant 0 : index
    %213 = vector.load %arg14[%212, %c0_64] : memref<8x384xf32, #tpu.memory_space<vmem>>, vector<1x384xf32>
    %214 = vector.extract_strided_slice %213 {offsets = [0, 0], sizes = [1, 128], strides = [1, 1]} : vector<1x384xf32> to vector<1x128xf32>
    %215 = vector.extract_strided_slice %211 {offsets = [0, 0], sizes = [1, 128], strides = [1, 1]} : vector<1x384xf32> to vector<1x128xf32>
    %216 = arith.addf %214, %215 : vector<1x128xf32>
    %217 = arith.negf %216 : vector<1x128xf32>
    %218 = math.exp %217 : vector<1x128xf32>
    %cst_65 = arith.constant 1.000000e+00 : f32
    %219 = vector.broadcast %cst_65 : f32 to vector<1x128xf32>
    %220 = arith.addf %219, %218 : vector<1x128xf32>
    %221 = arith.divf %219, %220 : vector<1x128xf32>
    %222 = vector.extract_strided_slice %213 {offsets = [0, 128], sizes = [1, 128], strides = [1, 1]} : vector<1x384xf32> to vector<1x128xf32>
    %223 = vector.extract_strided_slice %211 {offsets = [0, 128], sizes = [1, 128], strides = [1, 1]} : vector<1x384xf32> to vector<1x128xf32>
    %224 = arith.addf %222, %223 : vector<1x128xf32>
    %225 = arith.negf %224 : vector<1x128xf32>
    %226 = math.exp %225 : vector<1x128xf32>
    %cst_66 = arith.constant 1.000000e+00 : f32
    %227 = vector.broadcast %cst_66 : f32 to vector<1x128xf32>
    %228 = arith.addf %227, %226 : vector<1x128xf32>
    %229 = arith.divf %227, %228 : vector<1x128xf32>
    %230 = vector.extract_strided_slice %213 {offsets = [0, 256], sizes = [1, 128], strides = [1, 1]} : vector<1x384xf32> to vector<1x128xf32>
    %231 = vector.extract_strided_slice %211 {offsets = [0, 256], sizes = [1, 128], strides = [1, 1]} : vector<1x384xf32> to vector<1x128xf32>
    %232 = arith.addf %231, %10 : vector<1x128xf32>
    %233 = arith.mulf %221, %232 : vector<1x128xf32>
    %234 = arith.addf %230, %233 : vector<1x128xf32>
    %235 = math.tanh %234 : vector<1x128xf32>
    %cst_67 = arith.constant 1.000000e+00 : f32
    %236 = vector.broadcast %cst_67 : f32 to vector<1x128xf32>
    %237 = arith.subf %236, %229 : vector<1x128xf32>
    %238 = arith.mulf %237, %235 : vector<1x128xf32>
    %239 = arith.mulf %229, %207 : vector<1x128xf32>
    %240 = arith.addf %238, %239 : vector<1x128xf32>
    %241 = arith.index_cast %c6_i32 : i32 to index
    %c0_68 = arith.constant 0 : index
    %242 = vector.load %arg12[%241, %c0_68] : memref<8x128xf32, #tpu.memory_space<vmem>>, vector<1x128xf32>
    tpu.vector_store %arg12[%241, %c0_68], %240 {strides = array<i32>} : memref<8x128xf32, #tpu.memory_space<vmem>>, vector<1x128xf32>,
    %c7_i32 = arith.constant 7 : i32
    %c0_69 = arith.constant 0 : index
    %c0_70 = arith.constant 0 : index
    %243 = vector.load %arg4[%c0_69, %c0_70] : memref<128x384xf32, #tpu.memory_space<vmem>>, vector<128x384xf32>
    %cst_71 = arith.constant dense<0.000000e+00> : vector<1x384xf32>
    %244 = tpu.matmul %240, %243, %cst_71 {dimension_numbers = #tpu.dot_dimension_numbers<[1], [0], [0], [1], [0, 0, 1, 1], [], []>} : vector<1x128xf32>, vector<128x384xf32>, vector<1x384xf32> -> vector<1x384xf32>
    %245 = arith.index_cast %c7_i32 : i32 to index
    %c0_72 = arith.constant 0 : index
    %246 = vector.load %arg14[%245, %c0_72] : memref<8x384xf32, #tpu.memory_space<vmem>>, vector<1x384xf32>
    %247 = vector.extract_strided_slice %246 {offsets = [0, 0], sizes = [1, 128], strides = [1, 1]} : vector<1x384xf32> to vector<1x128xf32>
    %248 = vector.extract_strided_slice %244 {offsets = [0, 0], sizes = [1, 128], strides = [1, 1]} : vector<1x384xf32> to vector<1x128xf32>
    %249 = arith.addf %247, %248 : vector<1x128xf32>
    %250 = arith.negf %249 : vector<1x128xf32>
    %251 = math.exp %250 : vector<1x128xf32>
    %cst_73 = arith.constant 1.000000e+00 : f32
    %252 = vector.broadcast %cst_73 : f32 to vector<1x128xf32>
    %253 = arith.addf %252, %251 : vector<1x128xf32>
    %254 = arith.divf %252, %253 : vector<1x128xf32>
    %255 = vector.extract_strided_slice %246 {offsets = [0, 128], sizes = [1, 128], strides = [1, 1]} : vector<1x384xf32> to vector<1x128xf32>
    %256 = vector.extract_strided_slice %244 {offsets = [0, 128], sizes = [1, 128], strides = [1, 1]} : vector<1x384xf32> to vector<1x128xf32>
    %257 = arith.addf %255, %256 : vector<1x128xf32>
    %258 = arith.negf %257 : vector<1x128xf32>
    %259 = math.exp %258 : vector<1x128xf32>
    %cst_74 = arith.constant 1.000000e+00 : f32
    %260 = vector.broadcast %cst_74 : f32 to vector<1x128xf32>
    %261 = arith.addf %260, %259 : vector<1x128xf32>
    %262 = arith.divf %260, %261 : vector<1x128xf32>
    %263 = vector.extract_strided_slice %246 {offsets = [0, 256], sizes = [1, 128], strides = [1, 1]} : vector<1x384xf32> to vector<1x128xf32>
    %264 = vector.extract_strided_slice %244 {offsets = [0, 256], sizes = [1, 128], strides = [1, 1]} : vector<1x384xf32> to vector<1x128xf32>
    %265 = arith.addf %264, %10 : vector<1x128xf32>
    %266 = arith.mulf %254, %265 : vector<1x128xf32>
    %267 = arith.addf %263, %266 : vector<1x128xf32>
    %268 = math.tanh %267 : vector<1x128xf32>
    %cst_75 = arith.constant 1.000000e+00 : f32
    %269 = vector.broadcast %cst_75 : f32 to vector<1x128xf32>
    %270 = arith.subf %269, %262 : vector<1x128xf32>
    %271 = arith.mulf %270, %268 : vector<1x128xf32>
    %272 = arith.mulf %262, %240 : vector<1x128xf32>
    %273 = arith.addf %271, %272 : vector<1x128xf32>
    %274 = arith.index_cast %c7_i32 : i32 to index
    %c0_76 = arith.constant 0 : index
    %275 = vector.load %arg12[%274, %c0_76] : memref<8x128xf32, #tpu.memory_space<vmem>>, vector<1x128xf32>
    tpu.vector_store %arg12[%274, %c0_76], %273 {strides = array<i32>} : memref<8x128xf32, #tpu.memory_space<vmem>>, vector<1x128xf32>,
    %c8_i32 = arith.constant 8 : i32
    %c0_77 = arith.constant 0 : index
    %c0_78 = arith.constant 0 : index
    %276 = vector.load %arg13[%c0_77, %c0_78] : memref<8x128xf32, #tpu.memory_space<vmem>>, vector<1x128xf32>
    tpu.vector_store %arg13[%c0_77, %c0_78], %273 {strides = array<i32>} : memref<8x128xf32, #tpu.memory_space<vmem>>, vector<1x128xf32>,
    %c0_79 = arith.constant 0 : index
    %c0_80 = arith.constant 0 : index
    %277 = vector.load %arg12[%c0_79, %c0_80] : memref<8x128xf32, #tpu.memory_space<vmem>>, vector<8x128xf32>
    %c0_81 = arith.constant 0 : index
    %c0_82 = arith.constant 0 : index
    %278 = vector.load %arg7[%c0_81, %c0_82] : memref<128x128xf32, #tpu.memory_space<vmem>>, vector<128x128xf32>
    %cst_83 = arith.constant dense<0.000000e+00> : vector<8x128xf32>
    %279 = tpu.matmul %277, %278, %cst_83 {dimension_numbers = #tpu.dot_dimension_numbers<[1], [0], [0], [1], [0, 0, 1, 1], [], []>} : vector<8x128xf32>, vector<128x128xf32>, vector<8x128xf32> -> vector<8x128xf32>
    %c0_84 = arith.constant 0 : index
    %c0_85 = arith.constant 0 : index
    %280 = vector.load %arg8[%c0_84, %c0_85] : memref<8x128xf32, #tpu.memory_space<vmem>>, vector<1x128xf32>
    %281 = vector.broadcast %280 : vector<1x128xf32> to vector<8x128xf32>
    %282 = arith.addf %279, %281 : vector<8x128xf32>
    %cst_86 = arith.constant 0.000000e+00 : f32
    %283 = vector.broadcast %cst_86 : f32 to vector<8x128xf32>
    %284 = arith.maximumf %282, %283 : vector<8x128xf32>
    %c0_87 = arith.constant 0 : index
    %c0_88 = arith.constant 0 : index
    %285 = vector.load %arg9[%c0_87, %c0_88] : memref<128x128xf32, #tpu.memory_space<vmem>>, vector<128x128xf32>
    %cst_89 = arith.constant dense<0.000000e+00> : vector<8x128xf32>
    %286 = tpu.matmul %284, %285, %cst_89 {dimension_numbers = #tpu.dot_dimension_numbers<[1], [0], [0], [1], [0, 0, 1, 1], [], []>} : vector<8x128xf32>, vector<128x128xf32>, vector<8x128xf32> -> vector<8x128xf32>
    %c0_90 = arith.constant 0 : index
    %c0_91 = arith.constant 0 : index
    %287 = vector.load %arg10[%c0_90, %c0_91] : memref<8x128xf32, #tpu.memory_space<vmem>>, vector<1x128xf32>
    %288 = vector.broadcast %287 : vector<1x128xf32> to vector<8x128xf32>
    %289 = arith.addf %286, %288 : vector<8x128xf32>
    %cst_92 = arith.constant dense<0xFF800000> : vector<8xf32>
    %290 = vector.multi_reduction <maximumf>, %289, %cst_92 [1] : vector<8x128xf32> to vector<8xf32>
    %291 = vector.shape_cast %290 : vector<8xf32> to vector<8x1xf32>
    %292 = vector.broadcast %291 : vector<8x1xf32> to vector<8x128xf32>
    %293 = arith.subf %289, %292 : vector<8x128xf32>
    %294 = math.exp %293 : vector<8x128xf32>
    %cst_93 = arith.constant dense<0.000000e+00> : vector<8xf32>
    %295 = vector.multi_reduction <add>, %294, %cst_93 [1] : vector<8x128xf32> to vector<8xf32>
    %296 = vector.shape_cast %295 : vector<8xf32> to vector<8x1xf32>
    %297 = vector.broadcast %296 : vector<8x1xf32> to vector<8x128xf32>
    %298 = arith.divf %294, %297 : vector<8x128xf32>
    %c0_94 = arith.constant 0 : index
    %c0_95 = arith.constant 0 : index
    %299 = vector.load %arg11[%c0_94, %c0_95] : memref<8x128xf32, #tpu.memory_space<vmem>>, vector<8x128xf32>
    tpu.vector_store %arg11[%c0_94, %c0_95], %298 {strides = array<i32>} : memref<8x128xf32, #tpu.memory_space<vmem>>, vector<8x128xf32>,
    return
  }
  func.func @transform_0(%arg0: i32) -> (i32, i32) {
    %c0_i32 = arith.constant 0 : i32
    %c0_i32_0 = arith.constant 0 : i32
    return %arg0, %c0_i32 : i32, i32
  }
  func.func @transform_1(%arg0: i32) -> (i32, i32) {
    %c0_i32 = arith.constant 0 : i32
    %c0_i32_0 = arith.constant 0 : i32
    %c0_i32_1 = arith.constant 0 : i32
    return %c0_i32, %c0_i32_0 : i32, i32
  }
  func.func @transform_2(%arg0: i32) -> (i32, i32) {
    %c0_i32 = arith.constant 0 : i32
    %c0_i32_0 = arith.constant 0 : i32
    %c0_i32_1 = arith.constant 0 : i32
    return %c0_i32, %c0_i32_0 : i32, i32
  }
  func.func @transform_3(%arg0: i32) -> (i32, i32) {
    %c0_i32 = arith.constant 0 : i32
    %c0_i32_0 = arith.constant 0 : i32
    %c0_i32_1 = arith.constant 0 : i32
    return %c0_i32, %c0_i32_0 : i32, i32
  }
  func.func @transform_4(%arg0: i32) -> (i32, i32) {
    %c0_i32 = arith.constant 0 : i32
    %c0_i32_0 = arith.constant 0 : i32
    %c0_i32_1 = arith.constant 0 : i32
    return %c0_i32, %c0_i32_0 : i32, i32
  }
  func.func @transform_5(%arg0: i32) -> (i32, i32) {
    %c0_i32 = arith.constant 0 : i32
    %c0_i32_0 = arith.constant 0 : i32
    %c0_i32_1 = arith.constant 0 : i32
    return %c0_i32, %c0_i32_0 : i32, i32
  }
  func.func @transform_6(%arg0: i32) -> (i32, i32) {
    %c0_i32 = arith.constant 0 : i32
    %c0_i32_0 = arith.constant 0 : i32
    %c0_i32_1 = arith.constant 0 : i32
    return %c0_i32, %c0_i32_0 : i32, i32
  }
  func.func @transform_7(%arg0: i32) -> (i32, i32) {
    %c0_i32 = arith.constant 0 : i32
    %c0_i32_0 = arith.constant 0 : i32
    %c0_i32_1 = arith.constant 0 : i32
    return %c0_i32, %c0_i32_0 : i32, i32
  }
  func.func @transform_8(%arg0: i32) -> (i32, i32) {
    %c0_i32 = arith.constant 0 : i32
    %c0_i32_0 = arith.constant 0 : i32
    %c0_i32_1 = arith.constant 0 : i32
    return %c0_i32, %c0_i32_0 : i32, i32
  }
  func.func @transform_9(%arg0: i32) -> (i32, i32) {
    %c0_i32 = arith.constant 0 : i32
    %c0_i32_0 = arith.constant 0 : i32
    %c0_i32_1 = arith.constant 0 : i32
    return %c0_i32, %c0_i32_0 : i32, i32
  }
  func.func @transform_10(%arg0: i32) -> (i32, i32) {
    %c0_i32 = arith.constant 0 : i32
    %c0_i32_0 = arith.constant 0 : i32
    return %arg0, %c0_i32 : i32, i32
  }
  func.func @transform_11(%arg0: i32) -> (i32, i32) {
    %c0_i32 = arith.constant 0 : i32
    %c0_i32_0 = arith.constant 0 : i32
    return %arg0, %c0_i32 : i32, i32
  }
}

</mosaic_0001>

<llo_original>
// kernel: pg_rnn_rollout.1
$region0: #{pg_rnn_rollout.1}
  #allocation0 [shape = 'u32[]', space=smem, size = 0x4, offset = 0x4, fixed_abs, tag = 'smem constant byte address 0x4 - core index']
  #allocation1 [shape = 'u32[144,128]{1,0:T(1,128)}', space=vmem, size = 0x12000, scoped, tag = 'internal scratch']
  #allocation2 [shape = 'f32[8,128]{1,0:T(8,128)}', space=vmem, size = 0x1000, scoped, tag = 'scratch operand']
  #allocation3 [shape = 'f32[8,384]{1,0:T(8,128)}', space=vmem, size = 0x3000, scoped, tag = 'scratch operand']
  %s0 = inlined_call_operand.vmem [shape: f32[8,128], index: 0, kind: input, shape index: {}]
  %s1 = inlined_call_operand.vmem [shape: f32[8,128], index: 1, kind: input, shape index: {}]
  %s2 = inlined_call_operand.hbm [shape: f32[128,384], index: 2, kind: input, shape index: {}]
  %s3 = inlined_call_operand.hbm [shape: f32[128,384], index: 3, kind: input, shape index: {}]
  %s4 = inlined_call_operand.vmem [shape: f32[8,384], index: 4, kind: input, shape index: {}]
  %s5 = inlined_call_operand.vmem [shape: f32[8,128], index: 5, kind: input, shape index: {}]
  %s6 = inlined_call_operand.hbm [shape: f32[128,128], index: 6, kind: input, shape index: {}]
  %s7 = inlined_call_operand.vmem [shape: f32[8,128], index: 7, kind: input, shape index: {}]
  %s8 = inlined_call_operand.hbm [shape: f32[128,128], index: 8, kind: input, shape index: {}]
  %s9 = inlined_call_operand.vmem [shape: f32[8,128], index: 9, kind: input, shape index: {}]
  %s10 = inlined_call_operand.vmem [shape: f32[8,128], index: 10, kind: output, shape index: {0}]
  %s11 = inlined_call_operand.hbm [shape: f32[8,128], index: 11, kind: output, shape index: {1}]
  %12 = xla_tuple %s10, %s11
  %s13 = sld [smem:[#allocation0]]
  $region78: #{pg_rnn_rollout.1} parent=0
    _
  %s15 = ssub.s32 1, %s13
  %s16 = scalar_select 0, %s15, %s13
  $region1: #{pg_rnn_rollout.1} parent=0
    #allocation4 [shape = 'u8[196608]{0}', space=vmem, size = 0x30000, scoped, tag = 'input window, operand 2, single buffered']
    #allocation5 [shape = 's32[1]{0}', space=sflag, size = 0x4, scoped, tag = 'scoped memory for pg_rnn_rollout.1']
    #allocation6 [shape = 's32[1]{0}', space=sflag, size = 0x4, scoped, tag = 'scoped memory for pg_rnn_rollout.1']
    #allocation7 [shape = 'u8[196608]{0}', space=vmem, size = 0x30000, scoped, tag = 'input window, operand 3, single buffered']
    #allocation8 [shape = 's32[1]{0}', space=sflag, size = 0x4, scoped, tag = 'scoped memory for pg_rnn_rollout.1']
    #allocation9 [shape = 'u8[65536]{0}', space=vmem, size = 0x10000, scoped, tag = 'input window, operand 6, single buffered']
    #allocation10 [shape = 'u8[65536]{0}', space=vmem, size = 0x10000, scoped, tag = 'input window, operand 8, single buffered']
    #allocation11 [shape = 's32[1]{0}', space=sflag, size = 0x4, scoped, tag = 'scoped memory for pg_rnn_rollout.1']
    #allocation12 [shape = 'u8[4096]{0}', space=vmem, size = 0x1000, scoped, tag = 'output window, operand 1, single buffered']
    %17 = vsyncpa [#allocation5], 0
    %18 = vsyncpa [#allocation8], 0
    %19 = vsyncpa [#allocation11], 0
    %20 = vsyncpa [#allocation6], 0
    // Predicated region
    $region2: #{pg_rnn_rollout.1} parent=1 // pred_check
      _
    $region3: #{pg_rnn_rollout.1} parent=1 // pred_check_branch
      %22 = sbr.rel (0) target = $region5
    $region4: #{pg_rnn_rollout.1} parent=1 // pred_region
      _
    $region5: #{pg_rnn_rollout.1} parent=1 // pred_fallthru
      _
    // Predicated region
    $region6: #{pg_rnn_rollout.1} parent=1 // pred_check
      _
    $region7: #{pg_rnn_rollout.1} parent=1 // pred_check_branch
      %24 = sbr.rel (0) target = $region9
    $region8: #{pg_rnn_rollout.1} parent=1 // pred_region
      _
    $region9: #{pg_rnn_rollout.1} parent=1 // pred_fallthru
      _
    // Predicated region
    $region10: #{pg_rnn_rollout.1} parent=1 // pred_check
      _
    $region11: #{pg_rnn_rollout.1} parent=1 // pred_check_branch
      %26 = sbr.rel (0) target = $region13
    $region12: #{pg_rnn_rollout.1} parent=1 // pred_region
      %s28 = ssub.s32 6144, 6144
      %29 = vsyncadd [#allocation5], %s28
      %s30 = sshll.u32 [#allocation4], 4
      %s31 = int_to_ptr.vmem [resolvable:$true] %s30
      %36 = dma.hbm_to_vmem [thread:$0]  %s2, 6144, %s31, [#allocation5], 384, 384, 24
    $region13: #{pg_rnn_rollout.1} parent=1 // pred_fallthru
      _
    // Predicated region
    $region14: #{pg_rnn_rollout.1} parent=1 // pred_check
      _
    $region15: #{pg_rnn_rollout.1} parent=1 // pred_check_branch
      %38 = sbr.rel (0) target = $region17
    $region16: #{pg_rnn_rollout.1} parent=1 // pred_region
      %s40 = ssub.s32 6144, 6144
      %41 = vsyncadd [#allocation8], %s40
      %s42 = sshll.u32 [#allocation7], 4
      %s43 = int_to_ptr.vmem [resolvable:$true] %s42
      %48 = dma.hbm_to_vmem [thread:$0]  %s3, 6144, %s43, [#allocation8], 384, 384, 24
    $region17: #{pg_rnn_rollout.1} parent=1 // pred_fallthru
      _
    // Predicated region
    $region18: #{pg_rnn_rollout.1} parent=1 // pred_check
      _
    $region19: #{pg_rnn_rollout.1} parent=1 // pred_check_branch
      %50 = sbr.rel (0) target = $region21
    $region20: #{pg_rnn_rollout.1} parent=1 // pred_region
      _
    $region21: #{pg_rnn_rollout.1} parent=1 // pred_fallthru
      _
    // Predicated region
    $region22: #{pg_rnn_rollout.1} parent=1 // pred_check
      _
    $region23: #{pg_rnn_rollout.1} parent=1 // pred_check_branch
      %52 = sbr.rel (0) target = $region25
    $region24: #{pg_rnn_rollout.1} parent=1 // pred_region
      _
    $region25: #{pg_rnn_rollout.1} parent=1 // pred_fallthru
      _
    // Predicated region
    $region26: #{pg_rnn_rollout.1} parent=1 // pred_check
      _
    $region27: #{pg_rnn_rollout.1} parent=1 // pred_check_branch
      %54 = sbr.rel (0) target = $region29
    $region28: #{pg_rnn_rollout.1} parent=1 // pred_region
      %s56 = ssub.s32 2048, 2048
      %57 = vsyncadd [#allocation8], %s56
      %s58 = sshll.u32 [#allocation9], 4
      %s59 = int_to_ptr.vmem [resolvable:$true] %s58
      %64 = dma.hbm_to_vmem [thread:$0]  %s6, 2048, %s59, [#allocation8], 128, 128, 8
    $region29: #{pg_rnn_rollout.1} parent=1 // pred_fallthru
      _
    // Predicated region
    $region30: #{pg_rnn_rollout.1} parent=1 // pred_check
      _
    $region31: #{pg_rnn_rollout.1} parent=1 // pred_check_branch
      %66 = sbr.rel (0) target = $region33
    $region32: #{pg_rnn_rollout.1} parent=1 // pred_region
      _
    $region33: #{pg_rnn_rollout.1} parent=1 // pred_fallthru
      _
    // Predicated region
    $region34: #{pg_rnn_rollout.1} parent=1 // pred_check
      _
    $region35: #{pg_rnn_rollout.1} parent=1 // pred_check_branch
      %68 = sbr.rel (0) target = $region37
    $region36: #{pg_rnn_rollout.1} parent=1 // pred_region
      %s70 = ssub.s32 2048, 2048
      %71 = vsyncadd [#allocation11], %s70
      %s72 = sshll.u32 [#allocation10], 4
      %s73 = int_to_ptr.vmem [resolvable:$true] %s72
      %78 = dma.hbm_to_vmem [thread:$0]  %s8, 2048, %s73, [#allocation11], 128, 128, 8
    $region37: #{pg_rnn_rollout.1} parent=1 // pred_fallthru
      _
    // Predicated region
    $region38: #{pg_rnn_rollout.1} parent=1 // pred_check
      _
    $region39: #{pg_rnn_rollout.1} parent=1 // pred_check_branch
      %80 = sbr.rel (0) target = $region41
    $region40: #{pg_rnn_rollout.1} parent=1 // pred_region
      _
    $region41: #{pg_rnn_rollout.1} parent=1 // pred_fallthru
      _
    // Predicated region
    $region42: #{pg_rnn_rollout.1} parent=1 // pred_check
      _
    $region43: #{pg_rnn_rollout.1} parent=1 // pred_check_branch
      %82 = sbr.rel (0) target = $region45
    $region44: #{pg_rnn_rollout.1} parent=1 // pred_region
      %83 = dma.done [#allocation5], 6144
    $region45: #{pg_rnn_rollout.1} parent=1 // pred_fallthru
      _
    // Predicated region
    $region46: #{pg_rnn_rollout.1} parent=1 // pred_check
      _
    $region47: #{pg_rnn_rollout.1} parent=1 // pred_check_branch
      %85 = sbr.rel (0) target = $region49
    $region48: #{pg_rnn_rollout.1} parent=1 // pred_region
      %86 = dma.done [#allocation8], 6144
    $region49: #{pg_rnn_rollout.1} parent=1 // pred_fallthru
      _
    // Predicated region
    $region50: #{pg_rnn_rollout.1} parent=1 // pred_check
      _
    $region51: #{pg_rnn_rollout.1} parent=1 // pred_check_branch
      %88 = sbr.rel (0) target = $region53
    $region52: #{pg_rnn_rollout.1} parent=1 // pred_region
      %89 = dma.done [#allocation8], 2048
    $region53: #{pg_rnn_rollout.1} parent=1 // pred_fallthru
      _
    // Predicated region
    $region54: #{pg_rnn_rollout.1} parent=1 // pred_check
      _
    $region55: #{pg_rnn_rollout.1} parent=1 // pred_check_branch
      %91 = sbr.rel (0) target = $region57
    $region56: #{pg_rnn_rollout.1} parent=1 // pred_region
      %92 = dma.done [#allocation11], 2048
    $region57: #{pg_rnn_rollout.1} parent=1 // pred_fallthru
      _
    %p93 = scmp.eq.s32.totalorder 0, 0
    // Predicated region
    $region58: #{pg_rnn_rollout.1} parent=1 // pred_check
      %p94 = pneg %p93
    $region59: #{pg_rnn_rollout.1} parent=1 // pred_check_branch
      %96 = sbr.rel (%p94) target = $region61
    $region60: #{pg_rnn_rollout.1} parent=1 // pred_region
      %v97 = vld [vmem:[%s1] sm:$0xff]
      %98 = vst [vmem:[#allocation2] sm:$0xff] %v97
    $region61: #{pg_rnn_rollout.1} parent=1 // pred_fallthru
      _
    %v99 = vld [vmem:[%s0] sm:$0xff]
    %v100 = vld [vmem:[#allocation4] sm:$0xff]
    %v101 = vld [vmem:[#allocation4 + $0x8] sm:$0xff]
    %v102 = vld [vmem:[#allocation4 + $0x10] sm:$0xff]
    %v103 = vld [vmem:[#allocation4 + $0x18] sm:$0xff]
    %v104 = vld [vmem:[#allocation4 + $0x20] sm:$0xff]
    %v105 = vld [vmem:[#allocation4 + $0x28] sm:$0xff]
    %v106 = vld [vmem:[#allocation4 + $0x30] sm:$0xff]
    %v107 = vld [vmem:[#allocation4 + $0x38] sm:$0xff]
    %v108 = vld [vmem:[#allocation4 + $0x40] sm:$0xff]
    %v109 = vld [vmem:[#allocation4 + $0x48] sm:$0xff]
    %v110 = vld [vmem:[#allocation4 + $0x50] sm:$0xff]
    %v111 = vld [vmem:[#allocation4 + $0x58] sm:$0xff]
    %v112 = vld [vmem:[#allocation4 + $0x60] sm:$0xff]
    %v113 = vld [vmem:[#allocation4 + $0x68] sm:$0xff]
    %v114 = vld [vmem:[#allocation4 + $0x70] sm:$0xff]
    %v115 = vld [vmem:[#allocation4 + $0x78] sm:$0xff]
    %v116 = vld [vmem:[#allocation4 + $0x80] sm:$0xff]
    %v117 = vld [vmem:[#allocation4 + $0x88] sm:$0xff]
    %v118 = vld [vmem:[#allocation4 + $0x90] sm:$0xff]
    %v119 = vld [vmem:[#allocation4 + $0x98] sm:$0xff]
    %v120 = vld [vmem:[#allocation4 + $0xa0] sm:$0xff]
    %v121 = vld [vmem:[#allocation4 + $0xa8] sm:$0xff]
    %v122 = vld [vmem:[#allocation4 + $0xb0] sm:$0xff]
    %v123 = vld [vmem:[#allocation4 + $0xb8] sm:$0xff]
    %v124 = vld [vmem:[#allocation4 + $0xc0] sm:$0xff]
    %v125 = vld [vmem:[#allocation4 + $0xc8] sm:$0xff]
    %v126 = vld [vmem:[#allocation4 + $0xd0] sm:$0xff]
    %v127 = vld [vmem:[#allocation4 + $0xd8] sm:$0xff]
    %v128 = vld [vmem:[#allocation4 + $0xe0] sm:$0xff]
    %v129 = vld [vmem:[#allocation4 + $0xe8] sm:$0xff]
    %v130 = vld [vmem:[#allocation4 + $0xf0] sm:$0xff]
    %v131 = vld [vmem:[#allocation4 + $0xf8] sm:$0xff]
    %v132 = vld [vmem:[#allocation4 + $0x100] sm:$0xff]
    %v133 = vld [vmem:[#allocation4 + $0x108] sm:$0xff]
    %v134 = vld [vmem:[#allocation4 + $0x110] sm:$0xff]
    %v135 = vld [vmem:[#allocation4 + $0x118] sm:$0xff]
    %v136 = vld [vmem:[#allocation4 + $0x120] sm:$0xff]
    %v137 = vld [vmem:[#allocation4 + $0x128] sm:$0xff]
    %v138 = vld [vmem:[#allocation4 + $0x130] sm:$0xff]
    %v139 = vld [vmem:[#allocation4 + $0x138] sm:$0xff]
    %v140 = vld [vmem:[#allocation4 + $0x140] sm:$0xff]
    %v141 = vld [vmem:[#allocation4 + $0x148] sm:$0xff]
    %v142 = vld [vmem:[#allocation4 + $0x150] sm:$0xff]
    %v143 = vld [vmem:[#allocation4 + $0x158] sm:$0xff]
    %v144 = vld [vmem:[#allocation4 + $0x160] sm:$0xff]
    %v145 = vld [vmem:[#allocation4 + $0x168] sm:$0xff]
    %v146 = vld [vmem:[#allocation4 + $0x170] sm:$0xff]
    %v147 = vld [vmem:[#allocation4 + $0x178] sm:$0xff]
    %v148 = vld [vmem:[%s4] ss:$8 sm:$0x7]
    %v150 = vlaneseq
    %v151 = vshrl.u32 %v150, 7
    %v152 = vsub.s32 0, %v151
    %v153 = vrot.slane %v148, %v152
    %v154 = vlaneseq
    %v155 = vshrl.u32 %v154, 7
    %v156 = vsub.s32 1, %v155
    %v157 = vrot.slane %v148, %v156
    %v158 = vlaneseq
    %v159 = vshrl.u32 %v158, 7
    %v160 = vsub.s32 2, %v159
    %v161 = vrot.slane %v148, %v160
    %165 = vmatprep.subr.mxu0 %v101
    %166 = vmatpush1.msra.mxu0 %v100
    %167 = vmatprep.subr.mxu0 %v104
    %168 = vmatpush1.msra.mxu0 %v103
    %169 = vmatprep.subr.mxu0 %v107
    %170 = vmatpush1.msra.mxu0 %v106
    %171 = vmatprep.subr.mxu0 %v110
    %172 = vmatpush1.msra.mxu0 %v109
    %173 = vmatprep.subr.mxu0 %v113
    %174 = vmatpush1.msra.mxu0 %v112
    %175 = vmatprep.subr.mxu0 %v116
    %176 = vmatpush1.msra.mxu0 %v115
    %177 = vmatprep.subr.mxu0 %v119
    %178 = vmatpush1.msra.mxu0 %v118
    %179 = vmatprep.subr.mxu0 %v122
    %180 = vmatpush1.msra.mxu0 %v121
    %181 = vmatprep.subr.mxu0 %v125
    %182 = vmatpush1.msra.mxu0 %v124
    %183 = vmatprep.subr.mxu0 %v128
    %184 = vmatpush1.msra.mxu0 %v127
    %185 = vmatprep.subr.mxu0 %v131
    %186 = vmatpush1.msra.mxu0 %v130
    %187 = vmatprep.subr.mxu0 %v134
    %188 = vmatpush1.msra.mxu0 %v133
    %189 = vmatprep.subr.mxu0 %v137
    %190 = vmatpush1.msra.mxu0 %v136
    %191 = vmatprep.subr.mxu0 %v140
    %192 = vmatpush1.msra.mxu0 %v139
    %193 = vmatprep.subr.mxu0 %v143
    %194 = vmatpush1.msra.mxu0 %v142
    %195 = vmatprep.subr.mxu0 %v146
    %196 = vmatpush1.msra.mxu0 %v145
    %197 = vmatprep.subr.mxu0 0.0
    %198 = vmatpush1.msra.mxu0 0.0
    %199 = vmatprep.subr.mxu0 0.0
    %200 = vmatpush1.msra.mxu0 0.0
    %201 = vmatprep.subr.mxu0 0.0
    %202 = vmatpush1.msra.mxu0 0.0
    %203 = vmatprep.subr.mxu0 0.0
    %204 = vmatpush1.msra.mxu0 0.0
    %205 = vmatprep.subr.mxu0 0.0
    %206 = vmatpush1.msra.mxu0 0.0
    %207 = vmatprep.subr.mxu0 0.0
    %208 = vmatpush1.msra.mxu0 0.0
    %209 = vmatprep.subr.mxu0 0.0
    %210 = vmatpush1.msra.mxu0 0.0
    %211 = vmatprep.subr.mxu0 0.0
    %212 = vmatpush1.msra.mxu0 0.0
    %213 = vmatprep.subr.mxu0 0.0
    %214 = vmatpush1.msra.mxu0 0.0
    %215 = vmatprep.subr.mxu0 0.0
    %216 = vmatpush1.msra.mxu0 0.0
    %217 = vmatprep.subr.mxu0 0.0
    %218 = vmatpush1.msra.mxu0 0.0
    %219 = vmatprep.subr.mxu0 0.0
    %220 = vmatpush1.msra.mxu0 0.0
    %221 = vmatprep.subr.mxu0 0.0
    %222 = vmatpush1.msra.mxu0 0.0
    %223 = vmatprep.subr.mxu0 0.0
    %224 = vmatpush1.msra.mxu0 0.0
    %225 = vmatprep.subr.mxu0 0.0
    %226 = vmatpush1.msra.mxu0 0.0
    %227 = vmatprep.subr.mxu0 0.0
    %228 = vmatpush1.msra.mxu0 0.0
    %229 = vmatprep.mubr.f32.mxu0 0.0
    %230 = vmatmul.mubr.f32.gmra.mrb[0].mxu0 %v99
    %v231 = vpop.f32.mrb[0].mxu0
    %v232 = vadd.f32 %v153, %v231
    %v233 = vpop.f32.mrb[0].mxu0
    %v234 = vadd.f32 %v157, %v233
    %235 = vdwg.mxu0
    %236 = vmatprep.subr.mxu0 0.0
    %237 = vmatpush1.msra.mxu0 %v102
    %238 = vmatprep.subr.mxu0 0.0
    %239 = vmatpush1.msra.mxu0 %v105
    %240 = vmatprep.subr.mxu0 0.0
    %241 = vmatpush1.msra.mxu0 %v108
    %242 = vmatprep.subr.mxu0 0.0
    %243 = vmatpush1.msra.mxu0 %v111
    %244 = vmatprep.subr.mxu0 0.0
    %245 = vmatpush1.msra.mxu0 %v114
    %246 = vmatprep.subr.mxu0 0.0
    %247 = vmatpush1.msra.mxu0 %v117
    %248 = vmatprep.subr.mxu0 0.0
    %249 = vmatpush1.msra.mxu0 %v120
    %250 = vmatprep.subr.mxu0 0.0
    %251 = vmatpush1.msra.mxu0 %v123
    %252 = vmatprep.subr.mxu0 0.0
    %253 = vmatpush1.msra.mxu0 %v126
    %254 = vmatprep.subr.mxu0 0.0
    %255 = vmatpush1.msra.mxu0 %v129
    %256 = vmatprep.subr.mxu0 0.0
    %257 = vmatpush1.msra.mxu0 %v132
    %258 = vmatprep.subr.mxu0 0.0
    %259 = vmatpush1.msra.mxu0 %v135
    %260 = vmatprep.subr.mxu0 0.0
    %261 = vmatpush1.msra.mxu0 %v138
    %262 = vmatprep.subr.mxu0 0.0
    %263 = vmatpush1.msra.mxu0 %v141
    %264 = vmatprep.subr.mxu0 0.0
    %265 = vmatpush1.msra.mxu0 %v144
    %266 = vmatprep.subr.mxu0 0.0
    %267 = vmatpush1.msra.mxu0 %v147
    %268 = vmatprep.subr.mxu0 0.0
    %269 = vmatpush1.msra.mxu0 0.0
    %270 = vmatprep.subr.mxu0 0.0
    %271 = vmatpush1.msra.mxu0 0.0
    %272 = vmatprep.subr.mxu0 0.0
    %273 = vmatpush1.msra.mxu0 0.0
    %274 = vmatprep.subr.mxu0 0.0
    %275 = vmatpush1.msra.mxu0 0.0
    %276 = vmatprep.subr.mxu0 0.0
    %277 = vmatpush1.msra.mxu0 0.0
    %278 = vmatprep.subr.mxu0 0.0
    %279 = vmatpush1.msra.mxu0 0.0
    %280 = vmatprep.subr.mxu0 0.0
    %281 = vmatpush1.msra.mxu0 0.0
    %282 = vmatprep.subr.mxu0 0.0
    %283 = vmatpush1.msra.mxu0 0.0
    %284 = vmatprep.subr.mxu0 0.0
    %285 = vmatpush1.msra.mxu0 0.0
    %286 = vmatprep.subr.mxu0 0.0
    %287 = vmatpush1.msra.mxu0 0.0
    %288 = vmatprep.subr.mxu0 0.0
    %289 = vmatpush1.msra.mxu0 0.0
    %290 = vmatprep.subr.mxu0 0.0
    %291 = vmatpush1.msra.mxu0 0.0
    %292 = vmatprep.subr.mxu0 0.0
    %293 = vmatpush1.msra.mxu0 0.0
    %294 = vmatprep.subr.mxu0 0.0
    %295 = vmatpush1.msra.mxu0 0.0
    %296 = vmatprep.subr.mxu0 0.0
    %297 = vmatpush1.msra.mxu0 0.0
    %298 = vmatprep.subr.mxu0 0.0
    %299 = vmatpush1.msra.mxu0 0.0
    %300 = vmatprep.mubr.f32.mxu0 0.0
    %301 = vmatmul.mubr.f32.gmra.mrb[0].mxu0 %v99
    %v302 = vpop.f32.mrb[0].mxu0
    %v303 = vadd.f32 %v161, %v302
    %v304 = vpop.f32.mrb[0].mxu0
    %305 = vdwg.mxu0
    %306 = vst [vmem:[#allocation3] sm:$0xff] %v232
    %307 = vst [vmem:[#allocation3 + $0x8] sm:$0xff] %v234
    %308 = vst [vmem:[#allocation3 + $0x10] sm:$0xff] %v303
    %v309 = vld [vmem:[%s5] sm:$0x1]
    %v310 = vld [vmem:[#allocation2] sm:$0x1]
    %v311 = vld [vmem:[#allocation7] sm:$0xff]
    %v312 = vld [vmem:[#allocation7 + $0x8] sm:$0xff]
    %v313 = vld [vmem:[#allocation7 + $0x10] sm:$0xff]
    %v314 = vld [vmem:[#allocation7 + $0x18] sm:$0xff]
    %v315 = vld [vmem:[#allocation7 + $0x20] sm:$0xff]
    %v316 = vld [vmem:[#allocation7 + $0x28] sm:$0xff]
    %v317 = vld [vmem:[#allocation7 + $0x30] sm:$0xff]
    %v318 = vld [vmem:[#allocation7 + $0x38] sm:$0xff]
    %v319 = vld [vmem:[#allocation7 + $0x40] sm:$0xff]
    %v320 = vld [vmem:[#allocation7 + $0x48] sm:$0xff]
    %v321 = vld [vmem:[#allocation7 + $0x50] sm:$0xff]
    %v322 = vld [vmem:[#allocation7 + $0x58] sm:$0xff]
    %v323 = vld [vmem:[#allocation7 + $0x60] sm:$0xff]
    %v324 = vld [vmem:[#allocation7 + $0x68] sm:$0xff]
    %v325 = vld [vmem:[#allocation7 + $0x70] sm:$0xff]
    %v326 = vld [vmem:[#allocation7 + $0x78] sm:$0xff]
    %v327 = vld [vmem:[#allocation7 + $0x80] sm:$0xff]
    %v328 = vld [vmem:[#allocation7 + $0x88] sm:$0xff]
    %v329 = vld [vmem:[#allocation7 + $0x90] sm:$0xff]
    %v330 = vld [vmem:[#allocation7 + $0x98] sm:$0xff]
    %v331 = vld [vmem:[#allocation7 + $0xa0] sm:$0xff]
    %v332 = vld [vmem:[#allocation7 + $0xa8] sm:$0xff]
    %v333 = vld [vmem:[#allocation7 + $0xb0] sm:$0xff]
    %v334 = vld [vmem:[#allocation7 + $0xb8] sm:$0xff]
    %v335 = vld [vmem:[#allocation7 + $0xc0] sm:$0xff]
    %v336 = vld [vmem:[#allocation7 + $0xc8] sm:$0xff]
    %v337 = vld [vmem:[#allocation7 + $0xd0] sm:$0xff]
    %v338 = vld [vmem:[#allocation7 + $0xd8] sm:$0xff]
    %v339 = vld [vmem:[#allocation7 + $0xe0] sm:$0xff]
    %v340 = vld [vmem:[#allocation7 + $0xe8] sm:$0xff]
    %v341 = vld [vmem:[#allocation7 + $0xf0] sm:$0xff]
    %v342 = vld [vmem:[#allocation7 + $0xf8] sm:$0xff]
    %v343 = vld [vmem:[#allocation7 + $0x100] sm:$0xff]
    %v344 = vld [vmem:[#allocation7 + $0x108] sm:$0xff]
    %v345 = vld [vmem:[#allocation7 + $0x110] sm:$0xff]
    %v346 = vld [vmem:[#allocation7 + $0x118] sm:$0xff]
    %v347 = vld [vmem:[#allocation7 + $0x120] sm:$0xff]
    %v348 = vld [vmem:[#allocation7 + $0x128] sm:$0xff]
    %v349 = vld [vmem:[#allocation7 + $0x130] sm:$0xff]
    %v350 = vld [vmem:[#allocation7 + $0x138] sm:$0xff]
    %v351 = vld [vmem:[#allocation7 + $0x140] sm:$0xff]
    %v352 = vld [vmem:[#allocation7 + $0x148] sm:$0xff]
    %v353 = vld [vmem:[#allocation7 + $0x150] sm:$0xff]
    %v354 = vld [vmem:[#allocation7 + $0x158] sm:$0xff]
    %v355 = vld [vmem:[#allocation7 + $0x160] sm:$0xff]
    %v356 = vld [vmem:[#allocation7 + $0x168] sm:$0xff]
    %v357 = vld [vmem:[#allocation7 + $0x170] sm:$0xff]
    %v358 = vld [vmem:[#allocation7 + $0x178] sm:$0xff]
    %359 = vmatprep.subr.mxu0 %v312
    %360 = vmatpush1.msra.mxu0 %v311
    %361 = vmatprep.subr.mxu0 %v315
    %362 = vmatpush1.msra.mxu0 %v314
    %363 = vmatprep.subr.mxu0 %v318
    %364 = vmatpush1.msra.mxu0 %v317
    %365 = vmatprep.subr.mxu0 %v321
    %366 = vmatpush1.msra.mxu0 %v320
    %367 = vmatprep.subr.mxu0 %v324
    %368 = vmatpush1.msra.mxu0 %v323
    %369 = vmatprep.subr.mxu0 %v327
    %370 = vmatpush1.msra.mxu0 %v326
    %371 = vmatprep.subr.mxu0 %v330
    %372 = vmatpush1.msra.mxu0 %v329
    %373 = vmatprep.subr.mxu0 %v333
    %374 = vmatpush1.msra.mxu0 %v332
    %375 = vmatprep.subr.mxu0 %v336
    %376 = vmatpush1.msra.mxu0 %v335
    %377 = vmatprep.subr.mxu0 %v339
    %378 = vmatpush1.msra.mxu0 %v338
    %379 = vmatprep.subr.mxu0 %v342
    %380 = vmatpush1.msra.mxu0 %v341
    %381 = vmatprep.subr.mxu0 %v345
    %382 = vmatpush1.msra.mxu0 %v344
    %383 = vmatprep.subr.mxu0 %v348
    %384 = vmatpush1.msra.mxu0 %v347
    %385 = vmatprep.subr.mxu0 %v351
    %386 = vmatpush1.msra.mxu0 %v350
    %387 = vmatprep.subr.mxu0 %v354
    %388 = vmatpush1.msra.mxu0 %v353
    %389 = vmatprep.subr.mxu0 %v357
    %390 = vmatpush1.msra.mxu0 %v356
    %391 = vmatprep.subr.mxu0 0.0
    %392 = vmatpush1.msra.mxu0 0.0
    %393 = vmatprep.subr.mxu0 0.0
    %394 = vmatpush1.msra.mxu0 0.0
    %395 = vmatprep.subr.mxu0 0.0
    %396 = vmatpush1.msra.mxu0 0.0
    %397 = vmatprep.subr.mxu0 0.0
    %398 = vmatpush1.msra.mxu0 0.0
    %399 = vmatprep.subr.mxu0 0.0
    %400 = vmatpush1.msra.mxu0 0.0
    %401 = vmatprep.subr.mxu0 0.0
    %402 = vmatpush1.msra.mxu0 0.0
    %403 = vmatprep.subr.mxu0 0.0
    %404 = vmatpush1.msra.mxu0 0.0
    %405 = vmatprep.subr.mxu0 0.0
    %406 = vmatpush1.msra.mxu0 0.0
    %407 = vmatprep.subr.mxu0 0.0
    %408 = vmatpush1.msra.mxu0 0.0
    %409 = vmatprep.subr.mxu0 0.0
    %410 = vmatpush1.msra.mxu0 0.0
    %411 = vmatprep.subr.mxu0 0.0
    %412 = vmatpush1.msra.mxu0 0.0
    %413 = vmatprep.subr.mxu0 0.0
    %414 = vmatpush1.msra.mxu0 0.0
    %415 = vmatprep.subr.mxu0 0.0
    %416 = vmatpush1.msra.mxu0 0.0
    %417 = vmatprep.subr.mxu0 0.0
    %418 = vmatpush1.msra.mxu0 0.0
    %419 = vmatprep.subr.mxu0 0.0
    %420 = vmatpush1.msra.mxu0 0.0
    %421 = vmatprep.subr.mxu0 0.0
    %422 = vmatpush1.msra.mxu0 0.0
    %423 = vmatprep.mubr.f32.mxu0 0.0
    %424 = vmatmul.mubr.f32.gmra.mrb[0].mxu0 %v310
    %v425 = vpop.f32.mrb[0].mxu0
    %v426 = vadd.f32 0.0, %v425
    %v427 = vpop.f32.mrb[0].mxu0
    %v428 = vadd.f32 0.0, %v427
    %429 = vdwg.mxu0
    %430 = vmatprep.subr.mxu0 0.0
    %431 = vmatpush1.msra.mxu0 %v313
    %432 = vmatprep.subr.mxu0 0.0
    %433 = vmatpush1.msra.mxu0 %v316
    %434 = vmatprep.subr.mxu0 0.0
    %435 = vmatpush1.msra.mxu0 %v319
    %436 = vmatprep.subr.mxu0 0.0
    %437 = vmatpush1.msra.mxu0 %v322
    %438 = vmatprep.subr.mxu0 0.0
    %439 = vmatpush1.msra.mxu0 %v325
    %440 = vmatprep.subr.mxu0 0.0
    %441 = vmatpush1.msra.mxu0 %v328
    %442 = vmatprep.subr.mxu0 0.0
    %443 = vmatpush1.msra.mxu0 %v331
    %444 = vmatprep.subr.mxu0 0.0
    %445 = vmatpush1.msra.mxu0 %v334
    %446 = vmatprep.subr.mxu0 0.0
    %447 = vmatpush1.msra.mxu0 %v337
    %448 = vmatprep.subr.mxu0 0.0
    %449 = vmatpush1.msra.mxu0 %v340
    %450 = vmatprep.subr.mxu0 0.0
    %451 = vmatpush1.msra.mxu0 %v343
    %452 = vmatprep.subr.mxu0 0.0
    %453 = vmatpush1.msra.mxu0 %v346
    %454 = vmatprep.subr.mxu0 0.0
    %455 = vmatpush1.msra.mxu0 %v349
    %456 = vmatprep.subr.mxu0 0.0
    %457 = vmatpush1.msra.mxu0 %v352
    %458 = vmatprep.subr.mxu0 0.0
    %459 = vmatpush1.msra.mxu0 %v355
    %460 = vmatprep.subr.mxu0 0.0
    %461 = vmatpush1.msra.mxu0 %v358
    %462 = vmatprep.subr.mxu0 0.0
    %463 = vmatpush1.msra.mxu0 0.0
    %464 = vmatprep.subr.mxu0 0.0
    %465 = vmatpush1.msra.mxu0 0.0
    %466 = vmatprep.subr.mxu0 0.0
    %467 = vmatpush1.msra.mxu0 0.0
    %468 = vmatprep.subr.mxu0 0.0
    %469 = vmatpush1.msra.mxu0 0.0
    %470 = vmatprep.subr.mxu0 0.0
    %471 = vmatpush1.msra.mxu0 0.0
    %472 = vmatprep.subr.mxu0 0.0
    %473 = vmatpush1.msra.mxu0 0.0
    %474 = vmatprep.subr.mxu0 0.0
    %475 = vmatpush1.msra.mxu0 0.0
    %476 = vmatprep.subr.mxu0 0.0
    %477 = vmatpush1.msra.mxu0 0.0
    %478 = vmatprep.subr.mxu0 0.0
    %479 = vmatpush1.msra.mxu0 0.0
    %480 = vmatprep.subr.mxu0 0.0
    %481 = vmatpush1.msra.mxu0 0.0
    %482 = vmatprep.subr.mxu0 0.0
    %483 = vmatpush1.msra.mxu0 0.0
    %484 = vmatprep.subr.mxu0 0.0
    %485 = vmatpush1.msra.mxu0 0.0
    %486 = vmatprep.subr.mxu0 0.0
    %487 = vmatpush1.msra.mxu0 0.0
    %488 = vmatprep.subr.mxu0 0.0
    %489 = vmatpush1.msra.mxu0 0.0
    %490 = vmatprep.subr.mxu0 0.0
    %491 = vmatpush1.msra.mxu0 0.0
    %492 = vmatprep.subr.mxu0 0.0
    %493 = vmatpush1.msra.mxu0 0.0
    %494 = vmatprep.mubr.f32.mxu0 0.0
    %495 = vmatmul.mubr.f32.gmra.mrb[0].mxu0 %v310
    %v496 = vpop.f32.mrb[0].mxu0
    %v497 = vadd.f32 0.0, %v496
    %v498 = vpop.f32.mrb[0].mxu0
    %499 = vdwg.mxu0
    %v500 = vld [vmem:[#allocation3] ss:$8 sm:$0x7]
    %v501 = vadd.f32 %v500, %v426
    %v502 = vxor.u32 %v501, 2147483648
    %v503 = vmul.f32 %v502, 1.442695
    %v504 = vpow.pop %v503
    %v505 = vadd.f32 %v504, 1.0
    %v506 = vrcp.pop %v505
    %v507 = vmul.f32 1.0, %v506
    %v509 = vrot.slane %v500, 1
    %v511 = vadd.f32 %v509, %v428
    %v512 = vxor.u32 %v511, 2147483648
    %v513 = vmul.f32 %v512, 1.442695
    %v514 = vpow.pop %v513
    %v515 = vadd.f32 %v514, 1.0
    %v516 = vrcp.pop %v515
    %v517 = vmul.f32 1.0, %v516
    %v518 = vadd.f32 %v497, %v309
    %v519 = vmul.f32 %v507, %v518
    %v520 = vrot.slane %v500, 2
    %v522 = vadd.f32 %v520, %v519
    %v523 = vtanh.pop %v522
    %v524 = vsub.f32 1.0, %v517
    %v525 = vmul.f32 %v524, %v523
    %v526 = vmul.f32 %v517, %v310
    %v527 = vadd.f32 %v525, %v526
    %528 = vst [vmem:[#allocation12] sm:$0x1] %v527
    %v529 = vld [vmem:[#allocation7] sm:$0xff]
    %v530 = vld [vmem:[#allocation7 + $0x8] sm:$0xff]
    %v531 = vld [vmem:[#allocation7 + $0x10] sm:$0xff]
    %v532 = vld [vmem:[#allocation7 + $0x18] sm:$0xff]
    %v533 = vld [vmem:[#allocation7 + $0x20] sm:$0xff]
    %v534 = vld [vmem:[#allocation7 + $0x28] sm:$0xff]
    %v535 = vld [vmem:[#allocation7 + $0x30] sm:$0xff]
    %v536 = vld [vmem:[#allocation7 + $0x38] sm:$0xff]
    %v537 = vld [vmem:[#allocation7 + $0x40] sm:$0xff]
    %v538 = vld [vmem:[#allocation7 + $0x48] sm:$0xff]
    %v539 = vld [vmem:[#allocation7 + $0x50] sm:$0xff]
    %v540 = vld [vmem:[#allocation7 + $0x58] sm:$0xff]
    %v541 = vld [vmem:[#allocation7 + $0x60] sm:$0xff]
    %v542 = vld [vmem:[#allocation7 + $0x68] sm:$0xff]
    %v543 = vld [vmem:[#allocation7 + $0x70] sm:$0xff]
    %v544 = vld [vmem:[#allocation7 + $0x78] sm:$0xff]
    %v545 = vld [vmem:[#allocation7 + $0x80] sm:$0xff]
    %v546 = vld [vmem:[#allocation7 + $0x88] sm:$0xff]
    %v547 = vld [vmem:[#allocation7 + $0x90] sm:$0xff]
    %v548 = vld [vmem:[#allocation7 + $0x98] sm:$0xff]
    %v549 = vld [vmem:[#allocation7 + $0xa0] sm:$0xff]
    %v550 = vld [vmem:[#allocation7 + $0xa8] sm:$0xff]
    %v551 = vld [vmem:[#allocation7 + $0xb0] sm:$0xff]
    %v552 = vld [vmem:[#allocation7 + $0xb8] sm:$0xff]
    %v553 = vld [vmem:[#allocation7 + $0xc0] sm:$0xff]
    %v554 = vld [vmem:[#allocation7 + $0xc8] sm:$0xff]
    %v555 = vld [vmem:[#allocation7 + $0xd0] sm:$0xff]
    %v556 = vld [vmem:[#allocation7 + $0xd8] sm:$0xff]
    %v557 = vld [vmem:[#allocation7 + $0xe0] sm:$0xff]
    %v558 = vld [vmem:[#allocation7 + $0xe8] sm:$0xff]
    %v559 = vld [vmem:[#allocation7 + $0xf0] sm:$0xff]
    %v560 = vld [vmem:[#allocation7 + $0xf8] sm:$0xff]
    %v561 = vld [vmem:[#allocation7 + $0x100] sm:$0xff]
    %v562 = vld [vmem:[#allocation7 + $0x108] sm:$0xff]
    %v563 = vld [vmem:[#allocation7 + $0x110] sm:$0xff]
    %v564 = vld [vmem:[#allocation7 + $0x118] sm:$0xff]
    %v565 = vld [vmem:[#allocation7 + $0x120] sm:$0xff]
    %v566 = vld [vmem:[#allocation7 + $0x128] sm:$0xff]
    %v567 = vld [vmem:[#allocation7 + $0x130] sm:$0xff]
    %v568 = vld [vmem:[#allocation7 + $0x138] sm:$0xff]
    %v569 = vld [vmem:[#allocation7 + $0x140] sm:$0xff]
    %v570 = vld [vmem:[#allocation7 + $0x148] sm:$0xff]
    %v571 = vld [vmem:[#allocation7 + $0x150] sm:$0xff]
    %v572 = vld [vmem:[#allocation7 + $0x158] sm:$0xff]
    %v573 = vld [vmem:[#allocation7 + $0x160] sm:$0xff]
    %v574 = vld [vmem:[#allocation7 + $0x168] sm:$0xff]
    %v575 = vld [vmem:[#allocation7 + $0x170] sm:$0xff]
    %v576 = vld [vmem:[#allocation7 + $0x178] sm:$0xff]
    %577 = vmatprep.subr.mxu0 %v530
    %578 = vmatpush1.msra.mxu0 %v529
    %579 = vmatprep.subr.mxu0 %v533
    %580 = vmatpush1.msra.mxu0 %v532
    %581 = vmatprep.subr.mxu0 %v536
    %582 = vmatpush1.msra.mxu0 %v535
    %583 = vmatprep.subr.mxu0 %v539
    %584 = vmatpush1.msra.mxu0 %v538
    %585 = vmatprep.subr.mxu0 %v542
    %586 = vmatpush1.msra.mxu0 %v541
    %587 = vmatprep.subr.mxu0 %v545
    %588 = vmatpush1.msra.mxu0 %v544
    %589 = vmatprep.subr.mxu0 %v548
    %590 = vmatpush1.msra.mxu0 %v547
    %591 = vmatprep.subr.mxu0 %v551
    %592 = vmatpush1.msra.mxu0 %v550
    %593 = vmatprep.subr.mxu0 %v554
    %594 = vmatpush1.msra.mxu0 %v553
    %595 = vmatprep.subr.mxu0 %v557
    %596 = vmatpush1.msra.mxu0 %v556
    %597 = vmatprep.subr.mxu0 %v560
    %598 = vmatpush1.msra.mxu0 %v559
    %599 = vmatprep.subr.mxu0 %v563
    %600 = vmatpush1.msra.mxu0 %v562
    %601 = vmatprep.subr.mxu0 %v566
    %602 = vmatpush1.msra.mxu0 %v565
    %603 = vmatprep.subr.mxu0 %v569
    %604 = vmatpush1.msra.mxu0 %v568
    %605 = vmatprep.subr.mxu0 %v572
    %606 = vmatpush1.msra.mxu0 %v571
    %607 = vmatprep.subr.mxu0 %v575
    %608 = vmatpush1.msra.mxu0 %v574
    %609 = vmatprep.subr.mxu0 0.0
    %610 = vmatpush1.msra.mxu0 0.0
    %611 = vmatprep.subr.mxu0 0.0
    %612 = vmatpush1.msra.mxu0 0.0
    %613 = vmatprep.subr.mxu0 0.0
    %614 = vmatpush1.msra.mxu0 0.0
    %615 = vmatprep.subr.mxu0 0.0
    %616 = vmatpush1.msra.mxu0 0.0
    %617 = vmatprep.subr.mxu0 0.0
    %618 = vmatpush1.msra.mxu0 0.0
    %619 = vmatprep.subr.mxu0 0.0
    %620 = vmatpush1.msra.mxu0 0.0
    %621 = vmatprep.subr.mxu0 0.0
    %622 = vmatpush1.msra.mxu0 0.0
    %623 = vmatprep.subr.mxu0 0.0
    %624 = vmatpush1.msra.mxu0 0.0
    %625 = vmatprep.subr.mxu0 0.0
    %626 = vmatpush1.msra.mxu0 0.0
    %627 = vmatprep.subr.mxu0 0.0
    %628 = vmatpush1.msra.mxu0 0.0
    %629 = vmatprep.subr.mxu0 0.0
    %630 = vmatpush1.msra.mxu0 0.0
    %631 = vmatprep.subr.mxu0 0.0
    %632 = vmatpush1.msra.mxu0 0.0
    %633 = vmatprep.subr.mxu0 0.0
    %634 = vmatpush1.msra.mxu0 0.0
    %635 = vmatprep.subr.mxu0 0.0
    %636 = vmatpush1.msra.mxu0 0.0
    %637 = vmatprep.subr.mxu0 0.0
    %638 = vmatpush1.msra.mxu0 0.0
    %639 = vmatprep.subr.mxu0 0.0
    %640 = vmatpush1.msra.mxu0 0.0
    %641 = vmatprep.mubr.f32.mxu0 0.0
    %642 = vmatmul.mubr.f32.gmra.mrb[0].mxu0 %v527
    %v643 = vpop.f32.mrb[0].mxu0
    %v644 = vadd.f32 0.0, %v643
    %v645 = vpop.f32.mrb[0].mxu0
    %v646 = vadd.f32 0.0, %v645
    %647 = vdwg.mxu0
    %648 = vmatprep.subr.mxu0 0.0
    %649 = vmatpush1.msra.mxu0 %v531
    %650 = vmatprep.subr.mxu0 0.0
    %651 = vmatpush1.msra.mxu0 %v534
    %652 = vmatprep.subr.mxu0 0.0
    %653 = vmatpush1.msra.mxu0 %v537
    %654 = vmatprep.subr.mxu0 0.0
    %655 = vmatpush1.msra.mxu0 %v540
    %656 = vmatprep.subr.mxu0 0.0
    %657 = vmatpush1.msra.mxu0 %v543
    %658 = vmatprep.subr.mxu0 0.0
    %659 = vmatpush1.msra.mxu0 %v546
    %660 = vmatprep.subr.mxu0 0.0
    %661 = vmatpush1.msra.mxu0 %v549
    %662 = vmatprep.subr.mxu0 0.0
    %663 = vmatpush1.msra.mxu0 %v552
    %664 = vmatprep.subr.mxu0 0.0
    %665 = vmatpush1.msra.mxu0 %v555
    %666 = vmatprep.subr.mxu0 0.0
    %667 = vmatpush1.msra.mxu0 %v558
    %668 = vmatprep.subr.mxu0 0.0
    %669 = vmatpush1.msra.mxu0 %v561
    %670 = vmatprep.subr.mxu0 0.0
    %671 = vmatpush1.msra.mxu0 %v564
    %672 = vmatprep.subr.mxu0 0.0
    %673 = vmatpush1.msra.mxu0 %v567
    %674 = vmatprep.subr.mxu0 0.0
    %675 = vmatpush1.msra.mxu0 %v570
    %676 = vmatprep.subr.mxu0 0.0
    %677 = vmatpush1.msra.mxu0 %v573
    %678 = vmatprep.subr.mxu0 0.0
    %679 = vmatpush1.msra.mxu0 %v576
    %680 = vmatprep.subr.mxu0 0.0
    %681 = vmatpush1.msra.mxu0 0.0
    %682 = vmatprep.subr.mxu0 0.0
    %683 = vmatpush1.msra.mxu0 0.0
    %684 = vmatprep.subr.mxu0 0.0
    %685 = vmatpush1.msra.mxu0 0.0
    %686 = vmatprep.subr.mxu0 0.0
    %687 = vmatpush1.msra.mxu0 0.0
    %688 = vmatprep.subr.mxu0 0.0
    %689 = vmatpush1.msra.mxu0 0.0
    %690 = vmatprep.subr.mxu0 0.0
    %691 = vmatpush1.msra.mxu0 0.0
    %692 = vmatprep.subr.mxu0 0.0
    %693 = vmatpush1.msra.mxu0 0.0
    %694 = vmatprep.subr.mxu0 0.0
    %695 = vmatpush1.msra.mxu0 0.0
    %696 = vmatprep.subr.mxu0 0.0
    %697 = vmatpush1.msra.mxu0 0.0
    %698 = vmatprep.subr.mxu0 0.0
    %699 = vmatpush1.msra.mxu0 0.0
    %700 = vmatprep.subr.mxu0 0.0
    %701 = vmatpush1.msra.mxu0 0.0
    %702 = vmatprep.subr.mxu0 0.0
    %703 = vmatpush1.msra.mxu0 0.0
    %704 = vmatprep.subr.mxu0 0.0
    %705 = vmatpush1.msra.mxu0 0.0
    %706 = vmatprep.subr.mxu0 0.0
    %707 = vmatpush1.msra.mxu0 0.0
    %708 = vmatprep.subr.mxu0 0.0
    %709 = vmatpush1.msra.mxu0 0.0
    %710 = vmatprep.subr.mxu0 0.0
    %711 = vmatpush1.msra.mxu0 0.0
    %712 = vmatprep.mubr.f32.mxu0 0.0
    %713 = vmatmul.mubr.f32.gmra.mrb[0].mxu0 %v527
    %v714 = vpop.f32.mrb[0].mxu0
    %v715 = vadd.f32 0.0, %v714
    %v716 = vpop.f32.mrb[0].mxu0
    %717 = vdwg.mxu0
    %s718 = scalar_lea.vmem [#allocation3], 1
    %v719 = vld [vmem:[%s718] ss:$8 sm:$0x7]
    %v720 = vadd.f32 %v719, %v644
    %v721 = vxor.u32 %v720, 2147483648
    %v722 = vmul.f32 %v721, 1.442695
    %v723 = vpow.pop %v722
    %v724 = vadd.f32 %v723, 1.0
    %v725 = vrcp.pop %v724
    %v726 = vmul.f32 1.0, %v725
    %v728 = vrot.slane %v719, 1
    %v730 = vadd.f32 %v728, %v646
    %v731 = vxor.u32 %v730, 2147483648
    %v732 = vmul.f32 %v731, 1.442695
    %v733 = vpow.pop %v732
    %v734 = vadd.f32 %v733, 1.0
    %v735 = vrcp.pop %v734
    %v736 = vmul.f32 1.0, %v735
    %v737 = vadd.f32 %v715, %v309
    %v738 = vmul.f32 %v726, %v737
    %v739 = vrot.slane %v719, 2
    %v741 = vadd.f32 %v739, %v738
    %v742 = vtanh.pop %v741
    %v743 = vsub.f32 1.0, %v736
    %v744 = vmul.f32 %v743, %v742
    %v745 = vmul.f32 %v736, %v527
    %v746 = vadd.f32 %v744, %v745
    %747 = vst [vmem:[#allocation12 + $0x1] sm:$0x1] %v746
    %v748 = vld [vmem:[#allocation7] sm:$0xff]
    %v749 = vld [vmem:[#allocation7 + $0x8] sm:$0xff]
    %v750 = vld [vmem:[#allocation7 + $0x10] sm:$0xff]
    %v751 = vld [vmem:[#allocation7 + $0x18] sm:$0xff]
    %v752 = vld [vmem:[#allocation7 + $0x20] sm:$0xff]
    %v753 = vld [vmem:[#allocation7 + $0x28] sm:$0xff]
    %v754 = vld [vmem:[#allocation7 + $0x30] sm:$0xff]
    %v755 = vld [vmem:[#allocation7 + $0x38] sm:$0xff]
    %v756 = vld [vmem:[#allocation7 + $0x40] sm:$0xff]
    %v757 = vld [vmem:[#allocation7 + $0x48] sm:$0xff]
    %v758 = vld [vmem:[#allocation7 + $0x50] sm:$0xff]
    %v759 = vld [vmem:[#allocation7 + $0x58] sm:$0xff]
    %v760 = vld [vmem:[#allocation7 + $0x60] sm:$0xff]
    %v761 = vld [vmem:[#allocation7 + $0x68] sm:$0xff]
    %v762 = vld [vmem:[#allocation7 + $0x70] sm:$0xff]
    %v763 = vld [vmem:[#allocation7 + $0x78] sm:$0xff]
    %v764 = vld [vmem:[#allocation7 + $0x80] sm:$0xff]
    %v765 = vld [vmem:[#allocation7 + $0x88] sm:$0xff]
    %v766 = vld [vmem:[#allocation7 + $0x90] sm:$0xff]
    %v767 = vld [vmem:[#allocation7 + $0x98] sm:$0xff]
    %v768 = vld [vmem:[#allocation7 + $0xa0] sm:$0xff]
    %v769 = vld [vmem:[#allocation7 + $0xa8] sm:$0xff]
    %v770 = vld [vmem:[#allocation7 + $0xb0] sm:$0xff]
    %v771 = vld [vmem:[#allocation7 + $0xb8] sm:$0xff]
    %v772 = vld [vmem:[#allocation7 + $0xc0] sm:$0xff]
    %v773 = vld [vmem:[#allocation7 + $0xc8] sm:$0xff]
    %v774 = vld [vmem:[#allocation7 + $0xd0] sm:$0xff]
    %v775 = vld [vmem:[#allocation7 + $0xd8] sm:$0xff]
    %v776 = vld [vmem:[#allocation7 + $0xe0] sm:$0xff]
    %v777 = vld [vmem:[#allocation7 + $0xe8] sm:$0xff]
    %v778 = vld [vmem:[#allocation7 + $0xf0] sm:$0xff]
    %v779 = vld [vmem:[#allocation7 + $0xf8] sm:$0xff]
    %v780 = vld [vmem:[#allocation7 + $0x100] sm:$0xff]
    %v781 = vld [vmem:[#allocation7 + $0x108] sm:$0xff]
    %v782 = vld [vmem:[#allocation7 + $0x110] sm:$0xff]
    %v783 = vld [vmem:[#allocation7 + $0x118] sm:$0xff]
    %v784 = vld [vmem:[#allocation7 + $0x120] sm:$0xff]
    %v785 = vld [vmem:[#allocation7 + $0x128] sm:$0xff]
    %v786 = vld [vmem:[#allocation7 + $0x130] sm:$0xff]
    %v787 = vld [vmem:[#allocation7 + $0x138] sm:$0xff]
    %v788 = vld [vmem:[#allocation7 + $0x140] sm:$0xff]
    %v789 = vld [vmem:[#allocation7 + $0x148] sm:$0xff]
    %v790 = vld [vmem:[#allocation7 + $0x150] sm:$0xff]
    %v791 = vld [vmem:[#allocation7 + $0x158] sm:$0xff]
    %v792 = vld [vmem:[#allocation7 + $0x160] sm:$0xff]
    %v793 = vld [vmem:[#allocation7 + $0x168] sm:$0xff]
    %v794 = vld [vmem:[#allocation7 + $0x170] sm:$0xff]
    %v795 = vld [vmem:[#allocation7 + $0x178] sm:$0xff]
    %796 = vmatprep.subr.mxu0 %v749
    %797 = vmatpush1.msra.mxu0 %v748
    %798 = vmatprep.subr.mxu0 %v752
    %799 = vmatpush1.msra.mxu0 %v751
    %800 = vmatprep.subr.mxu0 %v755
    %801 = vmatpush1.msra.mxu0 %v754
    %802 = vmatprep.subr.mxu0 %v758
    %803 = vmatpush1.msra.mxu0 %v757
    %804 = vmatprep.subr.mxu0 %v761
    %805 = vmatpush1.msra.mxu0 %v760
    %806 = vmatprep.subr.mxu0 %v764
    %807 = vmatpush1.msra.mxu0 %v763
    %808 = vmatprep.subr.mxu0 %v767
    %809 = vmatpush1.msra.mxu0 %v766
    %810 = vmatprep.subr.mxu0 %v770
    %811 = vmatpush1.msra.mxu0 %v769
    %812 = vmatprep.subr.mxu0 %v773
    %813 = vmatpush1.msra.mxu0 %v772
    %814 = vmatprep.subr.mxu0 %v776
    %815 = vmatpush1.msra.mxu0 %v775
    %816 = vmatprep.subr.mxu0 %v779
    %817 = vmatpush1.msra.mxu0 %v778
    %818 = vmatprep.subr.mxu0 %v782
    %819 = vmatpush1.msra.mxu0 %v781
    %820 = vmatprep.subr.mxu0 %v785
    %821 = vmatpush1.msra.mxu0 %v784
    %822 = vmatprep.subr.mxu0 %v788
    %823 = vmatpush1.msra.mxu0 %v787
    %824 = vmatprep.subr.mxu0 %v791
    %825 = vmatpush1.msra.mxu0 %v790
    %826 = vmatprep.subr.mxu0 %v794
    %827 = vmatpush1.msra.mxu0 %v793
    %828 = vmatprep.subr.mxu0 0.0
    %829 = vmatpush1.msra.mxu0 0.0
    %830 = vmatprep.subr.mxu0 0.0
    %831 = vmatpush1.msra.mxu0 0.0
    %832 = vmatprep.subr.mxu0 0.0
    %833 = vmatpush1.msra.mxu0 0.0
    %834 = vmatprep.subr.mxu0 0.0
    %835 = vmatpush1.msra.mxu0 0.0
    %836 = vmatprep.subr.mxu0 0.0
    %837 = vmatpush1.msra.mxu0 0.0
    %838 = vmatprep.subr.mxu0 0.0
    %839 = vmatpush1.msra.mxu0 0.0
    %840 = vmatprep.subr.mxu0 0.0
    %841 = vmatpush1.msra.mxu0 0.0
    %842 = vmatprep.subr.mxu0 0.0
    %843 = vmatpush1.msra.mxu0 0.0
    %844 = vmatprep.subr.mxu0 0.0
    %845 = vmatpush1.msra.mxu0 0.0
    %846 = vmatprep.subr.mxu0 0.0
    %847 = vmatpush1.msra.mxu0 0.0
    %848 = vmatprep.subr.mxu0 0.0
    %849 = vmatpush1.msra.mxu0 0.0
    %850 = vmatprep.subr.mxu0 0.0
    %851 = vmatpush1.msra.mxu0 0.0
    %852 = vmatprep.subr.mxu0 0.0
    %853 = vmatpush1.msra.mxu0 0.0
    %854 = vmatprep.subr.mxu0 0.0
    %855 = vmatpush1.msra.mxu0 0.0
    %856 = vmatprep.subr.mxu0 0.0
    %857 = vmatpush1.msra.mxu0 0.0
    %858 = vmatprep.subr.mxu0 0.0
    %859 = vmatpush1.msra.mxu0 0.0
    %860 = vmatprep.mubr.f32.mxu0 0.0
    %861 = vmatmul.mubr.f32.gmra.mrb[0].mxu0 %v746
    %v862 = vpop.f32.mrb[0].mxu0
    %v863 = vadd.f32 0.0, %v862
    %v864 = vpop.f32.mrb[0].mxu0
    %v865 = vadd.f32 0.0, %v864
    %866 = vdwg.mxu0
    %867 = vmatprep.subr.mxu0 0.0
    %868 = vmatpush1.msra.mxu0 %v750
    %869 = vmatprep.subr.mxu0 0.0
    %870 = vmatpush1.msra.mxu0 %v753
    %871 = vmatprep.subr.mxu0 0.0
    %872 = vmatpush1.msra.mxu0 %v756
    %873 = vmatprep.subr.mxu0 0.0
    %874 = vmatpush1.msra.mxu0 %v759
    %875 = vmatprep.subr.mxu0 0.0
    %876 = vmatpush1.msra.mxu0 %v762
    %877 = vmatprep.subr.mxu0 0.0
    %878 = vmatpush1.msra.mxu0 %v765
    %879 = vmatprep.subr.mxu0 0.0
    %880 = vmatpush1.msra.mxu0 %v768
    %881 = vmatprep.subr.mxu0 0.0
    %882 = vmatpush1.msra.mxu0 %v771
    %883 = vmatprep.subr.mxu0 0.0
    %884 = vmatpush1.msra.mxu0 %v774
    %885 = vmatprep.subr.mxu0 0.0
    %886 = vmatpush1.msra.mxu0 %v777
    %887 = vmatprep.subr.mxu0 0.0
    %888 = vmatpush1.msra.mxu0 %v780
    %889 = vmatprep.subr.mxu0 0.0
    %890 = vmatpush1.msra.mxu0 %v783
    %891 = vmatprep.subr.mxu0 0.0
    %892 = vmatpush1.msra.mxu0 %v786
    %893 = vmatprep.subr.mxu0 0.0
    %894 = vmatpush1.msra.mxu0 %v789
    %895 = vmatprep.subr.mxu0 0.0
    %896 = vmatpush1.msra.mxu0 %v792
    %897 = vmatprep.subr.mxu0 0.0
    %898 = vmatpush1.msra.mxu0 %v795
    %899 = vmatprep.subr.mxu0 0.0
    %900 = vmatpush1.msra.mxu0 0.0
    %901 = vmatprep.subr.mxu0 0.0
    %902 = vmatpush1.msra.mxu0 0.0
    %903 = vmatprep.subr.mxu0 0.0
    %904 = vmatpush1.msra.mxu0 0.0
    %905 = vmatprep.subr.mxu0 0.0
    %906 = vmatpush1.msra.mxu0 0.0
    %907 = vmatprep.subr.mxu0 0.0
    %908 = vmatpush1.msra.mxu0 0.0
    %909 = vmatprep.subr.mxu0 0.0
    %910 = vmatpush1.msra.mxu0 0.0
    %911 = vmatprep.subr.mxu0 0.0
    %912 = vmatpush1.msra.mxu0 0.0
    %913 = vmatprep.subr.mxu0 0.0
    %914 = vmatpush1.msra.mxu0 0.0
    %915 = vmatprep.subr.mxu0 0.0
    %916 = vmatpush1.msra.mxu0 0.0
    %917 = vmatprep.subr.mxu0 0.0
    %918 = vmatpush1.msra.mxu0 0.0
    %919 = vmatprep.subr.mxu0 0.0
    %920 = vmatpush1.msra.mxu0 0.0
    %921 = vmatprep.subr.mxu0 0.0
    %922 = vmatpush1.msra.mxu0 0.0
    %923 = vmatprep.subr.mxu0 0.0
    %924 = vmatpush1.msra.mxu0 0.0
    %925 = vmatprep.subr.mxu0 0.0
    %926 = vmatpush1.msra.mxu0 0.0
    %927 = vmatprep.subr.mxu0 0.0
    %928 = vmatpush1.msra.mxu0 0.0
    %929 = vmatprep.subr.mxu0 0.0
    %930 = vmatpush1.msra.mxu0 0.0
    %931 = vmatprep.mubr.f32.mxu0 0.0
    %932 = vmatmul.mubr.f32.gmra.mrb[0].mxu0 %v746
    %v933 = vpop.f32.mrb[0].mxu0
    %v934 = vadd.f32 0.0, %v933
    %v935 = vpop.f32.mrb[0].mxu0
    %936 = vdwg.mxu0
    %s937 = scalar_lea.vmem [#allocation3], 2
    %v938 = vld [vmem:[%s937] ss:$8 sm:$0x7]
    %v939 = vadd.f32 %v938, %v863
    %v940 = vxor.u32 %v939, 2147483648
    %v941 = vmul.f32 %v940, 1.442695
    %v942 = vpow.pop %v941
    %v943 = vadd.f32 %v942, 1.0
    %v944 = vrcp.pop %v943
    %v945 = vmul.f32 1.0, %v944
    %v947 = vrot.slane %v938, 1
    %v949 = vadd.f32 %v947, %v865
    %v950 = vxor.u32 %v949, 2147483648
    %v951 = vmul.f32 %v950, 1.442695
    %v952 = vpow.pop %v951
    %v953 = vadd.f32 %v952, 1.0
    %v954 = vrcp.pop %v953
    %v955 = vmul.f32 1.0, %v954
    %v956 = vadd.f32 %v934, %v309
    %v957 = vmul.f32 %v945, %v956
    %v958 = vrot.slane %v938, 2
    %v960 = vadd.f32 %v958, %v957
    %v961 = vtanh.pop %v960
    %v962 = vsub.f32 1.0, %v955
    %v963 = vmul.f32 %v962, %v961
    %v964 = vmul.f32 %v955, %v746
    %v965 = vadd.f32 %v963, %v964
    %966 = vst [vmem:[#allocation12 + $0x2] sm:$0x1] %v965
    %v967 = vld [vmem:[#allocation7] sm:$0xff]
    %v968 = vld [vmem:[#allocation7 + $0x8] sm:$0xff]
    %v969 = vld [vmem:[#allocation7 + $0x10] sm:$0xff]
    %v970 = vld [vmem:[#allocation7 + $0x18] sm:$0xff]
    %v971 = vld [vmem:[#allocation7 + $0x20] sm:$0xff]
    %v972 = vld [vmem:[#allocation7 + $0x28] sm:$0xff]
    %v973 = vld [vmem:[#allocation7 + $0x30] sm:$0xff]
    %v974 = vld [vmem:[#allocation7 + $0x38] sm:$0xff]
    %v975 = vld [vmem:[#allocation7 + $0x40] sm:$0xff]
    %v976 = vld [vmem:[#allocation7 + $0x48] sm:$0xff]
    %v977 = vld [vmem:[#allocation7 + $0x50] sm:$0xff]
    %v978 = vld [vmem:[#allocation7 + $0x58] sm:$0xff]
    %v979 = vld [vmem:[#allocation7 + $0x60] sm:$0xff]
    %v980 = vld [vmem:[#allocation7 + $0x68] sm:$0xff]
    %v981 = vld [vmem:[#allocation7 + $0x70] sm:$0xff]
    %v982 = vld [vmem:[#allocation7 + $0x78] sm:$0xff]
    %v983 = vld [vmem:[#allocation7 + $0x80] sm:$0xff]
    %v984 = vld [vmem:[#allocation7 + $0x88] sm:$0xff]
    %v985 = vld [vmem:[#allocation7 + $0x90] sm:$0xff]
    %v986 = vld [vmem:[#allocation7 + $0x98] sm:$0xff]
    %v987 = vld [vmem:[#allocation7 + $0xa0] sm:$0xff]
    %v988 = vld [vmem:[#allocation7 + $0xa8] sm:$0xff]
    %v989 = vld [vmem:[#allocation7 + $0xb0] sm:$0xff]
    %v990 = vld [vmem:[#allocation7 + $0xb8] sm:$0xff]
    %v991 = vld [vmem:[#allocation7 + $0xc0] sm:$0xff]
    %v992 = vld [vmem:[#allocation7 + $0xc8] sm:$0xff]
    %v993 = vld [vmem:[#allocation7 + $0xd0] sm:$0xff]
    %v994 = vld [vmem:[#allocation7 + $0xd8] sm:$0xff]
    %v995 = vld [vmem:[#allocation7 + $0xe0] sm:$0xff]
    %v996 = vld [vmem:[#allocation7 + $0xe8] sm:$0xff]
    %v997 = vld [vmem:[#allocation7 + $0xf0] sm:$0xff]
    %v998 = vld [vmem:[#allocation7 + $0xf8] sm:$0xff]
    %v999 = vld [vmem:[#allocation7 + $0x100] sm:$0xff]
    %v1000 = vld [vmem:[#allocation7 + $0x108] sm:$0xff]
    %v1001 = vld [vmem:[#allocation7 + $0x110] sm:$0xff]
    %v1002 = vld [vmem:[#allocation7 + $0x118] sm:$0xff]
    %v1003 = vld [vmem:[#allocation7 + $0x120] sm:$0xff]
    %v1004 = vld [vmem:[#allocation7 + $0x128] sm:$0xff]
    %v1005 = vld [vmem:[#allocation7 + $0x130] sm:$0xff]
    %v1006 = vld [vmem:[#allocation7 + $0x138] sm:$0xff]
    %v1007 = vld [vmem:[#allocation7 + $0x140] sm:$0xff]
    %v1008 = vld [vmem:[#allocation7 + $0x148] sm:$0xff]
    %v1009 = vld [vmem:[#allocation7 + $0x150] sm:$0xff]
    %v1010 = vld [vmem:[#allocation7 + $0x158] sm:$0xff]
    %v1011 = vld [vmem:[#allocation7 + $0x160] sm:$0xff]
    %v1012 = vld [vmem:[#allocation7 + $0x168] sm:$0xff]
    %v1013 = vld [vmem:[#allocation7 + $0x170] sm:$0xff]
    %v1014 = vld [vmem:[#allocation7 + $0x178] sm:$0xff]
    %1015 = vmatprep.subr.mxu0 %v968
    %1016 = vmatpush1.msra.mxu0 %v967
    %1017 = vmatprep.subr.mxu0 %v971
    %1018 = vmatpush1.msra.mxu0 %v970
    %1019 = vmatprep.subr.mxu0 %v974
    %1020 = vmatpush1.msra.mxu0 %v973
    %1021 = vmatprep.subr.mxu0 %v977
    %1022 = vmatpush1.msra.mxu0 %v976
    %1023 = vmatprep.subr.mxu0 %v980
    %1024 = vmatpush1.msra.mxu0 %v979
    %1025 = vmatprep.subr.mxu0 %v983
    %1026 = vmatpush1.msra.mxu0 %v982
    %1027 = vmatprep.subr.mxu0 %v986
    %1028 = vmatpush1.msra.mxu0 %v985
    %1029 = vmatprep.subr.mxu0 %v989
    %1030 = vmatpush1.msra.mxu0 %v988
    %1031 = vmatprep.subr.mxu0 %v992
    %1032 = vmatpush1.msra.mxu0 %v991
    %1033 = vmatprep.subr.mxu0 %v995
    %1034 = vmatpush1.msra.mxu0 %v994
    %1035 = vmatprep.subr.mxu0 %v998
    %1036 = vmatpush1.msra.mxu0 %v997
    %1037 = vmatprep.subr.mxu0 %v1001
    %1038 = vmatpush1.msra.mxu0 %v1000
    %1039 = vmatprep.subr.mxu0 %v1004
    %1040 = vmatpush1.msra.mxu0 %v1003
    %1041 = vmatprep.subr.mxu0 %v1007
    %1042 = vmatpush1.msra.mxu0 %v1006
    %1043 = vmatprep.subr.mxu0 %v1010
    %1044 = vmatpush1.msra.mxu0 %v1009
    %1045 = vmatprep.subr.mxu0 %v1013
    %1046 = vmatpush1.msra.mxu0 %v1012
    %1047 = vmatprep.subr.mxu0 0.0
    %1048 = vmatpush1.msra.mxu0 0.0
    %1049 = vmatprep.subr.mxu0 0.0
    %1050 = vmatpush1.msra.mxu0 0.0
    %1051 = vmatprep.subr.mxu0 0.0
    %1052 = vmatpush1.msra.mxu0 0.0
    %1053 = vmatprep.subr.mxu0 0.0
    %1054 = vmatpush1.msra.mxu0 0.0
    %1055 = vmatprep.subr.mxu0 0.0
    %1056 = vmatpush1.msra.mxu0 0.0
    %1057 = vmatprep.subr.mxu0 0.0
    %1058 = vmatpush1.msra.mxu0 0.0
    %1059 = vmatprep.subr.mxu0 0.0
    %1060 = vmatpush1.msra.mxu0 0.0
    %1061 = vmatprep.subr.mxu0 0.0
    %1062 = vmatpush1.msra.mxu0 0.0
    %1063 = vmatprep.subr.mxu0 0.0
    %1064 = vmatpush1.msra.mxu0 0.0
    %1065 = vmatprep.subr.mxu0 0.0
    %1066 = vmatpush1.msra.mxu0 0.0
    %1067 = vmatprep.subr.mxu0 0.0
    %1068 = vmatpush1.msra.mxu0 0.0
    %1069 = vmatprep.subr.mxu0 0.0
    %1070 = vmatpush1.msra.mxu0 0.0
    %1071 = vmatprep.subr.mxu0 0.0
    %1072 = vmatpush1.msra.mxu0 0.0
    %1073 = vmatprep.subr.mxu0 0.0
    %1074 = vmatpush1.msra.mxu0 0.0
    %1075 = vmatprep.subr.mxu0 0.0
    %1076 = vmatpush1.msra.mxu0 0.0
    %1077 = vmatprep.subr.mxu0 0.0
    %1078 = vmatpush1.msra.mxu0 0.0
    %1079 = vmatprep.mubr.f32.mxu0 0.0
    %1080 = vmatmul.mubr.f32.gmra.mrb[0].mxu0 %v965
    %v1081 = vpop.f32.mrb[0].mxu0
    %v1082 = vadd.f32 0.0, %v1081
    %v1083 = vpop.f32.mrb[0].mxu0
    %v1084 = vadd.f32 0.0, %v1083
    %1085 = vdwg.mxu0
    %1086 = vmatprep.subr.mxu0 0.0
    %1087 = vmatpush1.msra.mxu0 %v969
    %1088 = vmatprep.subr.mxu0 0.0
    %1089 = vmatpush1.msra.mxu0 %v972
    %1090 = vmatprep.subr.mxu0 0.0
    %1091 = vmatpush1.msra.mxu0 %v975
    %1092 = vmatprep.subr.mxu0 0.0
    %1093 = vmatpush1.msra.mxu0 %v978
    %1094 = vmatprep.subr.mxu0 0.0
    %1095 = vmatpush1.msra.mxu0 %v981
    %1096 = vmatprep.subr.mxu0 0.0
    %1097 = vmatpush1.msra.mxu0 %v984
    %1098 = vmatprep.subr.mxu0 0.0
    %1099 = vmatpush1.msra.mxu0 %v987
    %1100 = vmatprep.subr.mxu0 0.0
    %1101 = vmatpush1.msra.mxu0 %v990
    %1102 = vmatprep.subr.mxu0 0.0
    %1103 = vmatpush1.msra.mxu0 %v993
    %1104 = vmatprep.subr.mxu0 0.0
    %1105 = vmatpush1.msra.mxu0 %v996
    %1106 = vmatprep.subr.mxu0 0.0
    %1107 = vmatpush1.msra.mxu0 %v999
    %1108 = vmatprep.subr.mxu0 0.0
    %1109 = vmatpush1.msra.mxu0 %v1002
    %1110 = vmatprep.subr.mxu0 0.0
    %1111 = vmatpush1.msra.mxu0 %v1005
    %1112 = vmatprep.subr.mxu0 0.0
    %1113 = vmatpush1.msra.mxu0 %v1008
    %1114 = vmatprep.subr.mxu0 0.0
    %1115 = vmatpush1.msra.mxu0 %v1011
    %1116 = vmatprep.subr.mxu0 0.0
    %1117 = vmatpush1.msra.mxu0 %v1014
    %1118 = vmatprep.subr.mxu0 0.0
    %1119 = vmatpush1.msra.mxu0 0.0
    %1120 = vmatprep.subr.mxu0 0.0
    %1121 = vmatpush1.msra.mxu0 0.0
    %1122 = vmatprep.subr.mxu0 0.0
    %1123 = vmatpush1.msra.mxu0 0.0
    %1124 = vmatprep.subr.mxu0 0.0
    %1125 = vmatpush1.msra.mxu0 0.0
    %1126 = vmatprep.subr.mxu0 0.0
    %1127 = vmatpush1.msra.mxu0 0.0
    %1128 = vmatprep.subr.mxu0 0.0
    %1129 = vmatpush1.msra.mxu0 0.0
    %1130 = vmatprep.subr.mxu0 0.0
    %1131 = vmatpush1.msra.mxu0 0.0
    %1132 = vmatprep.subr.mxu0 0.0
    %1133 = vmatpush1.msra.mxu0 0.0
    %1134 = vmatprep.subr.mxu0 0.0
    %1135 = vmatpush1.msra.mxu0 0.0
    %1136 = vmatprep.subr.mxu0 0.0
    %1137 = vmatpush1.msra.mxu0 0.0
    %1138 = vmatprep.subr.mxu0 0.0
    %1139 = vmatpush1.msra.mxu0 0.0
    %1140 = vmatprep.subr.mxu0 0.0
    %1141 = vmatpush1.msra.mxu0 0.0
    %1142 = vmatprep.subr.mxu0 0.0
    %1143 = vmatpush1.msra.mxu0 0.0
    %1144 = vmatprep.subr.mxu0 0.0
    %1145 = vmatpush1.msra.mxu0 0.0
    %1146 = vmatprep.subr.mxu0 0.0
    %1147 = vmatpush1.msra.mxu0 0.0
    %1148 = vmatprep.subr.mxu0 0.0
    %1149 = vmatpush1.msra.mxu0 0.0
    %1150 = vmatprep.mubr.f32.mxu0 0.0
    %1151 = vmatmul.mubr.f32.gmra.mrb[0].mxu0 %v965
    %v1152 = vpop.f32.mrb[0].mxu0
    %v1153 = vadd.f32 0.0, %v1152
    %v1154 = vpop.f32.mrb[0].mxu0
    %1155 = vdwg.mxu0
    %s1156 = scalar_lea.vmem [#allocation3], 3
    %v1157 = vld [vmem:[%s1156] ss:$8 sm:$0x7]
    %v1158 = vadd.f32 %v1157, %v1082
    %v1159 = vxor.u32 %v1158, 2147483648
    %v1160 = vmul.f32 %v1159, 1.442695
    %v1161 = vpow.pop %v1160
    %v1162 = vadd.f32 %v1161, 1.0
    %v1163 = vrcp.pop %v1162
    %v1164 = vmul.f32 1.0, %v1163
    %v1166 = vrot.slane %v1157, 1
    %v1168 = vadd.f32 %v1166, %v1084
    %v1169 = vxor.u32 %v1168, 2147483648
    %v1170 = vmul.f32 %v1169, 1.442695
    %v1171 = vpow.pop %v1170
    %v1172 = vadd.f32 %v1171, 1.0
    %v1173 = vrcp.pop %v1172
    %v1174 = vmul.f32 1.0, %v1173
    %v1175 = vadd.f32 %v1153, %v309
    %v1176 = vmul.f32 %v1164, %v1175
    %v1177 = vrot.slane %v1157, 2
    %v1179 = vadd.f32 %v1177, %v1176
    %v1180 = vtanh.pop %v1179
    %v1181 = vsub.f32 1.0, %v1174
    %v1182 = vmul.f32 %v1181, %v1180
    %v1183 = vmul.f32 %v1174, %v965
    %v1184 = vadd.f32 %v1182, %v1183
    %1185 = vst [vmem:[#allocation12 + $0x3] sm:$0x1] %v1184
    %v1186 = vld [vmem:[#allocation7] sm:$0xff]
    %v1187 = vld [vmem:[#allocation7 + $0x8] sm:$0xff]
    %v1188 = vld [vmem:[#allocation7 + $0x10] sm:$0xff]
    %v1189 = vld [vmem:[#allocation7 + $0x18] sm:$0xff]
    %v1190 = vld [vmem:[#allocation7 + $0x20] sm:$0xff]
    %v1191 = vld [vmem:[#allocation7 + $0x28] sm:$0xff]
    %v1192 = vld [vmem:[#allocation7 + $0x30] sm:$0xff]
    %v1193 = vld [vmem:[#allocation7 + $0x38] sm:$0xff]
    %v1194 = vld [vmem:[#allocation7 + $0x40] sm:$0xff]
    %v1195 = vld [vmem:[#allocation7 + $0x48] sm:$0xff]
    %v1196 = vld [vmem:[#allocation7 + $0x50] sm:$0xff]
    %v1197 = vld [vmem:[#allocation7 + $0x58] sm:$0xff]
    %v1198 = vld [vmem:[#allocation7 + $0x60] sm:$0xff]
    %v1199 = vld [vmem:[#allocation7 + $0x68] sm:$0xff]
    %v1200 = vld [vmem:[#allocation7 + $0x70] sm:$0xff]
    %v1201 = vld [vmem:[#allocation7 + $0x78] sm:$0xff]
    %v1202 = vld [vmem:[#allocation7 + $0x80] sm:$0xff]
    %v1203 = vld [vmem:[#allocation7 + $0x88] sm:$0xff]
    %v1204 = vld [vmem:[#allocation7 + $0x90] sm:$0xff]
    %v1205 = vld [vmem:[#allocation7 + $0x98] sm:$0xff]
    %v1206 = vld [vmem:[#allocation7 + $0xa0] sm:$0xff]
    %v1207 = vld [vmem:[#allocation7 + $0xa8] sm:$0xff]
    %v1208 = vld [vmem:[#allocation7 + $0xb0] sm:$0xff]
    %v1209 = vld [vmem:[#allocation7 + $0xb8] sm:$0xff]
    %v1210 = vld [vmem:[#allocation7 + $0xc0] sm:$0xff]
    %v1211 = vld [vmem:[#allocation7 + $0xc8] sm:$0xff]
    %v1212 = vld [vmem:[#allocation7 + $0xd0] sm:$0xff]
    %v1213 = vld [vmem:[#allocation7 + $0xd8] sm:$0xff]
    %v1214 = vld [vmem:[#allocation7 + $0xe0] sm:$0xff]
    %v1215 = vld [vmem:[#allocation7 + $0xe8] sm:$0xff]
    %v1216 = vld [vmem:[#allocation7 + $0xf0] sm:$0xff]
    %v1217 = vld [vmem:[#allocation7 + $0xf8] sm:$0xff]
    %v1218 = vld [vmem:[#allocation7 + $0x100] sm:$0xff]
    %v1219 = vld [vmem:[#allocation7 + $0x108] sm:$0xff]
    %v1220 = vld [vmem:[#allocation7 + $0x110] sm:$0xff]
    %v1221 = vld [vmem:[#allocation7 + $0x118] sm:$0xff]
    %v1222 = vld [vmem:[#allocation7 + $0x120] sm:$0xff]
    %v1223 = vld [vmem:[#allocation7 + $0x128] sm:$0xff]
    %v1224 = vld [vmem:[#allocation7 + $0x130] sm:$0xff]
    %v1225 = vld [vmem:[#allocation7 + $0x138] sm:$0xff]
    %v1226 = vld [vmem:[#allocation7 + $0x140] sm:$0xff]
    %v1227 = vld [vmem:[#allocation7 + $0x148] sm:$0xff]
    %v1228 = vld [vmem:[#allocation7 + $0x150] sm:$0xff]
    %v1229 = vld [vmem:[#allocation7 + $0x158] sm:$0xff]
    %v1230 = vld [vmem:[#allocation7 + $0x160] sm:$0xff]
    %v1231 = vld [vmem:[#allocation7 + $0x168] sm:$0xff]
    %v1232 = vld [vmem:[#allocation7 + $0x170] sm:$0xff]
    %v1233 = vld [vmem:[#allocation7 + $0x178] sm:$0xff]
    %1234 = vmatprep.subr.mxu0 %v1187
    %1235 = vmatpush1.msra.mxu0 %v1186
    %1236 = vmatprep.subr.mxu0 %v1190
    %1237 = vmatpush1.msra.mxu0 %v1189
    %1238 = vmatprep.subr.mxu0 %v1193
    %1239 = vmatpush1.msra.mxu0 %v1192
    %1240 = vmatprep.subr.mxu0 %v1196
    %1241 = vmatpush1.msra.mxu0 %v1195
    %1242 = vmatprep.subr.mxu0 %v1199
    %1243 = vmatpush1.msra.mxu0 %v1198
    %1244 = vmatprep.subr.mxu0 %v1202
    %1245 = vmatpush1.msra.mxu0 %v1201
    %1246 = vmatprep.subr.mxu0 %v1205
    %1247 = vmatpush1.msra.mxu0 %v1204
    %1248 = vmatprep.subr.mxu0 %v1208
    %1249 = vmatpush1.msra.mxu0 %v1207
    %1250 = vmatprep.subr.mxu0 %v1211
    %1251 = vmatpush1.msra.mxu0 %v1210
    %1252 = vmatprep.subr.mxu0 %v1214
    %1253 = vmatpush1.msra.mxu0 %v1213
    %1254 = vmatprep.subr.mxu0 %v1217
    %1255 = vmatpush1.msra.mxu0 %v1216
    %1256 = vmatprep.subr.mxu0 %v1220
    %1257 = vmatpush1.msra.mxu0 %v1219
    %1258 = vmatprep.subr.mxu0 %v1223
    %1259 = vmatpush1.msra.mxu0 %v1222
    %1260 = vmatprep.subr.mxu0 %v1226
    %1261 = vmatpush1.msra.mxu0 %v1225
    %1262 = vmatprep.subr.mxu0 %v1229
    %1263 = vmatpush1.msra.mxu0 %v1228
    %1264 = vmatprep.subr.mxu0 %v1232
    %1265 = vmatpush1.msra.mxu0 %v1231
    %1266 = vmatprep.subr.mxu0 0.0
    %1267 = vmatpush1.msra.mxu0 0.0
    %1268 = vmatprep.subr.mxu0 0.0
    %1269 = vmatpush1.msra.mxu0 0.0
    %1270 = vmatprep.subr.mxu0 0.0
    %1271 = vmatpush1.msra.mxu0 0.0
    %1272 = vmatprep.subr.mxu0 0.0
    %1273 = vmatpush1.msra.mxu0 0.0
    %1274 = vmatprep.subr.mxu0 0.0
    %1275 = vmatpush1.msra.mxu0 0.0
    %1276 = vmatprep.subr.mxu0 0.0
    %1277 = vmatpush1.msra.mxu0 0.0
    %1278 = vmatprep.subr.mxu0 0.0
    %1279 = vmatpush1.msra.mxu0 0.0
    %1280 = vmatprep.subr.mxu0 0.0
    %1281 = vmatpush1.msra.mxu0 0.0
    %1282 = vmatprep.subr.mxu0 0.0
    %1283 = vmatpush1.msra.mxu0 0.0
    %1284 = vmatprep.subr.mxu0 0.0
    %1285 = vmatpush1.msra.mxu0 0.0
    %1286 = vmatprep.subr.mxu0 0.0
    %1287 = vmatpush1.msra.mxu0 0.0
    %1288 = vmatprep.subr.mxu0 0.0
    %1289 = vmatpush1.msra.mxu0 0.0
    %1290 = vmatprep.subr.mxu0 0.0
    %1291 = vmatpush1.msra.mxu0 0.0
    %1292 = vmatprep.subr.mxu0 0.0
    %1293 = vmatpush1.msra.mxu0 0.0
    %1294 = vmatprep.subr.mxu0 0.0
    %1295 = vmatpush1.msra.mxu0 0.0
    %1296 = vmatprep.subr.mxu0 0.0
    %1297 = vmatpush1.msra.mxu0 0.0
    %1298 = vmatprep.mubr.f32.mxu0 0.0
    %1299 = vmatmul.mubr.f32.gmra.mrb[0].mxu0 %v1184
    %v1300 = vpop.f32.mrb[0].mxu0
    %v1301 = vadd.f32 0.0, %v1300
    %v1302 = vpop.f32.mrb[0].mxu0
    %v1303 = vadd.f32 0.0, %v1302
    %1304 = vdwg.mxu0
    %1305 = vmatprep.subr.mxu0 0.0
    %1306 = vmatpush1.msra.mxu0 %v1188
    %1307 = vmatprep.subr.mxu0 0.0
    %1308 = vmatpush1.msra.mxu0 %v1191
    %1309 = vmatprep.subr.mxu0 0.0
    %1310 = vmatpush1.msra.mxu0 %v1194
    %1311 = vmatprep.subr.mxu0 0.0
    %1312 = vmatpush1.msra.mxu0 %v1197
    %1313 = vmatprep.subr.mxu0 0.0
    %1314 = vmatpush1.msra.mxu0 %v1200
    %1315 = vmatprep.subr.mxu0 0.0
    %1316 = vmatpush1.msra.mxu0 %v1203
    %1317 = vmatprep.subr.mxu0 0.0
    %1318 = vmatpush1.msra.mxu0 %v1206
    %1319 = vmatprep.subr.mxu0 0.0
    %1320 = vmatpush1.msra.mxu0 %v1209
    %1321 = vmatprep.subr.mxu0 0.0
    %1322 = vmatpush1.msra.mxu0 %v1212
    %1323 = vmatprep.subr.mxu0 0.0
    %1324 = vmatpush1.msra.mxu0 %v1215
    %1325 = vmatprep.subr.mxu0 0.0
    %1326 = vmatpush1.msra.mxu0 %v1218
    %1327 = vmatprep.subr.mxu0 0.0
    %1328 = vmatpush1.msra.mxu0 %v1221
    %1329 = vmatprep.subr.mxu0 0.0
    %1330 = vmatpush1.msra.mxu0 %v1224
    %1331 = vmatprep.subr.mxu0 0.0
    %1332 = vmatpush1.msra.mxu0 %v1227
    %1333 = vmatprep.subr.mxu0 0.0
    %1334 = vmatpush1.msra.mxu0 %v1230
    %1335 = vmatprep.subr.mxu0 0.0
    %1336 = vmatpush1.msra.mxu0 %v1233
    %1337 = vmatprep.subr.mxu0 0.0
    %1338 = vmatpush1.msra.mxu0 0.0
    %1339 = vmatprep.subr.mxu0 0.0
    %1340 = vmatpush1.msra.mxu0 0.0
    %1341 = vmatprep.subr.mxu0 0.0
    %1342 = vmatpush1.msra.mxu0 0.0
    %1343 = vmatprep.subr.mxu0 0.0
    %1344 = vmatpush1.msra.mxu0 0.0
    %1345 = vmatprep.subr.mxu0 0.0
    %1346 = vmatpush1.msra.mxu0 0.0
    %1347 = vmatprep.subr.mxu0 0.0
    %1348 = vmatpush1.msra.mxu0 0.0
    %1349 = vmatprep.subr.mxu0 0.0
    %1350 = vmatpush1.msra.mxu0 0.0
    %1351 = vmatprep.subr.mxu0 0.0
    %1352 = vmatpush1.msra.mxu0 0.0
    %1353 = vmatprep.subr.mxu0 0.0
    %1354 = vmatpush1.msra.mxu0 0.0
    %1355 = vmatprep.subr.mxu0 0.0
    %1356 = vmatpush1.msra.mxu0 0.0
    %1357 = vmatprep.subr.mxu0 0.0
    %1358 = vmatpush1.msra.mxu0 0.0
    %1359 = vmatprep.subr.mxu0 0.0
    %1360 = vmatpush1.msra.mxu0 0.0
    %1361 = vmatprep.subr.mxu0 0.0
    %1362 = vmatpush1.msra.mxu0 0.0
    %1363 = vmatprep.subr.mxu0 0.0
    %1364 = vmatpush1.msra.mxu0 0.0
    %1365 = vmatprep.subr.mxu0 0.0
    %1366 = vmatpush1.msra.mxu0 0.0
    %1367 = vmatprep.subr.mxu0 0.0
    %1368 = vmatpush1.msra.mxu0 0.0
    %1369 = vmatprep.mubr.f32.mxu0 0.0
    %1370 = vmatmul.mubr.f32.gmra.mrb[0].mxu0 %v1184
    %v1371 = vpop.f32.mrb[0].mxu0
    %v1372 = vadd.f32 0.0, %v1371
    %v1373 = vpop.f32.mrb[0].mxu0
    %1374 = vdwg.mxu0
    %s1375 = scalar_lea.vmem [#allocation3], 4
    %v1376 = vld [vmem:[%s1375] ss:$8 sm:$0x7]
    %v1377 = vadd.f32 %v1376, %v1301
    %v1378 = vxor.u32 %v1377, 2147483648
    %v1379 = vmul.f32 %v1378, 1.442695
    %v1380 = vpow.pop %v1379
    %v1381 = vadd.f32 %v1380, 1.0
    %v1382 = vrcp.pop %v1381
    %v1383 = vmul.f32 1.0, %v1382
    %v1385 = vrot.slane %v1376, 1
    %v1387 = vadd.f32 %v1385, %v1303
    %v1388 = vxor.u32 %v1387, 2147483648
    %v1389 = vmul.f32 %v1388, 1.442695
    %v1390 = vpow.pop %v1389
    %v1391 = vadd.f32 %v1390, 1.0
    %v1392 = vrcp.pop %v1391
    %v1393 = vmul.f32 1.0, %v1392
    %v1394 = vadd.f32 %v1372, %v309
    %v1395 = vmul.f32 %v1383, %v1394
    %v1396 = vrot.slane %v1376, 2
    %v1398 = vadd.f32 %v1396, %v1395
    %v1399 = vtanh.pop %v1398
    %v1400 = vsub.f32 1.0, %v1393
    %v1401 = vmul.f32 %v1400, %v1399
    %v1402 = vmul.f32 %v1393, %v1184
    %v1403 = vadd.f32 %v1401, %v1402
    %1404 = vst [vmem:[#allocation12 + $0x4] sm:$0x1] %v1403
    %v1405 = vld [vmem:[#allocation7] sm:$0xff]
    %v1406 = vld [vmem:[#allocation7 + $0x8] sm:$0xff]
    %v1407 = vld [vmem:[#allocation7 + $0x10] sm:$0xff]
    %v1408 = vld [vmem:[#allocation7 + $0x18] sm:$0xff]
    %v1409 = vld [vmem:[#allocation7 + $0x20] sm:$0xff]
    %v1410 = vld [vmem:[#allocation7 + $0x28] sm:$0xff]
    %v1411 = vld [vmem:[#allocation7 + $0x30] sm:$0xff]
    %v1412 = vld [vmem:[#allocation7 + $0x38] sm:$0xff]
    %v1413 = vld [vmem:[#allocation7 + $0x40] sm:$0xff]
    %v1414 = vld [vmem:[#allocation7 + $0x48] sm:$0xff]
    %v1415 = vld [vmem:[#allocation7 + $0x50] sm:$0xff]
    %v1416 = vld [vmem:[#allocation7 + $0x58] sm:$0xff]
    %v1417 = vld [vmem:[#allocation7 + $0x60] sm:$0xff]
    %v1418 = vld [vmem:[#allocation7 + $0x68] sm:$0xff]
    %v1419 = vld [vmem:[#allocation7 + $0x70] sm:$0xff]
    %v1420 = vld [vmem:[#allocation7 + $0x78] sm:$0xff]
    %v1421 = vld [vmem:[#allocation7 + $0x80] sm:$0xff]
    %v1422 = vld [vmem:[#allocation7 + $0x88] sm:$0xff]
    %v1423 = vld [vmem:[#allocation7 + $0x90] sm:$0xff]
    %v1424 = vld [vmem:[#allocation7 + $0x98] sm:$0xff]
    %v1425 = vld [vmem:[#allocation7 + $0xa0] sm:$0xff]
    %v1426 = vld [vmem:[#allocation7 + $0xa8] sm:$0xff]
    %v1427 = vld [vmem:[#allocation7 + $0xb0] sm:$0xff]
    %v1428 = vld [vmem:[#allocation7 + $0xb8] sm:$0xff]
    %v1429 = vld [vmem:[#allocation7 + $0xc0] sm:$0xff]
    %v1430 = vld [vmem:[#allocation7 + $0xc8] sm:$0xff]
    %v1431 = vld [vmem:[#allocation7 + $0xd0] sm:$0xff]
    %v1432 = vld [vmem:[#allocation7 + $0xd8] sm:$0xff]
    %v1433 = vld [vmem:[#allocation7 + $0xe0] sm:$0xff]
    %v1434 = vld [vmem:[#allocation7 + $0xe8] sm:$0xff]
    %v1435 = vld [vmem:[#allocation7 + $0xf0] sm:$0xff]
    %v1436 = vld [vmem:[#allocation7 + $0xf8] sm:$0xff]
    %v1437 = vld [vmem:[#allocation7 + $0x100] sm:$0xff]
    %v1438 = vld [vmem:[#allocation7 + $0x108] sm:$0xff]
    %v1439 = vld [vmem:[#allocation7 + $0x110] sm:$0xff]
    %v1440 = vld [vmem:[#allocation7 + $0x118] sm:$0xff]
    %v1441 = vld [vmem:[#allocation7 + $0x120] sm:$0xff]
    %v1442 = vld [vmem:[#allocation7 + $0x128] sm:$0xff]
    %v1443 = vld [vmem:[#allocation7 + $0x130] sm:$0xff]
    %v1444 = vld [vmem:[#allocation7 + $0x138] sm:$0xff]
    %v1445 = vld [vmem:[#allocation7 + $0x140] sm:$0xff]
    %v1446 = vld [vmem:[#allocation7 + $0x148] sm:$0xff]
    %v1447 = vld [vmem:[#allocation7 + $0x150] sm:$0xff]
    %v1448 = vld [vmem:[#allocation7 + $0x158] sm:$0xff]
    %v1449 = vld [vmem:[#allocation7 + $0x160] sm:$0xff]
    %v1450 = vld [vmem:[#allocation7 + $0x168] sm:$0xff]
    %v1451 = vld [vmem:[#allocation7 + $0x170] sm:$0xff]
    %v1452 = vld [vmem:[#allocation7 + $0x178] sm:$0xff]
    %1453 = vmatprep.subr.mxu0 %v1406
    %1454 = vmatpush1.msra.mxu0 %v1405
    %1455 = vmatprep.subr.mxu0 %v1409
    %1456 = vmatpush1.msra.mxu0 %v1408
    %1457 = vmatprep.subr.mxu0 %v1412
    %1458 = vmatpush1.msra.mxu0 %v1411
    %1459 = vmatprep.subr.mxu0 %v1415
    %1460 = vmatpush1.msra.mxu0 %v1414
    %1461 = vmatprep.subr.mxu0 %v1418
    %1462 = vmatpush1.msra.mxu0 %v1417
    %1463 = vmatprep.subr.mxu0 %v1421
    %1464 = vmatpush1.msra.mxu0 %v1420
    %1465 = vmatprep.subr.mxu0 %v1424
    %1466 = vmatpush1.msra.mxu0 %v1423
    %1467 = vmatprep.subr.mxu0 %v1427
    %1468 = vmatpush1.msra.mxu0 %v1426
    %1469 = vmatprep.subr.mxu0 %v1430
    %1470 = vmatpush1.msra.mxu0 %v1429
    %1471 = vmatprep.subr.mxu0 %v1433
    %1472 = vmatpush1.msra.mxu0 %v1432
    %1473 = vmatprep.subr.mxu0 %v1436
    %1474 = vmatpush1.msra.mxu0 %v1435
    %1475 = vmatprep.subr.mxu0 %v1439
    %1476 = vmatpush1.msra.mxu0 %v1438
    %1477 = vmatprep.subr.mxu0 %v1442
    %1478 = vmatpush1.msra.mxu0 %v1441
    %1479 = vmatprep.subr.mxu0 %v1445
    %1480 = vmatpush1.msra.mxu0 %v1444
    %1481 = vmatprep.subr.mxu0 %v1448
    %1482 = vmatpush1.msra.mxu0 %v1447
    %1483 = vmatprep.subr.mxu0 %v1451
    %1484 = vmatpush1.msra.mxu0 %v1450
    %1485 = vmatprep.subr.mxu0 0.0
    %1486 = vmatpush1.msra.mxu0 0.0
    %1487 = vmatprep.subr.mxu0 0.0
    %1488 = vmatpush1.msra.mxu0 0.0
    %1489 = vmatprep.subr.mxu0 0.0
    %1490 = vmatpush1.msra.mxu0 0.0
    %1491 = vmatprep.subr.mxu0 0.0
    %1492 = vmatpush1.msra.mxu0 0.0
    %1493 = vmatprep.subr.mxu0 0.0
    %1494 = vmatpush1.msra.mxu0 0.0
    %1495 = vmatprep.subr.mxu0 0.0
    %1496 = vmatpush1.msra.mxu0 0.0
    %1497 = vmatprep.subr.mxu0 0.0
    %1498 = vmatpush1.msra.mxu0 0.0
    %1499 = vmatprep.subr.mxu0 0.0
    %1500 = vmatpush1.msra.mxu0 0.0
    %1501 = vmatprep.subr.mxu0 0.0
    %1502 = vmatpush1.msra.mxu0 0.0
    %1503 = vmatprep.subr.mxu0 0.0
    %1504 = vmatpush1.msra.mxu0 0.0
    %1505 = vmatprep.subr.mxu0 0.0
    %1506 = vmatpush1.msra.mxu0 0.0
    %1507 = vmatprep.subr.mxu0 0.0
    %1508 = vmatpush1.msra.mxu0 0.0
    %1509 = vmatprep.subr.mxu0 0.0
    %1510 = vmatpush1.msra.mxu0 0.0
    %1511 = vmatprep.subr.mxu0 0.0
    %1512 = vmatpush1.msra.mxu0 0.0
    %1513 = vmatprep.subr.mxu0 0.0
    %1514 = vmatpush1.msra.mxu0 0.0
    %1515 = vmatprep.subr.mxu0 0.0
    %1516 = vmatpush1.msra.mxu0 0.0
    %1517 = vmatprep.mubr.f32.mxu0 0.0
    %1518 = vmatmul.mubr.f32.gmra.mrb[0].mxu0 %v1403
    %v1519 = vpop.f32.mrb[0].mxu0
    %v1520 = vadd.f32 0.0, %v1519
    %v1521 = vpop.f32.mrb[0].mxu0
    %v1522 = vadd.f32 0.0, %v1521
    %1523 = vdwg.mxu0
    %1524 = vmatprep.subr.mxu0 0.0
    %1525 = vmatpush1.msra.mxu0 %v1407
    %1526 = vmatprep.subr.mxu0 0.0
    %1527 = vmatpush1.msra.mxu0 %v1410
    %1528 = vmatprep.subr.mxu0 0.0
    %1529 = vmatpush1.msra.mxu0 %v1413
    %1530 = vmatprep.subr.mxu0 0.0
    %1531 = vmatpush1.msra.mxu0 %v1416
    %1532 = vmatprep.subr.mxu0 0.0
    %1533 = vmatpush1.msra.mxu0 %v1419
    %1534 = vmatprep.subr.mxu0 0.0
    %1535 = vmatpush1.msra.mxu0 %v1422
    %1536 = vmatprep.subr.mxu0 0.0
    %1537 = vmatpush1.msra.mxu0 %v1425
    %1538 = vmatprep.subr.mxu0 0.0
    %1539 = vmatpush1.msra.mxu0 %v1428
    %1540 = vmatprep.subr.mxu0 0.0
    %1541 = vmatpush1.msra.mxu0 %v1431
    %1542 = vmatprep.subr.mxu0 0.0
    %1543 = vmatpush1.msra.mxu0 %v1434
    %1544 = vmatprep.subr.mxu0 0.0
    %1545 = vmatpush1.msra.mxu0 %v1437
    %1546 = vmatprep.subr.mxu0 0.0
    %1547 = vmatpush1.msra.mxu0 %v1440
    %1548 = vmatprep.subr.mxu0 0.0
    %1549 = vmatpush1.msra.mxu0 %v1443
    %1550 = vmatprep.subr.mxu0 0.0
    %1551 = vmatpush1.msra.mxu0 %v1446
    %1552 = vmatprep.subr.mxu0 0.0
    %1553 = vmatpush1.msra.mxu0 %v1449
    %1554 = vmatprep.subr.mxu0 0.0
    %1555 = vmatpush1.msra.mxu0 %v1452
    %1556 = vmatprep.subr.mxu0 0.0
    %1557 = vmatpush1.msra.mxu0 0.0
    %1558 = vmatprep.subr.mxu0 0.0
    %1559 = vmatpush1.msra.mxu0 0.0
    %1560 = vmatprep.subr.mxu0 0.0
    %1561 = vmatpush1.msra.mxu0 0.0
    %1562 = vmatprep.subr.mxu0 0.0
    %1563 = vmatpush1.msra.mxu0 0.0
    %1564 = vmatprep.subr.mxu0 0.0
    %1565 = vmatpush1.msra.mxu0 0.0
    %1566 = vmatprep.subr.mxu0 0.0
    %1567 = vmatpush1.msra.mxu0 0.0
    %1568 = vmatprep.subr.mxu0 0.0
    %1569 = vmatpush1.msra.mxu0 0.0
    %1570 = vmatprep.subr.mxu0 0.0
    %1571 = vmatpush1.msra.mxu0 0.0
    %1572 = vmatprep.subr.mxu0 0.0
    %1573 = vmatpush1.msra.mxu0 0.0
    %1574 = vmatprep.subr.mxu0 0.0
    %1575 = vmatpush1.msra.mxu0 0.0
    %1576 = vmatprep.subr.mxu0 0.0
    %1577 = vmatpush1.msra.mxu0 0.0
    %1578 = vmatprep.subr.mxu0 0.0
    %1579 = vmatpush1.msra.mxu0 0.0
    %1580 = vmatprep.subr.mxu0 0.0
    %1581 = vmatpush1.msra.mxu0 0.0
    %1582 = vmatprep.subr.mxu0 0.0
    %1583 = vmatpush1.msra.mxu0 0.0
    %1584 = vmatprep.subr.mxu0 0.0
    %1585 = vmatpush1.msra.mxu0 0.0
    %1586 = vmatprep.subr.mxu0 0.0
    %1587 = vmatpush1.msra.mxu0 0.0
    %1588 = vmatprep.mubr.f32.mxu0 0.0
    %1589 = vmatmul.mubr.f32.gmra.mrb[0].mxu0 %v1403
    %v1590 = vpop.f32.mrb[0].mxu0
    %v1591 = vadd.f32 0.0, %v1590
    %v1592 = vpop.f32.mrb[0].mxu0
    %1593 = vdwg.mxu0
    %s1594 = scalar_lea.vmem [#allocation3], 5
    %v1595 = vld [vmem:[%s1594] ss:$8 sm:$0x7]
    %v1596 = vadd.f32 %v1595, %v1520
    %v1597 = vxor.u32 %v1596, 2147483648
    %v1598 = vmul.f32 %v1597, 1.442695
    %v1599 = vpow.pop %v1598
    %v1600 = vadd.f32 %v1599, 1.0
    %v1601 = vrcp.pop %v1600
    %v1602 = vmul.f32 1.0, %v1601
    %v1604 = vrot.slane %v1595, 1
    %v1606 = vadd.f32 %v1604, %v1522
    %v1607 = vxor.u32 %v1606, 2147483648
    %v1608 = vmul.f32 %v1607, 1.442695
    %v1609 = vpow.pop %v1608
    %v1610 = vadd.f32 %v1609, 1.0
    %v1611 = vrcp.pop %v1610
    %v1612 = vmul.f32 1.0, %v1611
    %v1613 = vadd.f32 %v1591, %v309
    %v1614 = vmul.f32 %v1602, %v1613
    %v1615 = vrot.slane %v1595, 2
    %v1617 = vadd.f32 %v1615, %v1614
    %v1618 = vtanh.pop %v1617
    %v1619 = vsub.f32 1.0, %v1612
    %v1620 = vmul.f32 %v1619, %v1618
    %v1621 = vmul.f32 %v1612, %v1403
    %v1622 = vadd.f32 %v1620, %v1621
    %1623 = vst [vmem:[#allocation12 + $0x5] sm:$0x1] %v1622
    %v1624 = vld [vmem:[#allocation7] sm:$0xff]
    %v1625 = vld [vmem:[#allocation7 + $0x8] sm:$0xff]
    %v1626 = vld [vmem:[#allocation7 + $0x10] sm:$0xff]
    %v1627 = vld [vmem:[#allocation7 + $0x18] sm:$0xff]
    %v1628 = vld [vmem:[#allocation7 + $0x20] sm:$0xff]
    %v1629 = vld [vmem:[#allocation7 + $0x28] sm:$0xff]
    %v1630 = vld [vmem:[#allocation7 + $0x30] sm:$0xff]
    %v1631 = vld [vmem:[#allocation7 + $0x38] sm:$0xff]
    %v1632 = vld [vmem:[#allocation7 + $0x40] sm:$0xff]
    %v1633 = vld [vmem:[#allocation7 + $0x48] sm:$0xff]
    %v1634 = vld [vmem:[#allocation7 + $0x50] sm:$0xff]
    %v1635 = vld [vmem:[#allocation7 + $0x58] sm:$0xff]
    %v1636 = vld [vmem:[#allocation7 + $0x60] sm:$0xff]
    %v1637 = vld [vmem:[#allocation7 + $0x68] sm:$0xff]
    %v1638 = vld [vmem:[#allocation7 + $0x70] sm:$0xff]
    %v1639 = vld [vmem:[#allocation7 + $0x78] sm:$0xff]
    %v1640 = vld [vmem:[#allocation7 + $0x80] sm:$0xff]
    %v1641 = vld [vmem:[#allocation7 + $0x88] sm:$0xff]
    %v1642 = vld [vmem:[#allocation7 + $0x90] sm:$0xff]
    %v1643 = vld [vmem:[#allocation7 + $0x98] sm:$0xff]
    %v1644 = vld [vmem:[#allocation7 + $0xa0] sm:$0xff]
    %v1645 = vld [vmem:[#allocation7 + $0xa8] sm:$0xff]
    %v1646 = vld [vmem:[#allocation7 + $0xb0] sm:$0xff]
    %v1647 = vld [vmem:[#allocation7 + $0xb8] sm:$0xff]
    %v1648 = vld [vmem:[#allocation7 + $0xc0] sm:$0xff]
    %v1649 = vld [vmem:[#allocation7 + $0xc8] sm:$0xff]
    %v1650 = vld [vmem:[#allocation7 + $0xd0] sm:$0xff]
    %v1651 = vld [vmem:[#allocation7 + $0xd8] sm:$0xff]
    %v1652 = vld [vmem:[#allocation7 + $0xe0] sm:$0xff]
    %v1653 = vld [vmem:[#allocation7 + $0xe8] sm:$0xff]
    %v1654 = vld [vmem:[#allocation7 + $0xf0] sm:$0xff]
    %v1655 = vld [vmem:[#allocation7 + $0xf8] sm:$0xff]
    %v1656 = vld [vmem:[#allocation7 + $0x100] sm:$0xff]
    %v1657 = vld [vmem:[#allocation7 + $0x108] sm:$0xff]
    %v1658 = vld [vmem:[#allocation7 + $0x110] sm:$0xff]
    %v1659 = vld [vmem:[#allocation7 + $0x118] sm:$0xff]
    %v1660 = vld [vmem:[#allocation7 + $0x120] sm:$0xff]
    %v1661 = vld [vmem:[#allocation7 + $0x128] sm:$0xff]
    %v1662 = vld [vmem:[#allocation7 + $0x130] sm:$0xff]
    %v1663 = vld [vmem:[#allocation7 + $0x138] sm:$0xff]
    %v1664 = vld [vmem:[#allocation7 + $0x140] sm:$0xff]
    %v1665 = vld [vmem:[#allocation7 + $0x148] sm:$0xff]
    %v1666 = vld [vmem:[#allocation7 + $0x150] sm:$0xff]
    %v1667 = vld [vmem:[#allocation7 + $0x158] sm:$0xff]
    %v1668 = vld [vmem:[#allocation7 + $0x160] sm:$0xff]
    %v1669 = vld [vmem:[#allocation7 + $0x168] sm:$0xff]
    %v1670 = vld [vmem:[#allocation7 + $0x170] sm:$0xff]
    %v1671 = vld [vmem:[#allocation7 + $0x178] sm:$0xff]
    %1672 = vmatprep.subr.mxu0 %v1625
    %1673 = vmatpush1.msra.mxu0 %v1624
    %1674 = vmatprep.subr.mxu0 %v1628
    %1675 = vmatpush1.msra.mxu0 %v1627
    %1676 = vmatprep.subr.mxu0 %v1631
    %1677 = vmatpush1.msra.mxu0 %v1630
    %1678 = vmatprep.subr.mxu0 %v1634
    %1679 = vmatpush1.msra.mxu0 %v1633
    %1680 = vmatprep.subr.mxu0 %v1637
    %1681 = vmatpush1.msra.mxu0 %v1636
    %1682 = vmatprep.subr.mxu0 %v1640
    %1683 = vmatpush1.msra.mxu0 %v1639
    %1684 = vmatprep.subr.mxu0 %v1643
    %1685 = vmatpush1.msra.mxu0 %v1642
    %1686 = vmatprep.subr.mxu0 %v1646
    %1687 = vmatpush1.msra.mxu0 %v1645
    %1688 = vmatprep.subr.mxu0 %v1649
    %1689 = vmatpush1.msra.mxu0 %v1648
    %1690 = vmatprep.subr.mxu0 %v1652
    %1691 = vmatpush1.msra.mxu0 %v1651
    %1692 = vmatprep.subr.mxu0 %v1655
    %1693 = vmatpush1.msra.mxu0 %v1654
    %1694 = vmatprep.subr.mxu0 %v1658
    %1695 = vmatpush1.msra.mxu0 %v1657
    %1696 = vmatprep.subr.mxu0 %v1661
    %1697 = vmatpush1.msra.mxu0 %v1660
    %1698 = vmatprep.subr.mxu0 %v1664
    %1699 = vmatpush1.msra.mxu0 %v1663
    %1700 = vmatprep.subr.mxu0 %v1667
    %1701 = vmatpush1.msra.mxu0 %v1666
    %1702 = vmatprep.subr.mxu0 %v1670
    %1703 = vmatpush1.msra.mxu0 %v1669
    %1704 = vmatprep.subr.mxu0 0.0
    %1705 = vmatpush1.msra.mxu0 0.0
    %1706 = vmatprep.subr.mxu0 0.0
    %1707 = vmatpush1.msra.mxu0 0.0
    %1708 = vmatprep.subr.mxu0 0.0
    %1709 = vmatpush1.msra.mxu0 0.0
    %1710 = vmatprep.subr.mxu0 0.0
    %1711 = vmatpush1.msra.mxu0 0.0
    %1712 = vmatprep.subr.mxu0 0.0
    %1713 = vmatpush1.msra.mxu0 0.0
    %1714 = vmatprep.subr.mxu0 0.0
    %1715 = vmatpush1.msra.mxu0 0.0
    %1716 = vmatprep.subr.mxu0 0.0
    %1717 = vmatpush1.msra.mxu0 0.0
    %1718 = vmatprep.subr.mxu0 0.0
    %1719 = vmatpush1.msra.mxu0 0.0
    %1720 = vmatprep.subr.mxu0 0.0
    %1721 = vmatpush1.msra.mxu0 0.0
    %1722 = vmatprep.subr.mxu0 0.0
    %1723 = vmatpush1.msra.mxu0 0.0
    %1724 = vmatprep.subr.mxu0 0.0
    %1725 = vmatpush1.msra.mxu0 0.0
    %1726 = vmatprep.subr.mxu0 0.0
    %1727 = vmatpush1.msra.mxu0 0.0
    %1728 = vmatprep.subr.mxu0 0.0
    %1729 = vmatpush1.msra.mxu0 0.0
    %1730 = vmatprep.subr.mxu0 0.0
    %1731 = vmatpush1.msra.mxu0 0.0
    %1732 = vmatprep.subr.mxu0 0.0
    %1733 = vmatpush1.msra.mxu0 0.0
    %1734 = vmatprep.subr.mxu0 0.0
    %1735 = vmatpush1.msra.mxu0 0.0
    %1736 = vmatprep.mubr.f32.mxu0 0.0
    %1737 = vmatmul.mubr.f32.gmra.mrb[0].mxu0 %v1622
    %v1738 = vpop.f32.mrb[0].mxu0
    %v1739 = vadd.f32 0.0, %v1738
    %v1740 = vpop.f32.mrb[0].mxu0
    %v1741 = vadd.f32 0.0, %v1740
    %1742 = vdwg.mxu0
    %1743 = vmatprep.subr.mxu0 0.0
    %1744 = vmatpush1.msra.mxu0 %v1626
    %1745 = vmatprep.subr.mxu0 0.0
    %1746 = vmatpush1.msra.mxu0 %v1629
    %1747 = vmatprep.subr.mxu0 0.0
    %1748 = vmatpush1.msra.mxu0 %v1632
    %1749 = vmatprep.subr.mxu0 0.0
    %1750 = vmatpush1.msra.mxu0 %v1635
    %1751 = vmatprep.subr.mxu0 0.0
    %1752 = vmatpush1.msra.mxu0 %v1638
    %1753 = vmatprep.subr.mxu0 0.0
    %1754 = vmatpush1.msra.mxu0 %v1641
    %1755 = vmatprep.subr.mxu0 0.0
    %1756 = vmatpush1.msra.mxu0 %v1644
    %1757 = vmatprep.subr.mxu0 0.0
    %1758 = vmatpush1.msra.mxu0 %v1647
    %1759 = vmatprep.subr.mxu0 0.0
    %1760 = vmatpush1.msra.mxu0 %v1650
    %1761 = vmatprep.subr.mxu0 0.0
    %1762 = vmatpush1.msra.mxu0 %v1653
    %1763 = vmatprep.subr.mxu0 0.0
    %1764 = vmatpush1.msra.mxu0 %v1656
    %1765 = vmatprep.subr.mxu0 0.0
    %1766 = vmatpush1.msra.mxu0 %v1659
    %1767 = vmatprep.subr.mxu0 0.0
    %1768 = vmatpush1.msra.mxu0 %v1662
    %1769 = vmatprep.subr.mxu0 0.0
    %1770 = vmatpush1.msra.mxu0 %v1665
    %1771 = vmatprep.subr.mxu0 0.0
    %1772 = vmatpush1.msra.mxu0 %v1668
    %1773 = vmatprep.subr.mxu0 0.0
    %1774 = vmatpush1.msra.mxu0 %v1671
    %1775 = vmatprep.subr.mxu0 0.0
    %1776 = vmatpush1.msra.mxu0 0.0
    %1777 = vmatprep.subr.mxu0 0.0
    %1778 = vmatpush1.msra.mxu0 0.0
    %1779 = vmatprep.subr.mxu0 0.0
    %1780 = vmatpush1.msra.mxu0 0.0
    %1781 = vmatprep.subr.mxu0 0.0
    %1782 = vmatpush1.msra.mxu0 0.0
    %1783 = vmatprep.subr.mxu0 0.0
    %1784 = vmatpush1.msra.mxu0 0.0
    %1785 = vmatprep.subr.mxu0 0.0
    %1786 = vmatpush1.msra.mxu0 0.0
    %1787 = vmatprep.subr.mxu0 0.0
    %1788 = vmatpush1.msra.mxu0 0.0
    %1789 = vmatprep.subr.mxu0 0.0
    %1790 = vmatpush1.msra.mxu0 0.0
    %1791 = vmatprep.subr.mxu0 0.0
    %1792 = vmatpush1.msra.mxu0 0.0
    %1793 = vmatprep.subr.mxu0 0.0
    %1794 = vmatpush1.msra.mxu0 0.0
    %1795 = vmatprep.subr.mxu0 0.0
    %1796 = vmatpush1.msra.mxu0 0.0
    %1797 = vmatprep.subr.mxu0 0.0
    %1798 = vmatpush1.msra.mxu0 0.0
    %1799 = vmatprep.subr.mxu0 0.0
    %1800 = vmatpush1.msra.mxu0 0.0
    %1801 = vmatprep.subr.mxu0 0.0
    %1802 = vmatpush1.msra.mxu0 0.0
    %1803 = vmatprep.subr.mxu0 0.0
    %1804 = vmatpush1.msra.mxu0 0.0
    %1805 = vmatprep.subr.mxu0 0.0
    %1806 = vmatpush1.msra.mxu0 0.0
    %1807 = vmatprep.mubr.f32.mxu0 0.0
    %1808 = vmatmul.mubr.f32.gmra.mrb[0].mxu0 %v1622
    %v1809 = vpop.f32.mrb[0].mxu0
    %v1810 = vadd.f32 0.0, %v1809
    %v1811 = vpop.f32.mrb[0].mxu0
    %1812 = vdwg.mxu0
    %s1813 = scalar_lea.vmem [#allocation3], 6
    %v1814 = vld [vmem:[%s1813] ss:$8 sm:$0x7]
    %v1815 = vadd.f32 %v1814, %v1739
    %v1816 = vxor.u32 %v1815, 2147483648
    %v1817 = vmul.f32 %v1816, 1.442695
    %v1818 = vpow.pop %v1817
    %v1819 = vadd.f32 %v1818, 1.0
    %v1820 = vrcp.pop %v1819
    %v1821 = vmul.f32 1.0, %v1820
    %v1823 = vrot.slane %v1814, 1
    %v1825 = vadd.f32 %v1823, %v1741
    %v1826 = vxor.u32 %v1825, 2147483648
    %v1827 = vmul.f32 %v1826, 1.442695
    %v1828 = vpow.pop %v1827
    %v1829 = vadd.f32 %v1828, 1.0
    %v1830 = vrcp.pop %v1829
    %v1831 = vmul.f32 1.0, %v1830
    %v1832 = vadd.f32 %v1810, %v309
    %v1833 = vmul.f32 %v1821, %v1832
    %v1834 = vrot.slane %v1814, 2
    %v1836 = vadd.f32 %v1834, %v1833
    %v1837 = vtanh.pop %v1836
    %v1838 = vsub.f32 1.0, %v1831
    %v1839 = vmul.f32 %v1838, %v1837
    %v1840 = vmul.f32 %v1831, %v1622
    %v1841 = vadd.f32 %v1839, %v1840
    %1842 = vst [vmem:[#allocation12 + $0x6] sm:$0x1] %v1841
    %v1843 = vld [vmem:[#allocation7] sm:$0xff]
    %v1844 = vld [vmem:[#allocation7 + $0x8] sm:$0xff]
    %v1845 = vld [vmem:[#allocation7 + $0x10] sm:$0xff]
    %v1846 = vld [vmem:[#allocation7 + $0x18] sm:$0xff]
    %v1847 = vld [vmem:[#allocation7 + $0x20] sm:$0xff]
    %v1848 = vld [vmem:[#allocation7 + $0x28] sm:$0xff]
    %v1849 = vld [vmem:[#allocation7 + $0x30] sm:$0xff]
    %v1850 = vld [vmem:[#allocation7 + $0x38] sm:$0xff]
    %v1851 = vld [vmem:[#allocation7 + $0x40] sm:$0xff]
    %v1852 = vld [vmem:[#allocation7 + $0x48] sm:$0xff]
    %v1853 = vld [vmem:[#allocation7 + $0x50] sm:$0xff]
    %v1854 = vld [vmem:[#allocation7 + $0x58] sm:$0xff]
    %v1855 = vld [vmem:[#allocation7 + $0x60] sm:$0xff]
    %v1856 = vld [vmem:[#allocation7 + $0x68] sm:$0xff]
    %v1857 = vld [vmem:[#allocation7 + $0x70] sm:$0xff]
    %v1858 = vld [vmem:[#allocation7 + $0x78] sm:$0xff]
    %v1859 = vld [vmem:[#allocation7 + $0x80] sm:$0xff]
    %v1860 = vld [vmem:[#allocation7 + $0x88] sm:$0xff]
    %v1861 = vld [vmem:[#allocation7 + $0x90] sm:$0xff]
    %v1862 = vld [vmem:[#allocation7 + $0x98] sm:$0xff]
    %v1863 = vld [vmem:[#allocation7 + $0xa0] sm:$0xff]
    %v1864 = vld [vmem:[#allocation7 + $0xa8] sm:$0xff]
    %v1865 = vld [vmem:[#allocation7 + $0xb0] sm:$0xff]
    %v1866 = vld [vmem:[#allocation7 + $0xb8] sm:$0xff]
    %v1867 = vld [vmem:[#allocation7 + $0xc0] sm:$0xff]
    %v1868 = vld [vmem:[#allocation7 + $0xc8] sm:$0xff]
    %v1869 = vld [vmem:[#allocation7 + $0xd0] sm:$0xff]
    %v1870 = vld [vmem:[#allocation7 + $0xd8] sm:$0xff]
    %v1871 = vld [vmem:[#allocation7 + $0xe0] sm:$0xff]
    %v1872 = vld [vmem:[#allocation7 + $0xe8] sm:$0xff]
    %v1873 = vld [vmem:[#allocation7 + $0xf0] sm:$0xff]
    %v1874 = vld [vmem:[#allocation7 + $0xf8] sm:$0xff]
    %v1875 = vld [vmem:[#allocation7 + $0x100] sm:$0xff]
    %v1876 = vld [vmem:[#allocation7 + $0x108] sm:$0xff]
    %v1877 = vld [vmem:[#allocation7 + $0x110] sm:$0xff]
    %v1878 = vld [vmem:[#allocation7 + $0x118] sm:$0xff]
    %v1879 = vld [vmem:[#allocation7 + $0x120] sm:$0xff]
    %v1880 = vld [vmem:[#allocation7 + $0x128] sm:$0xff]
    %v1881 = vld [vmem:[#allocation7 + $0x130] sm:$0xff]
    %v1882 = vld [vmem:[#allocation7 + $0x138] sm:$0xff]
    %v1883 = vld [vmem:[#allocation7 + $0x140] sm:$0xff]
    %v1884 = vld [vmem:[#allocation7 + $0x148] sm:$0xff]
    %v1885 = vld [vmem:[#allocation7 + $0x150] sm:$0xff]
    %v1886 = vld [vmem:[#allocation7 + $0x158] sm:$0xff]
    %v1887 = vld [vmem:[#allocation7 + $0x160] sm:$0xff]
    %v1888 = vld [vmem:[#allocation7 + $0x168] sm:$0xff]
    %v1889 = vld [vmem:[#allocation7 + $0x170] sm:$0xff]
    %v1890 = vld [vmem:[#allocation7 + $0x178] sm:$0xff]
    %1891 = vmatprep.subr.mxu0 %v1844
    %1892 = vmatpush1.msra.mxu0 %v1843
    %1893 = vmatprep.subr.mxu0 %v1847
    %1894 = vmatpush1.msra.mxu0 %v1846
    %1895 = vmatprep.subr.mxu0 %v1850
    %1896 = vmatpush1.msra.mxu0 %v1849
    %1897 = vmatprep.subr.mxu0 %v1853
    %1898 = vmatpush1.msra.mxu0 %v1852
    %1899 = vmatprep.subr.mxu0 %v1856
    %1900 = vmatpush1.msra.mxu0 %v1855
    %1901 = vmatprep.subr.mxu0 %v1859
    %1902 = vmatpush1.msra.mxu0 %v1858
    %1903 = vmatprep.subr.mxu0 %v1862
    %1904 = vmatpush1.msra.mxu0 %v1861
    %1905 = vmatprep.subr.mxu0 %v1865
    %1906 = vmatpush1.msra.mxu0 %v1864
    %1907 = vmatprep.subr.mxu0 %v1868
    %1908 = vmatpush1.msra.mxu0 %v1867
    %1909 = vmatprep.subr.mxu0 %v1871
    %1910 = vmatpush1.msra.mxu0 %v1870
    %1911 = vmatprep.subr.mxu0 %v1874
    %1912 = vmatpush1.msra.mxu0 %v1873
    %1913 = vmatprep.subr.mxu0 %v1877
    %1914 = vmatpush1.msra.mxu0 %v1876
    %1915 = vmatprep.subr.mxu0 %v1880
    %1916 = vmatpush1.msra.mxu0 %v1879
    %1917 = vmatprep.subr.mxu0 %v1883
    %1918 = vmatpush1.msra.mxu0 %v1882
    %1919 = vmatprep.subr.mxu0 %v1886
    %1920 = vmatpush1.msra.mxu0 %v1885
    %1921 = vmatprep.subr.mxu0 %v1889
    %1922 = vmatpush1.msra.mxu0 %v1888
    %1923 = vmatprep.subr.mxu0 0.0
    %1924 = vmatpush1.msra.mxu0 0.0
    %1925 = vmatprep.subr.mxu0 0.0
    %1926 = vmatpush1.msra.mxu0 0.0
    %1927 = vmatprep.subr.mxu0 0.0
    %1928 = vmatpush1.msra.mxu0 0.0
    %1929 = vmatprep.subr.mxu0 0.0
    %1930 = vmatpush1.msra.mxu0 0.0
    %1931 = vmatprep.subr.mxu0 0.0
    %1932 = vmatpush1.msra.mxu0 0.0
    %1933 = vmatprep.subr.mxu0 0.0
    %1934 = vmatpush1.msra.mxu0 0.0
    %1935 = vmatprep.subr.mxu0 0.0
    %1936 = vmatpush1.msra.mxu0 0.0
    %1937 = vmatprep.subr.mxu0 0.0
    %1938 = vmatpush1.msra.mxu0 0.0
    %1939 = vmatprep.subr.mxu0 0.0
    %1940 = vmatpush1.msra.mxu0 0.0
    %1941 = vmatprep.subr.mxu0 0.0
    %1942 = vmatpush1.msra.mxu0 0.0
    %1943 = vmatprep.subr.mxu0 0.0
    %1944 = vmatpush1.msra.mxu0 0.0
    %1945 = vmatprep.subr.mxu0 0.0
    %1946 = vmatpush1.msra.mxu0 0.0
    %1947 = vmatprep.subr.mxu0 0.0
    %1948 = vmatpush1.msra.mxu0 0.0
    %1949 = vmatprep.subr.mxu0 0.0
    %1950 = vmatpush1.msra.mxu0 0.0
    %1951 = vmatprep.subr.mxu0 0.0
    %1952 = vmatpush1.msra.mxu0 0.0
    %1953 = vmatprep.subr.mxu0 0.0
    %1954 = vmatpush1.msra.mxu0 0.0
    %1955 = vmatprep.mubr.f32.mxu0 0.0
    %1956 = vmatmul.mubr.f32.gmra.mrb[0].mxu0 %v1841
    %v1957 = vpop.f32.mrb[0].mxu0
    %v1958 = vadd.f32 0.0, %v1957
    %v1959 = vpop.f32.mrb[0].mxu0
    %v1960 = vadd.f32 0.0, %v1959
    %1961 = vdwg.mxu0
    %1962 = vmatprep.subr.mxu0 0.0
    %1963 = vmatpush1.msra.mxu0 %v1845
    %1964 = vmatprep.subr.mxu0 0.0
    %1965 = vmatpush1.msra.mxu0 %v1848
    %1966 = vmatprep.subr.mxu0 0.0
    %1967 = vmatpush1.msra.mxu0 %v1851
    %1968 = vmatprep.subr.mxu0 0.0
    %1969 = vmatpush1.msra.mxu0 %v1854
    %1970 = vmatprep.subr.mxu0 0.0
    %1971 = vmatpush1.msra.mxu0 %v1857
    %1972 = vmatprep.subr.mxu0 0.0
    %1973 = vmatpush1.msra.mxu0 %v1860
    %1974 = vmatprep.subr.mxu0 0.0
    %1975 = vmatpush1.msra.mxu0 %v1863
    %1976 = vmatprep.subr.mxu0 0.0
    %1977 = vmatpush1.msra.mxu0 %v1866
    %1978 = vmatprep.subr.mxu0 0.0
    %1979 = vmatpush1.msra.mxu0 %v1869
    %1980 = vmatprep.subr.mxu0 0.0
    %1981 = vmatpush1.msra.mxu0 %v1872
    %1982 = vmatprep.subr.mxu0 0.0
    %1983 = vmatpush1.msra.mxu0 %v1875
    %1984 = vmatprep.subr.mxu0 0.0
    %1985 = vmatpush1.msra.mxu0 %v1878
    %1986 = vmatprep.subr.mxu0 0.0
    %1987 = vmatpush1.msra.mxu0 %v1881
    %1988 = vmatprep.subr.mxu0 0.0
    %1989 = vmatpush1.msra.mxu0 %v1884
    %1990 = vmatprep.subr.mxu0 0.0
    %1991 = vmatpush1.msra.mxu0 %v1887
    %1992 = vmatprep.subr.mxu0 0.0
    %1993 = vmatpush1.msra.mxu0 %v1890
    %1994 = vmatprep.subr.mxu0 0.0
    %1995 = vmatpush1.msra.mxu0 0.0
    %1996 = vmatprep.subr.mxu0 0.0
    %1997 = vmatpush1.msra.mxu0 0.0
    %1998 = vmatprep.subr.mxu0 0.0
    %1999 = vmatpush1.msra.mxu0 0.0
    %2000 = vmatprep.subr.mxu0 0.0
    %2001 = vmatpush1.msra.mxu0 0.0
    %2002 = vmatprep.subr.mxu0 0.0
    %2003 = vmatpush1.msra.mxu0 0.0
    %2004 = vmatprep.subr.mxu0 0.0
    %2005 = vmatpush1.msra.mxu0 0.0
    %2006 = vmatprep.subr.mxu0 0.0
    %2007 = vmatpush1.msra.mxu0 0.0
    %2008 = vmatprep.subr.mxu0 0.0
    %2009 = vmatpush1.msra.mxu0 0.0
    %2010 = vmatprep.subr.mxu0 0.0
    %2011 = vmatpush1.msra.mxu0 0.0
    %2012 = vmatprep.subr.mxu0 0.0
    %2013 = vmatpush1.msra.mxu0 0.0
    %2014 = vmatprep.subr.mxu0 0.0
    %2015 = vmatpush1.msra.mxu0 0.0
    %2016 = vmatprep.subr.mxu0 0.0
    %2017 = vmatpush1.msra.mxu0 0.0
    %2018 = vmatprep.subr.mxu0 0.0
    %2019 = vmatpush1.msra.mxu0 0.0
    %2020 = vmatprep.subr.mxu0 0.0
    %2021 = vmatpush1.msra.mxu0 0.0
    %2022 = vmatprep.subr.mxu0 0.0
    %2023 = vmatpush1.msra.mxu0 0.0
    %2024 = vmatprep.subr.mxu0 0.0
    %2025 = vmatpush1.msra.mxu0 0.0
    %2026 = vmatprep.mubr.f32.mxu0 0.0
    %2027 = vmatmul.mubr.f32.gmra.mrb[0].mxu0 %v1841
    %v2028 = vpop.f32.mrb[0].mxu0
    %v2029 = vadd.f32 0.0, %v2028
    %v2030 = vpop.f32.mrb[0].mxu0
    %2031 = vdwg.mxu0
    %s2032 = scalar_lea.vmem [#allocation3], 7
    %v2033 = vld [vmem:[%s2032] ss:$8 sm:$0x7]
    %v2034 = vadd.f32 %v2033, %v1958
    %v2035 = vxor.u32 %v2034, 2147483648
    %v2036 = vmul.f32 %v2035, 1.442695
    %v2037 = vpow.pop %v2036
    %v2038 = vadd.f32 %v2037, 1.0
    %v2039 = vrcp.pop %v2038
    %v2040 = vmul.f32 1.0, %v2039
    %v2042 = vrot.slane %v2033, 1
    %v2044 = vadd.f32 %v2042, %v1960
    %v2045 = vxor.u32 %v2044, 2147483648
    %v2046 = vmul.f32 %v2045, 1.442695
    %v2047 = vpow.pop %v2046
    %v2048 = vadd.f32 %v2047, 1.0
    %v2049 = vrcp.pop %v2048
    %v2050 = vmul.f32 1.0, %v2049
    %v2051 = vadd.f32 %v2029, %v309
    %v2052 = vmul.f32 %v2040, %v2051
    %v2053 = vrot.slane %v2033, 2
    %v2055 = vadd.f32 %v2053, %v2052
    %v2056 = vtanh.pop %v2055
    %v2057 = vsub.f32 1.0, %v2050
    %v2058 = vmul.f32 %v2057, %v2056
    %v2059 = vmul.f32 %v2050, %v1841
    %v2060 = vadd.f32 %v2058, %v2059
    %2061 = vst [vmem:[#allocation12 + $0x7] sm:$0x1] %v2060
    %2062 = vst [vmem:[#allocation2] sm:$0x1] %v2060
    %v2063 = vld [vmem:[#allocation12] sm:$0xff]
    %v2064 = vld [vmem:[#allocation9] sm:$0xff]
    %v2065 = vld [vmem:[#allocation9 + $0x8] sm:$0xff]
    %v2066 = vld [vmem:[#allocation9 + $0x10] sm:$0xff]
    %v2067 = vld [vmem:[#allocation9 + $0x18] sm:$0xff]
    %v2068 = vld [vmem:[#allocation9 + $0x20] sm:$0xff]
    %v2069 = vld [vmem:[#allocation9 + $0x28] sm:$0xff]
    %v2070 = vld [vmem:[#allocation9 + $0x30] sm:$0xff]
    %v2071 = vld [vmem:[#allocation9 + $0x38] sm:$0xff]
    %v2072 = vld [vmem:[#allocation9 + $0x40] sm:$0xff]
    %v2073 = vld [vmem:[#allocation9 + $0x48] sm:$0xff]
    %v2074 = vld [vmem:[#allocation9 + $0x50] sm:$0xff]
    %v2075 = vld [vmem:[#allocation9 + $0x58] sm:$0xff]
    %v2076 = vld [vmem:[#allocation9 + $0x60] sm:$0xff]
    %v2077 = vld [vmem:[#allocation9 + $0x68] sm:$0xff]
    %v2078 = vld [vmem:[#allocation9 + $0x70] sm:$0xff]
    %v2079 = vld [vmem:[#allocation9 + $0x78] sm:$0xff]
    %v2080 = vld [vmem:[%s7] sm:$0x1]
    %v2081 = vlaneseq
    %v2082 = vshrl.u32 %v2081, 7
    %v2083 = vsub.s32 0, %v2082
    %v2084 = vrot.slane %v2080, %v2083
    %2085 = vmatprep.subr.mxu0 0.0
    %2086 = vmatpush1.msra.mxu0 %v2064
    %2087 = vmatprep.subr.mxu0 0.0
    %2088 = vmatpush1.msra.mxu0 %v2065
    %2089 = vmatprep.subr.mxu0 0.0
    %2090 = vmatpush1.msra.mxu0 %v2066
    %2091 = vmatprep.subr.mxu0 0.0
    %2092 = vmatpush1.msra.mxu0 %v2067
    %2093 = vmatprep.subr.mxu0 0.0
    %2094 = vmatpush1.msra.mxu0 %v2068
    %2095 = vmatprep.subr.mxu0 0.0
    %2096 = vmatpush1.msra.mxu0 %v2069
    %2097 = vmatprep.subr.mxu0 0.0
    %2098 = vmatpush1.msra.mxu0 %v2070
    %2099 = vmatprep.subr.mxu0 0.0
    %2100 = vmatpush1.msra.mxu0 %v2071
    %2101 = vmatprep.subr.mxu0 0.0
    %2102 = vmatpush1.msra.mxu0 %v2072
    %2103 = vmatprep.subr.mxu0 0.0
    %2104 = vmatpush1.msra.mxu0 %v2073
    %2105 = vmatprep.subr.mxu0 0.0
    %2106 = vmatpush1.msra.mxu0 %v2074
    %2107 = vmatprep.subr.mxu0 0.0
    %2108 = vmatpush1.msra.mxu0 %v2075
    %2109 = vmatprep.subr.mxu0 0.0
    %2110 = vmatpush1.msra.mxu0 %v2076
    %2111 = vmatprep.subr.mxu0 0.0
    %2112 = vmatpush1.msra.mxu0 %v2077
    %2113 = vmatprep.subr.mxu0 0.0
    %2114 = vmatpush1.msra.mxu0 %v2078
    %2115 = vmatprep.subr.mxu0 0.0
    %2116 = vmatpush1.msra.mxu0 %v2079
    %2117 = vmatprep.subr.mxu0 0.0
    %2118 = vmatpush1.msra.mxu0 0.0
    %2119 = vmatprep.subr.mxu0 0.0
    %2120 = vmatpush1.msra.mxu0 0.0
    %2121 = vmatprep.subr.mxu0 0.0
    %2122 = vmatpush1.msra.mxu0 0.0
    %2123 = vmatprep.subr.mxu0 0.0
    %2124 = vmatpush1.msra.mxu0 0.0
    %2125 = vmatprep.subr.mxu0 0.0
    %2126 = vmatpush1.msra.mxu0 0.0
    %2127 = vmatprep.subr.mxu0 0.0
    %2128 = vmatpush1.msra.mxu0 0.0
    %2129 = vmatprep.subr.mxu0 0.0
    %2130 = vmatpush1.msra.mxu0 0.0
    %2131 = vmatprep.subr.mxu0 0.0
    %2132 = vmatpush1.msra.mxu0 0.0
    %2133 = vmatprep.subr.mxu0 0.0
    %2134 = vmatpush1.msra.mxu0 0.0
    %2135 = vmatprep.subr.mxu0 0.0
    %2136 = vmatpush1.msra.mxu0 0.0
    %2137 = vmatprep.subr.mxu0 0.0
    %2138 = vmatpush1.msra.mxu0 0.0
    %2139 = vmatprep.subr.mxu0 0.0
    %2140 = vmatpush1.msra.mxu0 0.0
    %2141 = vmatprep.subr.mxu0 0.0
    %2142 = vmatpush1.msra.mxu0 0.0
    %2143 = vmatprep.subr.mxu0 0.0
    %2144 = vmatpush1.msra.mxu0 0.0
    %2145 = vmatprep.subr.mxu0 0.0
    %2146 = vmatpush1.msra.mxu0 0.0
    %2147 = vmatprep.subr.mxu0 0.0
    %2148 = vmatpush1.msra.mxu0 0.0
    %2149 = vmatprep.mubr.f32.mxu0 0.0
    %2150 = vmatmul.mubr.f32.gmra.mrb[0].mxu0 %v2063
    %v2151 = vpop.f32.mrb[0].mxu0
    %v2152 = vadd.f32 %v2084, %v2151
    %v2153 = vpop.f32.mrb[0].mxu0
    %2154 = vdwg.mxu0
    %v2155 = vmax.f32 %v2152, 0.0
    %v2156 = vld [vmem:[#allocation10] sm:$0xff]
    %v2157 = vld [vmem:[#allocation10 + $0x8] sm:$0xff]
    %v2158 = vld [vmem:[#allocation10 + $0x10] sm:$0xff]
    %v2159 = vld [vmem:[#allocation10 + $0x18] sm:$0xff]
    %v2160 = vld [vmem:[#allocation10 + $0x20] sm:$0xff]
    %v2161 = vld [vmem:[#allocation10 + $0x28] sm:$0xff]
    %v2162 = vld [vmem:[#allocation10 + $0x30] sm:$0xff]
    %v2163 = vld [vmem:[#allocation10 + $0x38] sm:$0xff]
    %v2164 = vld [vmem:[#allocation10 + $0x40] sm:$0xff]
    %v2165 = vld [vmem:[#allocation10 + $0x48] sm:$0xff]
    %v2166 = vld [vmem:[#allocation10 + $0x50] sm:$0xff]
    %v2167 = vld [vmem:[#allocation10 + $0x58] sm:$0xff]
    %v2168 = vld [vmem:[#allocation10 + $0x60] sm:$0xff]
    %v2169 = vld [vmem:[#allocation10 + $0x68] sm:$0xff]
    %v2170 = vld [vmem:[#allocation10 + $0x70] sm:$0xff]
    %v2171 = vld [vmem:[#allocation10 + $0x78] sm:$0xff]
    %v2172 = vld [vmem:[%s9] sm:$0x1]
    %v2173 = vlaneseq
    %v2174 = vshrl.u32 %v2173, 7
    %v2175 = vsub.s32 0, %v2174
    %v2176 = vrot.slane %v2172, %v2175
    %2177 = vmatprep.subr.mxu0 0.0
    %2178 = vmatpush1.msra.mxu0 %v2156
    %2179 = vmatprep.subr.mxu0 0.0
    %2180 = vmatpush1.msra.mxu0 %v2157
    %2181 = vmatprep.subr.mxu0 0.0
    %2182 = vmatpush1.msra.mxu0 %v2158
    %2183 = vmatprep.subr.mxu0 0.0
    %2184 = vmatpush1.msra.mxu0 %v2159
    %2185 = vmatprep.subr.mxu0 0.0
    %2186 = vmatpush1.msra.mxu0 %v2160
    %2187 = vmatprep.subr.mxu0 0.0
    %2188 = vmatpush1.msra.mxu0 %v2161
    %2189 = vmatprep.subr.mxu0 0.0
    %2190 = vmatpush1.msra.mxu0 %v2162
    %2191 = vmatprep.subr.mxu0 0.0
    %2192 = vmatpush1.msra.mxu0 %v2163
    %2193 = vmatprep.subr.mxu0 0.0
    %2194 = vmatpush1.msra.mxu0 %v2164
    %2195 = vmatprep.subr.mxu0 0.0
    %2196 = vmatpush1.msra.mxu0 %v2165
    %2197 = vmatprep.subr.mxu0 0.0
    %2198 = vmatpush1.msra.mxu0 %v2166
    %2199 = vmatprep.subr.mxu0 0.0
    %2200 = vmatpush1.msra.mxu0 %v2167
    %2201 = vmatprep.subr.mxu0 0.0
    %2202 = vmatpush1.msra.mxu0 %v2168
    %2203 = vmatprep.subr.mxu0 0.0
    %2204 = vmatpush1.msra.mxu0 %v2169
    %2205 = vmatprep.subr.mxu0 0.0
    %2206 = vmatpush1.msra.mxu0 %v2170
    %2207 = vmatprep.subr.mxu0 0.0
    %2208 = vmatpush1.msra.mxu0 %v2171
    %2209 = vmatprep.subr.mxu0 0.0
    %2210 = vmatpush1.msra.mxu0 0.0
    %2211 = vmatprep.subr.mxu0 0.0
    %2212 = vmatpush1.msra.mxu0 0.0
    %2213 = vmatprep.subr.mxu0 0.0
    %2214 = vmatpush1.msra.mxu0 0.0
    %2215 = vmatprep.subr.mxu0 0.0
    %2216 = vmatpush1.msra.mxu0 0.0
    %2217 = vmatprep.subr.mxu0 0.0
    %2218 = vmatpush1.msra.mxu0 0.0
    %2219 = vmatprep.subr.mxu0 0.0
    %2220 = vmatpush1.msra.mxu0 0.0
    %2221 = vmatprep.subr.mxu0 0.0
    %2222 = vmatpush1.msra.mxu0 0.0
    %2223 = vmatprep.subr.mxu0 0.0
    %2224 = vmatpush1.msra.mxu0 0.0
    %2225 = vmatprep.subr.mxu0 0.0
    %2226 = vmatpush1.msra.mxu0 0.0
    %2227 = vmatprep.subr.mxu0 0.0
    %2228 = vmatpush1.msra.mxu0 0.0
    %2229 = vmatprep.subr.mxu0 0.0
    %2230 = vmatpush1.msra.mxu0 0.0
    %2231 = vmatprep.subr.mxu0 0.0
    %2232 = vmatpush1.msra.mxu0 0.0
    %2233 = vmatprep.subr.mxu0 0.0
    %2234 = vmatpush1.msra.mxu0 0.0
    %2235 = vmatprep.subr.mxu0 0.0
    %2236 = vmatpush1.msra.mxu0 0.0
    %2237 = vmatprep.subr.mxu0 0.0
    %2238 = vmatpush1.msra.mxu0 0.0
    %2239 = vmatprep.subr.mxu0 0.0
    %2240 = vmatpush1.msra.mxu0 0.0
    %2241 = vmatprep.mubr.f32.mxu0 0.0
    %2242 = vmatmul.mubr.f32.gmra.mrb[0].mxu0 %v2155
    %v2243 = vpop.f32.mrb[0].mxu0
    %v2244 = vadd.f32 %v2176, %v2243
    %v2245 = vpop.f32.mrb[0].mxu0
    %2246 = vdwg.mxu0
    %2247 = vmax.xlane.f32.xlu0 %v2244
    %v2248 = vpop.xlane.xlu0 %2247
    %v2249 = vsub.f32 %v2244, %v2248
    %v2250 = vmul.f32 %v2249, 1.442695
    %v2251 = vpow.pop %v2250
    %2252 = vadd.xlane.f32.xlu0 %v2251
    %v2253 = vpop.xlane.xlu0 %2252
    %v2254 = vrcp.pop %v2253
    %v2255 = vmul.f32 %v2251, %v2254
    %2256 = vst [vmem:[%s10] sm:$0xff] %v2255
    // Predicated region
    $region62: #{pg_rnn_rollout.1} parent=1 // pred_check
      _
    $region63: #{pg_rnn_rollout.1} parent=1 // pred_check_branch
      %2258 = sbr.rel (0) target = $region65
    $region64: #{pg_rnn_rollout.1} parent=1 // pred_region
      _
    $region65: #{pg_rnn_rollout.1} parent=1 // pred_fallthru
      _
    // Predicated region
    $region66: #{pg_rnn_rollout.1} parent=1 // pred_check
      _
    $region67: #{pg_rnn_rollout.1} parent=1 // pred_check_branch
      %2260 = sbr.rel (0) target = $region69
    $region68: #{pg_rnn_rollout.1} parent=1 // pred_region
      %s2262 = ssub.s32 128, 128
      %2263 = vsyncadd [#allocation6], %s2262
      %s2265 = sshll.u32 [#allocation12], 4
      %s2266 = int_to_ptr.vmem [resolvable:$true] %s2265
      %2268 = dma.vmem_to_hbm [thread:$0]  %s2266, 128, %s11, [#allocation6]
    $region69: #{pg_rnn_rollout.1} parent=1 // pred_fallthru
      _
    // Predicated region
    $region70: #{pg_rnn_rollout.1} parent=1 // pred_check
      _
    $region71: #{pg_rnn_rollout.1} parent=1 // pred_check_branch
      %2270 = sbr.rel (0) target = $region73
    $region72: #{pg_rnn_rollout.1} parent=1 // pred_region
      _
    $region73: #{pg_rnn_rollout.1} parent=1 // pred_fallthru
      _
    // Predicated region
    $region74: #{pg_rnn_rollout.1} parent=1 // pred_check
      _
    $region75: #{pg_rnn_rollout.1} parent=1 // pred_check_branch
      %2272 = sbr.rel (0) target = $region77
    $region76: #{pg_rnn_rollout.1} parent=1 // pred_region
      %2273 = dma.done [#allocation6], 128
    $region77: #{pg_rnn_rollout.1} parent=1 // pred_fallthru
      _
    %2274 = vsyncpa [#allocation5], 1
    %2275 = vsyncpa [#allocation8], 1
    %2276 = vsyncpa [#allocation11], 1
    %2277 = vsyncpa [#allocation6], 1

</llo_original>
